<compile_context>
chip_gen: v7x
topology: tpu7x:2x2x1
jax: 0.10.0
libtpu: 0.0.40
codegen_flags: <defaults>
</compile_context>

<pallas_src>
import jax
import jax.numpy as jnp
from jax import lax
from jax.experimental import pallas as pl
from jax.experimental.pallas import tpu as pltpu


TILE_V = 2048        # vocab tile for the output projection (capped to padded vocab)
ENERGY_BF16 = True   # bf16 tanh for the attention energy (set False on v5e)


def _round_up(x, m):
    return ((x + m - 1) // m) * m


def decoder_kernel(ids_ref,                       # scalar prefetch: [B] int32 (SMEM)
                   h_ref, enc_ref, mask_ref, emb_hbm_ref,
                   wa_h_ref, wa_e_ref, ba_ref, v_ref,
                   wih_t_ref, bih_ref, whh_t_ref, bhh_ref,
                   wo_t_ref, bo_ref,
                   pred_ref, hnew_ref, attn_ref,
                   emb_buf, fcw_bf, emb_sem):
    j = pl.program_id(0)                          # vocab-tile index
    B, S, E = enc_ref.shape
    H = h_ref.shape[1]
    Demb = emb_buf.shape[1]

    # All per-token state (embedding gather, attention, GRU) is computed once on
    # the first vocab tile and stashed in VMEM scratch; the remaining grid steps
    # only run the V-tiled output projection.
    @pl.when(j == 0)
    def _():
        # ---- embedding lookup: start DMA-gather of the B needed rows from HBM.
        # Do NOT wait yet — the waits are deferred past the attention compute so
        # the gather latency is fully hidden.
        copies = []
        for b in range(B):                        # B is small & static
            cp = pltpu.make_async_copy(
                emb_hbm_ref.at[pl.ds(ids_ref[b], 1), :],
                emb_buf.at[pl.ds(b, 1), :],
                emb_sem.at[b])
            cp.start()
            copies.append(cp)

        h = h_ref[...]                                                        # [B, H] f32
        h_bf = h.astype(jnp.bfloat16)
        enc_bf = enc_ref[...]                                                 # [B, S, E] bf16

        # ---- Bahdanau attention (scores / mask / softmax kept in f32) ----
        hid_proj = jnp.dot(h_bf, wa_h_ref[...],
                           preferred_element_type=jnp.float32)                # [B, H]
        enc_proj = jnp.dot(enc_bf.reshape(B * S, E), wa_e_ref[...],
                           preferred_element_type=jnp.float32).reshape(B, S, H)
        pre = hid_proj[:, None, :] + enc_proj + ba_ref[...][None, :, :]       # [B, S, H]
        if ENERGY_BF16:
            # bf16 tanh: halves EUP / vreg pressure on v6e/v7x (perf-only choice).
            energy = jnp.tanh(pre.astype(jnp.bfloat16)).astype(jnp.float32)
        else:
            energy = jnp.tanh(pre)
        scores = jnp.sum(energy * v_ref[...][None, :, :], axis=-1)            # [B, S]
        scores = jnp.where(mask_ref[...] > 0.0, scores, jnp.float32(-1e10))
        m = jnp.max(scores, axis=-1, keepdims=True)
        e = jnp.exp(scores - m)
        a = e * pl.reciprocal(jnp.sum(e, axis=-1, keepdims=True), approx=True)

        # ---- weighted = bmm(a, encoder_outputs) on the MXU ----
        weighted = lax.dot_general(
            a.astype(jnp.bfloat16).reshape(B, 1, S), enc_bf,
            dimension_numbers=(((2,), (1,)), ((0,), (0,))),
            preferred_element_type=jnp.float32).reshape(B, E)                 # [B, E]

        # ---- now consume the gathered embeddings (latency hidden above) ----
        for cp in copies:
            cp.wait()
        emb_bf = emb_buf[...].astype(jnp.bfloat16)                            # [B, Demb]

        # stash bf16 [weighted | emb | h_new] — shared operand of the fused
        # GRU-input matmul and every vocab-tile of the output projection.
        fcw_bf[:, 0:E] = weighted.astype(jnp.bfloat16)
        fcw_bf[:, E:E + Demb] = emb_bf

        # ---- single GRU step (PyTorch gate order r, z, n), fused input matmul ----
        rnn_in = fcw_bf[:, 0:E + Demb]                                        # [B, E+Demb] bf16
        gi = jnp.dot(rnn_in, wih_t_ref[...],
                     preferred_element_type=jnp.float32) + bih_ref[...]       # [B, 3H]
        gh = jnp.dot(h_bf, whh_t_ref[...],
                     preferred_element_type=jnp.float32) + bhh_ref[...]       # [B, 3H]
        r = jax.nn.sigmoid(gi[:, 0:H] + gh[:, 0:H])
        z = jax.nn.sigmoid(gi[:, H:2 * H] + gh[:, H:2 * H])
        n = jnp.tanh(gi[:, 2 * H:3 * H] + r * gh[:, 2 * H:3 * H])
        h_new = (1.0 - z) * n + z * h                                         # [B, H] f32

        fcw_bf[:, E + Demb:E + Demb + H] = h_new.astype(jnp.bfloat16)

        # h_new / attention outputs: grid-constant BlockSpecs stay VMEM-resident,
        # so a single write here is enough (no per-tile re-stores).
        hnew_ref[...] = h_new
        attn_ref[...] = a

    # ---- hot loop: fused, vocab-tiled output projection  [B, K] x [K, TILE_V] ----
    pred_ref[...] = (jnp.dot(fcw_bf[...], wo_t_ref[...],
                             preferred_element_type=jnp.float32) + bo_ref[...])


def init_params(key, output_dim, emb_dim, enc_hid, dec_hid):
    ks = jax.random.split(key, 8)
    s = 0.1
    emb_tab = jax.random.normal(ks[0], (output_dim, emb_dim), jnp.float32) * s
    emb_tab = emb_tab.at[0].set(0.0)  # padding_idx = 0
    # attention: Linear(dec_hid + enc_hid -> dec_hid), cat order (hidden, enc_out)
    W_attn = jax.random.normal(ks[1], (dec_hid, dec_hid + enc_hid), jnp.float32) * s
    b_attn = jax.random.normal(ks[2], (dec_hid,), jnp.float32) * s
    v_vec = jax.random.normal(ks[3], (dec_hid,), jnp.float32) * s
    # GRU(emb + enc_hid -> dec_hid)
    W_ih = jax.random.normal(ks[4], (3 * dec_hid, emb_dim + enc_hid), jnp.float32) * s
    b_ih = jax.random.normal(ks[5], (3 * dec_hid,), jnp.float32) * s
    W_hh = jax.random.normal(ks[6], (3 * dec_hid, dec_hid), jnp.float32) * s
    b_hh = jax.random.normal(ks[7], (3 * dec_hid,), jnp.float32) * s
    k2 = jax.random.split(jax.random.fold_in(key, 123), 2)
    # out: Linear(dec_hid + enc_hid + emb -> output_dim)
    W_out = jax.random.normal(k2[0], (output_dim, dec_hid + enc_hid + emb_dim), jnp.float32) * s
    b_out = jax.random.normal(k2[1], (output_dim,), jnp.float32) * s
    return dict(emb_tab=emb_tab, W_attn=W_attn, b_attn=b_attn, v=v_vec,
                W_ih=W_ih, b_ih=b_ih, W_hh=W_hh, b_hh=b_hh,
                W_out=W_out, b_out=b_out)


def prepare_decoder_params(params, emb_dim, enc_hid, dec_hid, output_dim, tile_v=TILE_V):
    """One-time re-layout of PyTorch-style weights into kernel-ready form.

    Do this ONCE at load time, not per decode step (avoids re-transposing and
    re-casting every token, which would otherwise dominate HBM traffic)."""
    f32, bf16 = jnp.float32, jnp.bfloat16
    W_attn = params["W_attn"].astype(f32)
    W_ih = params["W_ih"].astype(f32)
    W_hh = params["W_hh"].astype(f32)
    W_out = params["W_out"].astype(f32)

    # Vocab tile: big (2048 default) to amortise per-grid-step overhead, but never
    # larger than the 128-rounded vocab itself (small-vocab / unit-test case).
    tile_v = min(tile_v, _round_up(output_dim, 128))
    v_pad = _round_up(output_dim, tile_v)

    wa_h = W_attn[:, :dec_hid].T.astype(bf16)                               # [H, H]
    wa_e = W_attn[:, dec_hid:].T.astype(bf16)                               # [E, H]
    # GRU input weights reordered to the kernel's [weighted | emb] buffer layout
    wih_t = jnp.concatenate([W_ih[:, emb_dim:], W_ih[:, :emb_dim]],
                            axis=1).T.astype(bf16)                          # [E+Demb, 3H]
    whh_t = W_hh.T.astype(bf16)                                             # [H, 3H]
    # output projection reordered to [weighted | emb | h_new], padded over vocab
    wo = jnp.concatenate([W_out[:, dec_hid:dec_hid + enc_hid],
                          W_out[:, dec_hid + enc_hid:],
                          W_out[:, :dec_hid]], axis=1).T                    # [E+Demb+H, V]
    wo_t = jnp.zeros((enc_hid + emb_dim + dec_hid, v_pad), f32)
    wo_t = wo_t.at[:, :output_dim].set(wo).astype(bf16)
    bo = jnp.zeros((1, v_pad), f32).at[0, :output_dim].set(params["b_out"])

    return dict(
        # 2-D [V, Demb] table, kept f32 so each gathered row is a sublane-aligned
        # 32-bit DMA write into the (B, Demb) VMEM buffer.
        emb_tab=params["emb_tab"].astype(f32),
        wa_h=wa_h, wa_e=wa_e,
        ba=params["b_attn"].reshape(1, dec_hid).astype(f32),
        v=params["v"].reshape(1, dec_hid).astype(f32),
        wih_t=wih_t, bih=params["b_ih"].reshape(1, -1).astype(f32),
        whh_t=whh_t, bhh=params["b_hh"].reshape(1, -1).astype(f32),
        wo_t=wo_t, bo=bo,
        dims=dict(emb_dim=emb_dim, enc_hid=enc_hid, dec_hid=dec_hid,
                  output_dim=output_dim, v_pad=v_pad, tile_v=tile_v),
    )


def prepare_encoder_outputs(encoder_outputs, mask, s_pad_multiple=128):
    """[S,B,E] -> batch-major bf16, S padded to a lane-dense multiple of 128.
    Done ONCE per source sequence (encoder outputs are fixed across decode steps)."""
    S, B, E = encoder_outputs.shape
    s_pad = _round_up(S, s_pad_multiple)
    enc = jnp.transpose(encoder_outputs, (1, 0, 2)).astype(jnp.bfloat16)     # [B, S, E]
    enc = jnp.pad(enc, ((0, 0), (0, s_pad - S), (0, 0)))
    mask_p = jnp.pad(mask.astype(jnp.float32), ((0, 0), (0, s_pad - S)))
    return enc, mask_p


def decoder_step(input_ids, hidden, enc_prepared, mask_prepared, kparams, src_len):
    """One decode step. input_ids [B] int, hidden [1,B,H], enc_prepared [B,S_pad,E] bf16."""
    d = kparams["dims"]
    B = input_ids.shape[0]
    H, E, Demb = d["dec_hid"], d["enc_hid"], d["emb_dim"]
    V, V_pad, tile_v = d["output_dim"], d["v_pad"], d["tile_v"]
    S_pad = enc_prepared.shape[1]
    K_out = E + Demb + H

    ids = input_ids.astype(jnp.int32)
    h = hidden[0].astype(jnp.float32)

    # Explicit VMEM budget: double-buffered wo_t/bo/pred tiles + resident
    # enc/mask/weights/scratch, with headroom.  Keeps us well under v7x's
    # 64 MiB physical (32 MiB scoped default) and v5e's 16 MiB scoped default.
    tiled_bytes = 2 * (K_out * tile_v * 2 + tile_v * 4 + B * tile_v * 4)
    resident_bytes = (B * S_pad * E * 2 + B * S_pad * 4 + B * H * 4            # enc, mask, h
                      + H * H * 2 + E * H * 2 + (E + Demb) * 3 * H * 2         # attn + GRU W (bf16)
                      + H * 3 * H * 2 + 10 * H * 4                             # whh + biases/v
                      + B * Demb * 4 + B * K_out * 2                           # scratch
                      + B * H * 4 + B * S_pad * 4)                             # resident outputs
    vmem_limit = min(max(2 * (tiled_bytes + resident_bytes) + (4 << 20), 16 << 20), 48 << 20)

    grid_spec = pltpu.PrefetchScalarGridSpec(
        num_scalar_prefetch=1,                 # ids -> SMEM, used for the HBM gather
        grid=(V_pad // tile_v,),               # vocab-tiled output projection
        in_specs=[
            pl.BlockSpec((B, H), lambda j, ids_s: (0, 0)),            # h
            pl.BlockSpec((B, S_pad, E), lambda j, ids_s: (0, 0, 0)),  # enc (bf16)
            pl.BlockSpec((B, S_pad), lambda j, ids_s: (0, 0)),        # mask
            pl.BlockSpec(memory_space=pl.ANY),                        # emb table (HBM)
            pl.BlockSpec((H, H), lambda j, ids_s: (0, 0)),            # wa_h
            pl.BlockSpec((E, H), lambda j, ids_s: (0, 0)),            # wa_e
            pl.BlockSpec((1, H), lambda j, ids_s: (0, 0)),            # ba
            pl.BlockSpec((1, H), lambda j, ids_s: (0, 0)),            # v
            pl.BlockSpec((E + Demb, 3 * H), lambda j, ids_s: (0, 0)),  # wih_t
            pl.BlockSpec((1, 3 * H), lambda j, ids_s: (0, 0)),        # bih
            pl.BlockSpec((H, 3 * H), lambda j, ids_s: (0, 0)),        # whh_t
            pl.BlockSpec((1, 3 * H), lambda j, ids_s: (0, 0)),        # bhh
            pl.BlockSpec((K_out, tile_v), lambda j, ids_s: (0, j)),   # wo_t (V-tiled)
            pl.BlockSpec((1, tile_v), lambda j, ids_s: (0, j)),       # bo (V-tiled)
        ],
        out_specs=(
            pl.BlockSpec((B, tile_v), lambda j, ids_s: (0, j)),       # prediction
            pl.BlockSpec((B, H), lambda j, ids_s: (0, 0)),            # h_new (written once)
            pl.BlockSpec((B, S_pad), lambda j, ids_s: (0, 0)),        # attention (written once)
        ),
        scratch_shapes=[
            pltpu.VMEM((B, Demb), jnp.float32),      # gathered embedding rows (f32)
            pltpu.VMEM((B, K_out), jnp.bfloat16),    # bf16 [weighted | emb | h_new]
            pltpu.SemaphoreType.DMA((B,)),           # one sem per gathered row
        ],
    )

    pred, h_new, attn = pl.pallas_call(
        decoder_kernel,
        out_shape=(
            jax.ShapeDtypeStruct((B, V_pad), jnp.float32),
            jax.ShapeDtypeStruct((B, H), jnp.float32),
            jax.ShapeDtypeStruct((B, S_pad), jnp.float32),
        ),
        grid_spec=grid_spec,
        # "arbitrary": vocab tiles run sequentially so the j==0 scratch state is
        # visible to later tiles.
        compiler_params=pltpu.CompilerParams(
            dimension_semantics=("arbitrary",),
            vmem_limit_bytes=int(vmem_limit)),
    )(ids, h, enc_prepared, mask_prepared, kparams["emb_tab"],
      kparams["wa_h"], kparams["wa_e"], kparams["ba"], kparams["v"],
      kparams["wih_t"], kparams["bih"], kparams["whh_t"], kparams["bhh"],
      kparams["wo_t"], kparams["bo"])

    return pred[:, :V], h_new[None], attn[:, :src_len]


def decoder_forward_ref(input_ids, hidden, encoder_outputs, mask, params, dec_hid):
    """Pure-JAX reference matching the PyTorch forward (eval mode).

    Mirrors the kernel's mixed-precision policy (bf16 matmul operands, f32
    accumulation / softmax / gates) so the comparison isolates structural
    correctness from bf16 rounding."""
    bf = lambda x: x.astype(jnp.bfloat16).astype(jnp.float32)
    emb = params["emb_tab"][input_ids]                                   # [B, Demb]
    h = hidden[0]                                                        # [B, H]
    enc = jnp.transpose(encoder_outputs, (1, 0, 2))                      # [B, S, E]
    B, S, _ = enc.shape
    enc_b, h_b = bf(enc), bf(h)
    hid_rep = jnp.repeat(h_b[:, None, :], S, axis=1)
    energy = jnp.tanh(jnp.concatenate([hid_rep, enc_b], axis=2) @ bf(params["W_attn"]).T
                      + params["b_attn"])
    scores = jnp.einsum("bsh,h->bs", energy, params["v"])
    scores = jnp.where(mask > 0, scores, -1e10)
    a = jax.nn.softmax(scores, axis=1)
    weighted = jnp.einsum("bs,bse->be", bf(a), enc_b)
    x = jnp.concatenate([bf(emb), bf(weighted)], axis=1)
    gi = x @ bf(params["W_ih"]).T + params["b_ih"]
    gh = h_b @ bf(params["W_hh"]).T + params["b_hh"]
    H = dec_hid
    r = jax.nn.sigmoid(gi[:, :H] + gh[:, :H])
    z = jax.nn.sigmoid(gi[:, H:2 * H] + gh[:, H:2 * H])
    n = jnp.tanh(gi[:, 2 * H:] + r * gh[:, 2 * H:])
    h_new = (1 - z) * n + z * h
    fc_in = jnp.concatenate([bf(h_new), bf(weighted), bf(emb)], axis=1)
    pred = fc_in @ bf(params["W_out"]).T + params["b_out"]
    return pred, h_new[None], a


if __name__ == "__main__":
    # Small shapes consistent with Config (HID/EMB = 128), tiny vocab / seq.
    B, S = 8, 10
    EMB, ENC_H, DEC_H, V = 128, 128, 128, 256

    key = jax.random.PRNGKey(0)
    k_in, k_h, k_enc, k_p = jax.random.split(key, 4)

    input_ids = jax.random.randint(k_in, (B,), 0, V, dtype=jnp.int32)
    hidden = jax.random.normal(k_h, (1, B, DEC_H), jnp.float32)
    encoder_outputs = jax.random.normal(k_enc, (S, B, ENC_H), jnp.float32)
    lengths = jnp.arange(B) % S + 3
    mask = (jnp.arange(S)[None, :] < lengths[:, None]).astype(jnp.float32)   # [B, S]

    params = init_params(k_p, V, EMB, ENC_H, DEC_H)
    kparams = prepare_decoder_params(params, EMB, ENC_H, DEC_H, V)           # once
    enc_p, mask_p = prepare_encoder_outputs(encoder_outputs, mask)           # once per src

    pred, h_new, attn = decoder_step(input_ids, hidden, enc_p, mask_p, kparams, S)
    jax.block_until_ready((pred, h_new, attn))

    p_ref, h_ref, a_ref = decoder_forward_ref(input_ids, hidden, encoder_outputs,
                                              mask, params, DEC_H)
    assert jnp.allclose(pred, p_ref, atol=4e-2, rtol=4e-2), \
        float(jnp.max(jnp.abs(pred - p_ref)))
    assert jnp.allclose(h_new, h_ref, atol=4e-2, rtol=4e-2), \
        float(jnp.max(jnp.abs(h_new - h_ref)))
    assert jnp.allclose(attn, a_ref, atol=4e-2, rtol=4e-2), \
        float(jnp.max(jnp.abs(attn - a_ref)))

    print("KERNEL_OK")
</pallas_src>

<mosaic_0001>
module attributes {stable_mosaic.version = 11 : i64} {
  func.func @decoder_kernel(%arg0: i32, %arg1: memref<8xi32, #tpu.memory_space<smem>>, %arg2: memref<8x128xf32, #tpu.memory_space<vmem>>, %arg3: memref<8x128x128xbf16, #tpu.memory_space<vmem>>, %arg4: memref<8x128xf32, #tpu.memory_space<vmem>>, %arg5: memref<256x128xf32, #tpu.memory_space<any>>, %arg6: memref<128x128xbf16, #tpu.memory_space<vmem>>, %arg7: memref<128x128xbf16, #tpu.memory_space<vmem>>, %arg8: memref<1x128xf32, #tpu.memory_space<vmem>>, %arg9: memref<1x128xf32, #tpu.memory_space<vmem>>, %arg10: memref<256x384xbf16, #tpu.memory_space<vmem>>, %arg11: memref<1x384xf32, #tpu.memory_space<vmem>>, %arg12: memref<128x384xbf16, #tpu.memory_space<vmem>>, %arg13: memref<1x384xf32, #tpu.memory_space<vmem>>, %arg14: memref<384x256xbf16, #tpu.memory_space<vmem>>, %arg15: memref<1x256xf32, #tpu.memory_space<vmem>>, %arg16: memref<8x256xf32, #tpu.memory_space<vmem>>, %arg17: memref<8x128xf32, #tpu.memory_space<vmem>>, %arg18: memref<8x128xf32, #tpu.memory_space<vmem>>, %arg19: memref<8x128xf32, #tpu.memory_space<vmem>>, %arg20: memref<8x384xbf16, #tpu.memory_space<vmem>>, %arg21: memref<8x!tpu.dma_semaphore, #tpu.memory_space<semaphore_mem>>) attributes {dimension_semantics = [#tpu.dimension_semantics<arbitrary>], iteration_bounds = array<i64: 1>, scalar_prefetch = 1 : i64, scratch_operands = 3 : i64, tpu.core_type = #tpu.core_type<tc>, window_params = [{pipeline_mode = #tpu.pipeline_mode<synchronous>, transform_indices = @transform_0, window_bounds = array<i64: 8, 128>}, {pipeline_mode = #tpu.pipeline_mode<synchronous>, transform_indices = @transform_1, window_bounds = array<i64: 8, 128, 128>}, {pipeline_mode = #tpu.pipeline_mode<synchronous>, transform_indices = @transform_2, window_bounds = array<i64: 8, 128>}, {}, {pipeline_mode = #tpu.pipeline_mode<synchronous>, transform_indices = @transform_4, window_bounds = array<i64: 128, 128>}, {pipeline_mode = #tpu.pipeline_mode<synchronous>, transform_indices = @transform_5, window_bounds = array<i64: 128, 128>}, {pipeline_mode = #tpu.pipeline_mode<synchronous>, transform_indices = @transform_6, window_bounds = array<i64: 1, 128>}, {pipeline_mode = #tpu.pipeline_mode<synchronous>, transform_indices = @transform_7, window_bounds = array<i64: 1, 128>}, {pipeline_mode = #tpu.pipeline_mode<synchronous>, transform_indices = @transform_8, window_bounds = array<i64: 256, 384>}, {pipeline_mode = #tpu.pipeline_mode<synchronous>, transform_indices = @transform_9, window_bounds = array<i64: 1, 384>}, {pipeline_mode = #tpu.pipeline_mode<synchronous>, transform_indices = @transform_10, window_bounds = array<i64: 128, 384>}, {pipeline_mode = #tpu.pipeline_mode<synchronous>, transform_indices = @transform_11, window_bounds = array<i64: 1, 384>}, {transform_indices = @transform_12, window_bounds = array<i64: 384, 256>}, {transform_indices = @transform_13, window_bounds = array<i64: 1, 256>}, {transform_indices = @transform_14, window_bounds = array<i64: 8, 256>}, {pipeline_mode = #tpu.pipeline_mode<synchronous>, transform_indices = @transform_15, window_bounds = array<i64: 8, 128>}, {pipeline_mode = #tpu.pipeline_mode<synchronous>, transform_indices = @transform_16, window_bounds = array<i64: 8, 128>}]} {
    %c0_i32 = arith.constant 0 : i32
    %0 = arith.cmpi eq, %arg0, %c0_i32 : i32
    %1 = arith.extui %0 : i1 to i32
    %c0_i32_0 = arith.constant 0 : i32
    %2 = arith.cmpi ne, %1, %c0_i32_0 : i32
    scf.if %2 {
      %c0_8 = arith.constant 0 : index
      %10 = memref.load %arg1[%c0_8] : memref<8xi32, #tpu.memory_space<smem>>
      %c0_i32_9 = arith.constant 0 : i32
      %c0_i32_10 = arith.constant 0 : i32
      %11 = tpu.memref_slice %arg5[%10, %c0_i32_10] : memref<256x128xf32, #tpu.memory_space<any>> -> memref<1x128xf32, #tpu.memory_space<any>>
      %c0_i32_11 = arith.constant 0 : i32
      %c0_i32_12 = arith.constant 0 : i32
      %12 = tpu.memref_slice %arg19[%c0_i32_11, %c0_i32_12] : memref<8x128xf32, #tpu.memory_space<vmem>> -> memref<1x128xf32, #tpu.memory_space<vmem>>
      %13 = tpu.memref_slice %arg21[%c0_i32_9] : memref<8x!tpu.dma_semaphore, #tpu.memory_space<semaphore_mem>> -> memref<1x!tpu.dma_semaphore, #tpu.memory_space<semaphore_mem>>
      %14 = tpu.memref_squeeze %13 : memref<1x!tpu.dma_semaphore, #tpu.memory_space<semaphore_mem>> -> memref<!tpu.dma_semaphore, #tpu.memory_space<semaphore_mem>>
      tpu.enqueue_dma source(%11 : memref<1x128xf32, #tpu.memory_space<any>>) target(%12 : memref<1x128xf32, #tpu.memory_space<vmem>>) target_semaphore(%14 : memref<!tpu.dma_semaphore, #tpu.memory_space<semaphore_mem>>)
      %c1 = arith.constant 1 : index
      %15 = memref.load %arg1[%c1] : memref<8xi32, #tpu.memory_space<smem>>
      %c1_i32 = arith.constant 1 : i32
      %c0_i32_13 = arith.constant 0 : i32
      %16 = tpu.memref_slice %arg5[%15, %c0_i32_13] : memref<256x128xf32, #tpu.memory_space<any>> -> memref<1x128xf32, #tpu.memory_space<any>>
      %c1_i32_14 = arith.constant 1 : i32
      %c0_i32_15 = arith.constant 0 : i32
      %17 = tpu.memref_slice %arg19[%c1_i32_14, %c0_i32_15] : memref<8x128xf32, #tpu.memory_space<vmem>> -> memref<1x128xf32, #tpu.memory_space<vmem>>
      %18 = tpu.memref_slice %arg21[%c1_i32] : memref<8x!tpu.dma_semaphore, #tpu.memory_space<semaphore_mem>> -> memref<1x!tpu.dma_semaphore, #tpu.memory_space<semaphore_mem>>
      %19 = tpu.memref_squeeze %18 : memref<1x!tpu.dma_semaphore, #tpu.memory_space<semaphore_mem>> -> memref<!tpu.dma_semaphore, #tpu.memory_space<semaphore_mem>>
      tpu.enqueue_dma source(%16 : memref<1x128xf32, #tpu.memory_space<any>>) target(%17 : memref<1x128xf32, #tpu.memory_space<vmem>>) target_semaphore(%19 : memref<!tpu.dma_semaphore, #tpu.memory_space<semaphore_mem>>)
      %c2 = arith.constant 2 : index
      %20 = memref.load %arg1[%c2] : memref<8xi32, #tpu.memory_space<smem>>
      %c2_i32 = arith.constant 2 : i32
      %c0_i32_16 = arith.constant 0 : i32
      %21 = tpu.memref_slice %arg5[%20, %c0_i32_16] : memref<256x128xf32, #tpu.memory_space<any>> -> memref<1x128xf32, #tpu.memory_space<any>>
      %c2_i32_17 = arith.constant 2 : i32
      %c0_i32_18 = arith.constant 0 : i32
      %22 = tpu.memref_slice %arg19[%c2_i32_17, %c0_i32_18] : memref<8x128xf32, #tpu.memory_space<vmem>> -> memref<1x128xf32, #tpu.memory_space<vmem>>
      %23 = tpu.memref_slice %arg21[%c2_i32] : memref<8x!tpu.dma_semaphore, #tpu.memory_space<semaphore_mem>> -> memref<1x!tpu.dma_semaphore, #tpu.memory_space<semaphore_mem>>
      %24 = tpu.memref_squeeze %23 : memref<1x!tpu.dma_semaphore, #tpu.memory_space<semaphore_mem>> -> memref<!tpu.dma_semaphore, #tpu.memory_space<semaphore_mem>>
      tpu.enqueue_dma source(%21 : memref<1x128xf32, #tpu.memory_space<any>>) target(%22 : memref<1x128xf32, #tpu.memory_space<vmem>>) target_semaphore(%24 : memref<!tpu.dma_semaphore, #tpu.memory_space<semaphore_mem>>)
      %c3 = arith.constant 3 : index
      %25 = memref.load %arg1[%c3] : memref<8xi32, #tpu.memory_space<smem>>
      %c3_i32 = arith.constant 3 : i32
      %c0_i32_19 = arith.constant 0 : i32
      %26 = tpu.memref_slice %arg5[%25, %c0_i32_19] : memref<256x128xf32, #tpu.memory_space<any>> -> memref<1x128xf32, #tpu.memory_space<any>>
      %c3_i32_20 = arith.constant 3 : i32
      %c0_i32_21 = arith.constant 0 : i32
      %27 = tpu.memref_slice %arg19[%c3_i32_20, %c0_i32_21] : memref<8x128xf32, #tpu.memory_space<vmem>> -> memref<1x128xf32, #tpu.memory_space<vmem>>
      %28 = tpu.memref_slice %arg21[%c3_i32] : memref<8x!tpu.dma_semaphore, #tpu.memory_space<semaphore_mem>> -> memref<1x!tpu.dma_semaphore, #tpu.memory_space<semaphore_mem>>
      %29 = tpu.memref_squeeze %28 : memref<1x!tpu.dma_semaphore, #tpu.memory_space<semaphore_mem>> -> memref<!tpu.dma_semaphore, #tpu.memory_space<semaphore_mem>>
      tpu.enqueue_dma source(%26 : memref<1x128xf32, #tpu.memory_space<any>>) target(%27 : memref<1x128xf32, #tpu.memory_space<vmem>>) target_semaphore(%29 : memref<!tpu.dma_semaphore, #tpu.memory_space<semaphore_mem>>)
      %c4 = arith.constant 4 : index
      %30 = memref.load %arg1[%c4] : memref<8xi32, #tpu.memory_space<smem>>
      %c4_i32 = arith.constant 4 : i32
      %c0_i32_22 = arith.constant 0 : i32
      %31 = tpu.memref_slice %arg5[%30, %c0_i32_22] : memref<256x128xf32, #tpu.memory_space<any>> -> memref<1x128xf32, #tpu.memory_space<any>>
      %c4_i32_23 = arith.constant 4 : i32
      %c0_i32_24 = arith.constant 0 : i32
      %32 = tpu.memref_slice %arg19[%c4_i32_23, %c0_i32_24] : memref<8x128xf32, #tpu.memory_space<vmem>> -> memref<1x128xf32, #tpu.memory_space<vmem>>
      %33 = tpu.memref_slice %arg21[%c4_i32] : memref<8x!tpu.dma_semaphore, #tpu.memory_space<semaphore_mem>> -> memref<1x!tpu.dma_semaphore, #tpu.memory_space<semaphore_mem>>
      %34 = tpu.memref_squeeze %33 : memref<1x!tpu.dma_semaphore, #tpu.memory_space<semaphore_mem>> -> memref<!tpu.dma_semaphore, #tpu.memory_space<semaphore_mem>>
      tpu.enqueue_dma source(%31 : memref<1x128xf32, #tpu.memory_space<any>>) target(%32 : memref<1x128xf32, #tpu.memory_space<vmem>>) target_semaphore(%34 : memref<!tpu.dma_semaphore, #tpu.memory_space<semaphore_mem>>)
      %c5 = arith.constant 5 : index
      %35 = memref.load %arg1[%c5] : memref<8xi32, #tpu.memory_space<smem>>
      %c5_i32 = arith.constant 5 : i32
      %c0_i32_25 = arith.constant 0 : i32
      %36 = tpu.memref_slice %arg5[%35, %c0_i32_25] : memref<256x128xf32, #tpu.memory_space<any>> -> memref<1x128xf32, #tpu.memory_space<any>>
      %c5_i32_26 = arith.constant 5 : i32
      %c0_i32_27 = arith.constant 0 : i32
      %37 = tpu.memref_slice %arg19[%c5_i32_26, %c0_i32_27] : memref<8x128xf32, #tpu.memory_space<vmem>> -> memref<1x128xf32, #tpu.memory_space<vmem>>
      %38 = tpu.memref_slice %arg21[%c5_i32] : memref<8x!tpu.dma_semaphore, #tpu.memory_space<semaphore_mem>> -> memref<1x!tpu.dma_semaphore, #tpu.memory_space<semaphore_mem>>
      %39 = tpu.memref_squeeze %38 : memref<1x!tpu.dma_semaphore, #tpu.memory_space<semaphore_mem>> -> memref<!tpu.dma_semaphore, #tpu.memory_space<semaphore_mem>>
      tpu.enqueue_dma source(%36 : memref<1x128xf32, #tpu.memory_space<any>>) target(%37 : memref<1x128xf32, #tpu.memory_space<vmem>>) target_semaphore(%39 : memref<!tpu.dma_semaphore, #tpu.memory_space<semaphore_mem>>)
      %c6 = arith.constant 6 : index
      %40 = memref.load %arg1[%c6] : memref<8xi32, #tpu.memory_space<smem>>
      %c6_i32 = arith.constant 6 : i32
      %c0_i32_28 = arith.constant 0 : i32
      %41 = tpu.memref_slice %arg5[%40, %c0_i32_28] : memref<256x128xf32, #tpu.memory_space<any>> -> memref<1x128xf32, #tpu.memory_space<any>>
      %c6_i32_29 = arith.constant 6 : i32
      %c0_i32_30 = arith.constant 0 : i32
      %42 = tpu.memref_slice %arg19[%c6_i32_29, %c0_i32_30] : memref<8x128xf32, #tpu.memory_space<vmem>> -> memref<1x128xf32, #tpu.memory_space<vmem>>
      %43 = tpu.memref_slice %arg21[%c6_i32] : memref<8x!tpu.dma_semaphore, #tpu.memory_space<semaphore_mem>> -> memref<1x!tpu.dma_semaphore, #tpu.memory_space<semaphore_mem>>
      %44 = tpu.memref_squeeze %43 : memref<1x!tpu.dma_semaphore, #tpu.memory_space<semaphore_mem>> -> memref<!tpu.dma_semaphore, #tpu.memory_space<semaphore_mem>>
      tpu.enqueue_dma source(%41 : memref<1x128xf32, #tpu.memory_space<any>>) target(%42 : memref<1x128xf32, #tpu.memory_space<vmem>>) target_semaphore(%44 : memref<!tpu.dma_semaphore, #tpu.memory_space<semaphore_mem>>)
      %c7 = arith.constant 7 : index
      %45 = memref.load %arg1[%c7] : memref<8xi32, #tpu.memory_space<smem>>
      %c7_i32 = arith.constant 7 : i32
      %c0_i32_31 = arith.constant 0 : i32
      %46 = tpu.memref_slice %arg5[%45, %c0_i32_31] : memref<256x128xf32, #tpu.memory_space<any>> -> memref<1x128xf32, #tpu.memory_space<any>>
      %c7_i32_32 = arith.constant 7 : i32
      %c0_i32_33 = arith.constant 0 : i32
      %47 = tpu.memref_slice %arg19[%c7_i32_32, %c0_i32_33] : memref<8x128xf32, #tpu.memory_space<vmem>> -> memref<1x128xf32, #tpu.memory_space<vmem>>
      %48 = tpu.memref_slice %arg21[%c7_i32] : memref<8x!tpu.dma_semaphore, #tpu.memory_space<semaphore_mem>> -> memref<1x!tpu.dma_semaphore, #tpu.memory_space<semaphore_mem>>
      %49 = tpu.memref_squeeze %48 : memref<1x!tpu.dma_semaphore, #tpu.memory_space<semaphore_mem>> -> memref<!tpu.dma_semaphore, #tpu.memory_space<semaphore_mem>>
      tpu.enqueue_dma source(%46 : memref<1x128xf32, #tpu.memory_space<any>>) target(%47 : memref<1x128xf32, #tpu.memory_space<vmem>>) target_semaphore(%49 : memref<!tpu.dma_semaphore, #tpu.memory_space<semaphore_mem>>)
      %c0_34 = arith.constant 0 : index
      %c0_35 = arith.constant 0 : index
      %50 = vector.load %arg2[%c0_34, %c0_35] : memref<8x128xf32, #tpu.memory_space<vmem>>, vector<8x128xf32>
      %51 = arith.truncf %50 : vector<8x128xf32> to vector<8x128xbf16>
      %c0_36 = arith.constant 0 : index
      %c0_37 = arith.constant 0 : index
      %c0_38 = arith.constant 0 : index
      %52 = vector.load %arg3[%c0_36, %c0_37, %c0_38] : memref<8x128x128xbf16, #tpu.memory_space<vmem>>, vector<8x128x128xbf16>
      %c0_39 = arith.constant 0 : index
      %c0_40 = arith.constant 0 : index
      %53 = vector.load %arg6[%c0_39, %c0_40] : memref<128x128xbf16, #tpu.memory_space<vmem>>, vector<128x128xbf16>
      %cst_41 = arith.constant dense<0.000000e+00> : vector<8x128xf32>
      %54 = tpu.matmul %51, %53, %cst_41 {dimension_numbers = #tpu.dot_dimension_numbers<[1], [0], [0], [1], [0, 0, 1, 1], [], []>} : vector<8x128xbf16>, vector<128x128xbf16>, vector<8x128xf32> -> vector<8x128xf32>
      %55 = vector.shape_cast %52 : vector<8x128x128xbf16> to vector<1024x128xbf16>
      %c0_42 = arith.constant 0 : index
      %c0_43 = arith.constant 0 : index
      %56 = vector.load %arg7[%c0_42, %c0_43] : memref<128x128xbf16, #tpu.memory_space<vmem>>, vector<128x128xbf16>
      %cst_44 = arith.constant dense<0.000000e+00> : vector<1024x128xf32>
      %57 = tpu.matmul %55, %56, %cst_44 {dimension_numbers = #tpu.dot_dimension_numbers<[1], [0], [0], [1], [0, 0, 1, 1], [], []>} : vector<1024x128xbf16>, vector<128x128xbf16>, vector<1024x128xf32> -> vector<1024x128xf32>
      %58 = vector.shape_cast %57 : vector<1024x128xf32> to vector<8x128x128xf32>
      %59 = vector.shape_cast %54 : vector<8x128xf32> to vector<8x1x128xf32>
      %60 = vector.broadcast %59 : vector<8x1x128xf32> to vector<8x128x128xf32>
      %61 = arith.addf %60, %58 : vector<8x128x128xf32>
      %c0_45 = arith.constant 0 : index
      %c0_46 = arith.constant 0 : index
      %62 = vector.load %arg8[%c0_45, %c0_46] : memref<1x128xf32, #tpu.memory_space<vmem>>, vector<1x128xf32>
      %63 = vector.shape_cast %62 : vector<1x128xf32> to vector<1x1x128xf32>
      %64 = vector.broadcast %63 : vector<1x1x128xf32> to vector<8x128x128xf32>
      %65 = arith.addf %61, %64 : vector<8x128x128xf32>
      %66 = arith.truncf %65 : vector<8x128x128xf32> to vector<8x128x128xbf16>
      %67 = math.tanh %66 : vector<8x128x128xbf16>
      %68 = arith.extf %67 : vector<8x128x128xbf16> to vector<8x128x128xf32>
      %c0_47 = arith.constant 0 : index
      %c0_48 = arith.constant 0 : index
      %69 = vector.load %arg9[%c0_47, %c0_48] : memref<1x128xf32, #tpu.memory_space<vmem>>, vector<1x128xf32>
      %70 = vector.shape_cast %69 : vector<1x128xf32> to vector<1x1x128xf32>
      %71 = vector.broadcast %70 : vector<1x1x128xf32> to vector<8x128x128xf32>
      %72 = arith.mulf %68, %71 : vector<8x128x128xf32>
      %cst_49 = arith.constant dense<0.000000e+00> : vector<8x128xf32>
      %73 = vector.multi_reduction <add>, %72, %cst_49 [2] : vector<8x128x128xf32> to vector<8x128xf32>
      %c0_50 = arith.constant 0 : index
      %c0_51 = arith.constant 0 : index
      %74 = vector.load %arg4[%c0_50, %c0_51] : memref<8x128xf32, #tpu.memory_space<vmem>>, vector<8x128xf32>
      %cst_52 = arith.constant 0.000000e+00 : f32
      %75 = vector.broadcast %cst_52 : f32 to vector<8x128xf32>
      %76 = arith.cmpf ogt, %74, %75 : vector<8x128xf32>
      %cst_53 = arith.constant -1.000000e+10 : f32
      %77 = vector.broadcast %cst_53 : f32 to vector<8x128xf32>
      %78 = arith.select %76, %73, %77 : vector<8x128xi1>, vector<8x128xf32>
      %cst_54 = arith.constant dense<0xFF800000> : vector<8xf32>
      %79 = vector.multi_reduction <maximumf>, %78, %cst_54 [1] : vector<8x128xf32> to vector<8xf32>
      %80 = vector.shape_cast %79 : vector<8xf32> to vector<8x1xf32>
      %81 = vector.broadcast %80 : vector<8x1xf32> to vector<8x128xf32>
      %82 = arith.subf %78, %81 : vector<8x128xf32>
      %83 = math.exp %82 : vector<8x128xf32>
      %cst_55 = arith.constant dense<0.000000e+00> : vector<8xf32>
      %84 = vector.multi_reduction <add>, %83, %cst_55 [1] : vector<8x128xf32> to vector<8xf32>
      %85 = vector.shape_cast %84 : vector<8xf32> to vector<8x1xf32>
      %86 = tpu.reciprocal %85 {approx = true} : vector<8x1xf32> -> vector<8x1xf32>
      %87 = vector.broadcast %86 : vector<8x1xf32> to vector<8x128xf32>
      %88 = arith.mulf %83, %87 : vector<8x128xf32>
      %89 = arith.truncf %88 : vector<8x128xf32> to vector<8x128xbf16>
      %90 = vector.shape_cast %89 : vector<8x128xbf16> to vector<8x1x128xbf16>
      %cst_56 = arith.constant dense<0.000000e+00> : vector<8x1x128xf32>
      %91 = tpu.matmul %90, %52, %cst_56 {dimension_numbers = #tpu.dot_dimension_numbers<[2], [1], [1], [2], [0, 0, 0, 1, 1, 2], [0], [0]>} : vector<8x1x128xbf16>, vector<8x128x128xbf16>, vector<8x1x128xf32> -> vector<8x1x128xf32>
      %92 = vector.shape_cast %91 : vector<8x1x128xf32> to vector<8x128xf32>
      %c0_i32_57 = arith.constant 0 : i32
      %c0_i32_58 = arith.constant 0 : i32
      %93 = tpu.memref_slice %arg5[%10, %c0_i32_58] : memref<256x128xf32, #tpu.memory_space<any>> -> memref<1x128xf32, #tpu.memory_space<any>>
      %c0_i32_59 = arith.constant 0 : i32
      %c0_i32_60 = arith.constant 0 : i32
      %94 = tpu.memref_slice %arg19[%c0_i32_59, %c0_i32_60] : memref<8x128xf32, #tpu.memory_space<vmem>> -> memref<1x128xf32, #tpu.memory_space<vmem>>
      %95 = tpu.memref_slice %arg21[%c0_i32_57] : memref<8x!tpu.dma_semaphore, #tpu.memory_space<semaphore_mem>> -> memref<1x!tpu.dma_semaphore, #tpu.memory_space<semaphore_mem>>
      %96 = tpu.memref_squeeze %95 : memref<1x!tpu.dma_semaphore, #tpu.memory_space<semaphore_mem>> -> memref<!tpu.dma_semaphore, #tpu.memory_space<semaphore_mem>>
      tpu.wait_dma2 semaphore(%96 : memref<!tpu.dma_semaphore, #tpu.memory_space<semaphore_mem>>) src(%93 : memref<1x128xf32, #tpu.memory_space<any>>) dst(%94 : memref<1x128xf32, #tpu.memory_space<vmem>>)
      %c1_i32_61 = arith.constant 1 : i32
      %c0_i32_62 = arith.constant 0 : i32
      %97 = tpu.memref_slice %arg5[%15, %c0_i32_62] : memref<256x128xf32, #tpu.memory_space<any>> -> memref<1x128xf32, #tpu.memory_space<any>>
      %c1_i32_63 = arith.constant 1 : i32
      %c0_i32_64 = arith.constant 0 : i32
      %98 = tpu.memref_slice %arg19[%c1_i32_63, %c0_i32_64] : memref<8x128xf32, #tpu.memory_space<vmem>> -> memref<1x128xf32, #tpu.memory_space<vmem>>
      %99 = tpu.memref_slice %arg21[%c1_i32_61] : memref<8x!tpu.dma_semaphore, #tpu.memory_space<semaphore_mem>> -> memref<1x!tpu.dma_semaphore, #tpu.memory_space<semaphore_mem>>
      %100 = tpu.memref_squeeze %99 : memref<1x!tpu.dma_semaphore, #tpu.memory_space<semaphore_mem>> -> memref<!tpu.dma_semaphore, #tpu.memory_space<semaphore_mem>>
      tpu.wait_dma2 semaphore(%100 : memref<!tpu.dma_semaphore, #tpu.memory_space<semaphore_mem>>) src(%97 : memref<1x128xf32, #tpu.memory_space<any>>) dst(%98 : memref<1x128xf32, #tpu.memory_space<vmem>>)
      %c2_i32_65 = arith.constant 2 : i32
      %c0_i32_66 = arith.constant 0 : i32
      %101 = tpu.memref_slice %arg5[%20, %c0_i32_66] : memref<256x128xf32, #tpu.memory_space<any>> -> memref<1x128xf32, #tpu.memory_space<any>>
      %c2_i32_67 = arith.constant 2 : i32
      %c0_i32_68 = arith.constant 0 : i32
      %102 = tpu.memref_slice %arg19[%c2_i32_67, %c0_i32_68] : memref<8x128xf32, #tpu.memory_space<vmem>> -> memref<1x128xf32, #tpu.memory_space<vmem>>
      %103 = tpu.memref_slice %arg21[%c2_i32_65] : memref<8x!tpu.dma_semaphore, #tpu.memory_space<semaphore_mem>> -> memref<1x!tpu.dma_semaphore, #tpu.memory_space<semaphore_mem>>
      %104 = tpu.memref_squeeze %103 : memref<1x!tpu.dma_semaphore, #tpu.memory_space<semaphore_mem>> -> memref<!tpu.dma_semaphore, #tpu.memory_space<semaphore_mem>>
      tpu.wait_dma2 semaphore(%104 : memref<!tpu.dma_semaphore, #tpu.memory_space<semaphore_mem>>) src(%101 : memref<1x128xf32, #tpu.memory_space<any>>) dst(%102 : memref<1x128xf32, #tpu.memory_space<vmem>>)
      %c3_i32_69 = arith.constant 3 : i32
      %c0_i32_70 = arith.constant 0 : i32
      %105 = tpu.memref_slice %arg5[%25, %c0_i32_70] : memref<256x128xf32, #tpu.memory_space<any>> -> memref<1x128xf32, #tpu.memory_space<any>>
      %c3_i32_71 = arith.constant 3 : i32
      %c0_i32_72 = arith.constant 0 : i32
      %106 = tpu.memref_slice %arg19[%c3_i32_71, %c0_i32_72] : memref<8x128xf32, #tpu.memory_space<vmem>> -> memref<1x128xf32, #tpu.memory_space<vmem>>
      %107 = tpu.memref_slice %arg21[%c3_i32_69] : memref<8x!tpu.dma_semaphore, #tpu.memory_space<semaphore_mem>> -> memref<1x!tpu.dma_semaphore, #tpu.memory_space<semaphore_mem>>
      %108 = tpu.memref_squeeze %107 : memref<1x!tpu.dma_semaphore, #tpu.memory_space<semaphore_mem>> -> memref<!tpu.dma_semaphore, #tpu.memory_space<semaphore_mem>>
      tpu.wait_dma2 semaphore(%108 : memref<!tpu.dma_semaphore, #tpu.memory_space<semaphore_mem>>) src(%105 : memref<1x128xf32, #tpu.memory_space<any>>) dst(%106 : memref<1x128xf32, #tpu.memory_space<vmem>>)
      %c4_i32_73 = arith.constant 4 : i32
      %c0_i32_74 = arith.constant 0 : i32
      %109 = tpu.memref_slice %arg5[%30, %c0_i32_74] : memref<256x128xf32, #tpu.memory_space<any>> -> memref<1x128xf32, #tpu.memory_space<any>>
      %c4_i32_75 = arith.constant 4 : i32
      %c0_i32_76 = arith.constant 0 : i32
      %110 = tpu.memref_slice %arg19[%c4_i32_75, %c0_i32_76] : memref<8x128xf32, #tpu.memory_space<vmem>> -> memref<1x128xf32, #tpu.memory_space<vmem>>
      %111 = tpu.memref_slice %arg21[%c4_i32_73] : memref<8x!tpu.dma_semaphore, #tpu.memory_space<semaphore_mem>> -> memref<1x!tpu.dma_semaphore, #tpu.memory_space<semaphore_mem>>
      %112 = tpu.memref_squeeze %111 : memref<1x!tpu.dma_semaphore, #tpu.memory_space<semaphore_mem>> -> memref<!tpu.dma_semaphore, #tpu.memory_space<semaphore_mem>>
      tpu.wait_dma2 semaphore(%112 : memref<!tpu.dma_semaphore, #tpu.memory_space<semaphore_mem>>) src(%109 : memref<1x128xf32, #tpu.memory_space<any>>) dst(%110 : memref<1x128xf32, #tpu.memory_space<vmem>>)
      %c5_i32_77 = arith.constant 5 : i32
      %c0_i32_78 = arith.constant 0 : i32
      %113 = tpu.memref_slice %arg5[%35, %c0_i32_78] : memref<256x128xf32, #tpu.memory_space<any>> -> memref<1x128xf32, #tpu.memory_space<any>>
      %c5_i32_79 = arith.constant 5 : i32
      %c0_i32_80 = arith.constant 0 : i32
      %114 = tpu.memref_slice %arg19[%c5_i32_79, %c0_i32_80] : memref<8x128xf32, #tpu.memory_space<vmem>> -> memref<1x128xf32, #tpu.memory_space<vmem>>
      %115 = tpu.memref_slice %arg21[%c5_i32_77] : memref<8x!tpu.dma_semaphore, #tpu.memory_space<semaphore_mem>> -> memref<1x!tpu.dma_semaphore, #tpu.memory_space<semaphore_mem>>
      %116 = tpu.memref_squeeze %115 : memref<1x!tpu.dma_semaphore, #tpu.memory_space<semaphore_mem>> -> memref<!tpu.dma_semaphore, #tpu.memory_space<semaphore_mem>>
      tpu.wait_dma2 semaphore(%116 : memref<!tpu.dma_semaphore, #tpu.memory_space<semaphore_mem>>) src(%113 : memref<1x128xf32, #tpu.memory_space<any>>) dst(%114 : memref<1x128xf32, #tpu.memory_space<vmem>>)
      %c6_i32_81 = arith.constant 6 : i32
      %c0_i32_82 = arith.constant 0 : i32
      %117 = tpu.memref_slice %arg5[%40, %c0_i32_82] : memref<256x128xf32, #tpu.memory_space<any>> -> memref<1x128xf32, #tpu.memory_space<any>>
      %c6_i32_83 = arith.constant 6 : i32
      %c0_i32_84 = arith.constant 0 : i32
      %118 = tpu.memref_slice %arg19[%c6_i32_83, %c0_i32_84] : memref<8x128xf32, #tpu.memory_space<vmem>> -> memref<1x128xf32, #tpu.memory_space<vmem>>
      %119 = tpu.memref_slice %arg21[%c6_i32_81] : memref<8x!tpu.dma_semaphore, #tpu.memory_space<semaphore_mem>> -> memref<1x!tpu.dma_semaphore, #tpu.memory_space<semaphore_mem>>
      %120 = tpu.memref_squeeze %119 : memref<1x!tpu.dma_semaphore, #tpu.memory_space<semaphore_mem>> -> memref<!tpu.dma_semaphore, #tpu.memory_space<semaphore_mem>>
      tpu.wait_dma2 semaphore(%120 : memref<!tpu.dma_semaphore, #tpu.memory_space<semaphore_mem>>) src(%117 : memref<1x128xf32, #tpu.memory_space<any>>) dst(%118 : memref<1x128xf32, #tpu.memory_space<vmem>>)
      %c7_i32_85 = arith.constant 7 : i32
      %c0_i32_86 = arith.constant 0 : i32
      %121 = tpu.memref_slice %arg5[%45, %c0_i32_86] : memref<256x128xf32, #tpu.memory_space<any>> -> memref<1x128xf32, #tpu.memory_space<any>>
      %c7_i32_87 = arith.constant 7 : i32
      %c0_i32_88 = arith.constant 0 : i32
      %122 = tpu.memref_slice %arg19[%c7_i32_87, %c0_i32_88] : memref<8x128xf32, #tpu.memory_space<vmem>> -> memref<1x128xf32, #tpu.memory_space<vmem>>
      %123 = tpu.memref_slice %arg21[%c7_i32_85] : memref<8x!tpu.dma_semaphore, #tpu.memory_space<semaphore_mem>> -> memref<1x!tpu.dma_semaphore, #tpu.memory_space<semaphore_mem>>
      %124 = tpu.memref_squeeze %123 : memref<1x!tpu.dma_semaphore, #tpu.memory_space<semaphore_mem>> -> memref<!tpu.dma_semaphore, #tpu.memory_space<semaphore_mem>>
      tpu.wait_dma2 semaphore(%124 : memref<!tpu.dma_semaphore, #tpu.memory_space<semaphore_mem>>) src(%121 : memref<1x128xf32, #tpu.memory_space<any>>) dst(%122 : memref<1x128xf32, #tpu.memory_space<vmem>>)
      %c0_89 = arith.constant 0 : index
      %c0_90 = arith.constant 0 : index
      %125 = vector.load %arg19[%c0_89, %c0_90] : memref<8x128xf32, #tpu.memory_space<vmem>>, vector<8x128xf32>
      %126 = arith.truncf %125 : vector<8x128xf32> to vector<8x128xbf16>
      %127 = arith.truncf %92 : vector<8x128xf32> to vector<8x128xbf16>
      %c0_91 = arith.constant 0 : index
      %c0_92 = arith.constant 0 : index
      %128 = vector.load %arg20[%c0_91, %c0_92] : memref<8x384xbf16, #tpu.memory_space<vmem>>, vector<8x128xbf16>
      tpu.vector_store %arg20[%c0_91, %c0_92], %127 {strides = array<i32>} : memref<8x384xbf16, #tpu.memory_space<vmem>>, vector<8x128xbf16>,
      %c0_93 = arith.constant 0 : index
      %c128 = arith.constant 128 : index
      %129 = vector.load %arg20[%c0_93, %c128] : memref<8x384xbf16, #tpu.memory_space<vmem>>, vector<8x128xbf16>
      tpu.vector_store %arg20[%c0_93, %c128], %126 {strides = array<i32>} : memref<8x384xbf16, #tpu.memory_space<vmem>>, vector<8x128xbf16>,
      %c0_94 = arith.constant 0 : index
      %c0_95 = arith.constant 0 : index
      %130 = vector.load %arg20[%c0_94, %c0_95] : memref<8x384xbf16, #tpu.memory_space<vmem>>, vector<8x256xbf16>
      %c0_96 = arith.constant 0 : index
      %c0_97 = arith.constant 0 : index
      %131 = vector.load %arg10[%c0_96, %c0_97] : memref<256x384xbf16, #tpu.memory_space<vmem>>, vector<256x384xbf16>
      %cst_98 = arith.constant dense<0.000000e+00> : vector<8x384xf32>
      %132 = tpu.matmul %130, %131, %cst_98 {dimension_numbers = #tpu.dot_dimension_numbers<[1], [0], [0], [1], [0, 0, 1, 1], [], []>} : vector<8x256xbf16>, vector<256x384xbf16>, vector<8x384xf32> -> vector<8x384xf32>
      %c0_99 = arith.constant 0 : index
      %c0_100 = arith.constant 0 : index
      %133 = vector.load %arg11[%c0_99, %c0_100] : memref<1x384xf32, #tpu.memory_space<vmem>>, vector<1x384xf32>
      %134 = vector.broadcast %133 : vector<1x384xf32> to vector<8x384xf32>
      %135 = arith.addf %132, %134 : vector<8x384xf32>
      %c0_101 = arith.constant 0 : index
      %c0_102 = arith.constant 0 : index
      %136 = vector.load %arg12[%c0_101, %c0_102] : memref<128x384xbf16, #tpu.memory_space<vmem>>, vector<128x384xbf16>
      %cst_103 = arith.constant dense<0.000000e+00> : vector<8x384xf32>
      %137 = tpu.matmul %51, %136, %cst_103 {dimension_numbers = #tpu.dot_dimension_numbers<[1], [0], [0], [1], [0, 0, 1, 1], [], []>} : vector<8x128xbf16>, vector<128x384xbf16>, vector<8x384xf32> -> vector<8x384xf32>
      %c0_104 = arith.constant 0 : index
      %c0_105 = arith.constant 0 : index
      %138 = vector.load %arg13[%c0_104, %c0_105] : memref<1x384xf32, #tpu.memory_space<vmem>>, vector<1x384xf32>
      %139 = vector.broadcast %138 : vector<1x384xf32> to vector<8x384xf32>
      %140 = arith.addf %137, %139 : vector<8x384xf32>
      %141 = vector.extract_strided_slice %135 {offsets = [0, 0], sizes = [8, 128], strides = [1, 1]} : vector<8x384xf32> to vector<8x128xf32>
      %142 = vector.extract_strided_slice %140 {offsets = [0, 0], sizes = [8, 128], strides = [1, 1]} : vector<8x384xf32> to vector<8x128xf32>
      %143 = arith.addf %141, %142 : vector<8x128xf32>
      %144 = arith.negf %143 : vector<8x128xf32>
      %145 = math.exp %144 : vector<8x128xf32>
      %cst_106 = arith.constant 1.000000e+00 : f32
      %146 = vector.broadcast %cst_106 : f32 to vector<8x128xf32>
      %147 = arith.addf %146, %145 : vector<8x128xf32>
      %148 = arith.divf %146, %147 : vector<8x128xf32>
      %149 = vector.extract_strided_slice %135 {offsets = [0, 128], sizes = [8, 128], strides = [1, 1]} : vector<8x384xf32> to vector<8x128xf32>
      %150 = vector.extract_strided_slice %140 {offsets = [0, 128], sizes = [8, 128], strides = [1, 1]} : vector<8x384xf32> to vector<8x128xf32>
      %151 = arith.addf %149, %150 : vector<8x128xf32>
      %152 = arith.negf %151 : vector<8x128xf32>
      %153 = math.exp %152 : vector<8x128xf32>
      %cst_107 = arith.constant 1.000000e+00 : f32
      %154 = vector.broadcast %cst_107 : f32 to vector<8x128xf32>
      %155 = arith.addf %154, %153 : vector<8x128xf32>
      %156 = arith.divf %154, %155 : vector<8x128xf32>
      %157 = vector.extract_strided_slice %135 {offsets = [0, 256], sizes = [8, 128], strides = [1, 1]} : vector<8x384xf32> to vector<8x128xf32>
      %158 = vector.extract_strided_slice %140 {offsets = [0, 256], sizes = [8, 128], strides = [1, 1]} : vector<8x384xf32> to vector<8x128xf32>
      %159 = arith.mulf %148, %158 : vector<8x128xf32>
      %160 = arith.addf %157, %159 : vector<8x128xf32>
      %161 = math.tanh %160 : vector<8x128xf32>
      %cst_108 = arith.constant 1.000000e+00 : f32
      %162 = vector.broadcast %cst_108 : f32 to vector<8x128xf32>
      %163 = arith.subf %162, %156 : vector<8x128xf32>
      %164 = arith.mulf %163, %161 : vector<8x128xf32>
      %165 = arith.mulf %156, %50 : vector<8x128xf32>
      %166 = arith.addf %164, %165 : vector<8x128xf32>
      %167 = arith.truncf %166 : vector<8x128xf32> to vector<8x128xbf16>
      %c0_109 = arith.constant 0 : index
      %c256 = arith.constant 256 : index
      %168 = vector.load %arg20[%c0_109, %c256] : memref<8x384xbf16, #tpu.memory_space<vmem>>, vector<8x128xbf16>
      tpu.vector_store %arg20[%c0_109, %c256], %167 {strides = array<i32>} : memref<8x384xbf16, #tpu.memory_space<vmem>>, vector<8x128xbf16>,
      %c0_110 = arith.constant 0 : index
      %c0_111 = arith.constant 0 : index
      %169 = vector.load %arg17[%c0_110, %c0_111] : memref<8x128xf32, #tpu.memory_space<vmem>>, vector<8x128xf32>
      tpu.vector_store %arg17[%c0_110, %c0_111], %166 {strides = array<i32>} : memref<8x128xf32, #tpu.memory_space<vmem>>, vector<8x128xf32>,
      %c0_112 = arith.constant 0 : index
      %c0_113 = arith.constant 0 : index
      %170 = vector.load %arg18[%c0_112, %c0_113] : memref<8x128xf32, #tpu.memory_space<vmem>>, vector<8x128xf32>
      tpu.vector_store %arg18[%c0_112, %c0_113], %88 {strides = array<i32>} : memref<8x128xf32, #tpu.memory_space<vmem>>, vector<8x128xf32>,
    } else {
    }
    %c0 = arith.constant 0 : index
    %c0_1 = arith.constant 0 : index
    %3 = vector.load %arg20[%c0, %c0_1] : memref<8x384xbf16, #tpu.memory_space<vmem>>, vector<8x384xbf16>
    %c0_2 = arith.constant 0 : index
    %c0_3 = arith.constant 0 : index
    %4 = vector.load %arg14[%c0_2, %c0_3] : memref<384x256xbf16, #tpu.memory_space<vmem>>, vector<384x256xbf16>
    %cst = arith.constant dense<0.000000e+00> : vector<8x256xf32>
    %5 = tpu.matmul %3, %4, %cst {dimension_numbers = #tpu.dot_dimension_numbers<[1], [0], [0], [1], [0, 0, 1, 1], [], []>} : vector<8x384xbf16>, vector<384x256xbf16>, vector<8x256xf32> -> vector<8x256xf32>
    %c0_4 = arith.constant 0 : index
    %c0_5 = arith.constant 0 : index
    %6 = vector.load %arg15[%c0_4, %c0_5] : memref<1x256xf32, #tpu.memory_space<vmem>>, vector<1x256xf32>
    %7 = vector.broadcast %6 : vector<1x256xf32> to vector<8x256xf32>
    %8 = arith.addf %5, %7 : vector<8x256xf32>
    %c0_6 = arith.constant 0 : index
    %c0_7 = arith.constant 0 : index
    %9 = vector.load %arg16[%c0_6, %c0_7] : memref<8x256xf32, #tpu.memory_space<vmem>>, vector<8x256xf32>
    tpu.vector_store %arg16[%c0_6, %c0_7], %8 {strides = array<i32>} : memref<8x256xf32, #tpu.memory_space<vmem>>, vector<8x256xf32>,
    return
  }
  func.func @transform_0(%arg0: i32, %arg1: memref<8xi32, #tpu.memory_space<smem>>) -> (i32, i32) {
    %c0_i32 = arith.constant 0 : i32
    %c0_i32_0 = arith.constant 0 : i32
    %c0_i32_1 = arith.constant 0 : i32
    return %c0_i32, %c0_i32_0 : i32, i32
  }
  func.func @transform_1(%arg0: i32, %arg1: memref<8xi32, #tpu.memory_space<smem>>) -> (i32, i32, i32) {
    %c0_i32 = arith.constant 0 : i32
    %c0_i32_0 = arith.constant 0 : i32
    %c0_i32_1 = arith.constant 0 : i32
    %c0_i32_2 = arith.constant 0 : i32
    return %c0_i32, %c0_i32_0, %c0_i32_1 : i32, i32, i32
  }
  func.func @transform_2(%arg0: i32, %arg1: memref<8xi32, #tpu.memory_space<smem>>) -> (i32, i32) {
    %c0_i32 = arith.constant 0 : i32
    %c0_i32_0 = arith.constant 0 : i32
    %c0_i32_1 = arith.constant 0 : i32
    return %c0_i32, %c0_i32_0 : i32, i32
  }
  func.func @transform_4(%arg0: i32, %arg1: memref<8xi32, #tpu.memory_space<smem>>) -> (i32, i32) {
    %c0_i32 = arith.constant 0 : i32
    %c0_i32_0 = arith.constant 0 : i32
    %c0_i32_1 = arith.constant 0 : i32
    return %c0_i32, %c0_i32_0 : i32, i32
  }
  func.func @transform_5(%arg0: i32, %arg1: memref<8xi32, #tpu.memory_space<smem>>) -> (i32, i32) {
    %c0_i32 = arith.constant 0 : i32
    %c0_i32_0 = arith.constant 0 : i32
    %c0_i32_1 = arith.constant 0 : i32
    return %c0_i32, %c0_i32_0 : i32, i32
  }
  func.func @transform_6(%arg0: i32, %arg1: memref<8xi32, #tpu.memory_space<smem>>) -> (i32, i32) {
    %c0_i32 = arith.constant 0 : i32
    %c0_i32_0 = arith.constant 0 : i32
    %c0_i32_1 = arith.constant 0 : i32
    return %c0_i32, %c0_i32_0 : i32, i32
  }
  func.func @transform_7(%arg0: i32, %arg1: memref<8xi32, #tpu.memory_space<smem>>) -> (i32, i32) {
    %c0_i32 = arith.constant 0 : i32
    %c0_i32_0 = arith.constant 0 : i32
    %c0_i32_1 = arith.constant 0 : i32
    return %c0_i32, %c0_i32_0 : i32, i32
  }
  func.func @transform_8(%arg0: i32, %arg1: memref<8xi32, #tpu.memory_space<smem>>) -> (i32, i32) {
    %c0_i32 = arith.constant 0 : i32
    %c0_i32_0 = arith.constant 0 : i32
    %c0_i32_1 = arith.constant 0 : i32
    return %c0_i32, %c0_i32_0 : i32, i32
  }
  func.func @transform_9(%arg0: i32, %arg1: memref<8xi32, #tpu.memory_space<smem>>) -> (i32, i32) {
    %c0_i32 = arith.constant 0 : i32
    %c0_i32_0 = arith.constant 0 : i32
    %c0_i32_1 = arith.constant 0 : i32
    return %c0_i32, %c0_i32_0 : i32, i32
  }
  func.func @transform_10(%arg0: i32, %arg1: memref<8xi32, #tpu.memory_space<smem>>) -> (i32, i32) {
    %c0_i32 = arith.constant 0 : i32
    %c0_i32_0 = arith.constant 0 : i32
    %c0_i32_1 = arith.constant 0 : i32
    return %c0_i32, %c0_i32_0 : i32, i32
  }
  func.func @transform_11(%arg0: i32, %arg1: memref<8xi32, #tpu.memory_space<smem>>) -> (i32, i32) {
    %c0_i32 = arith.constant 0 : i32
    %c0_i32_0 = arith.constant 0 : i32
    %c0_i32_1 = arith.constant 0 : i32
    return %c0_i32, %c0_i32_0 : i32, i32
  }
  func.func @transform_12(%arg0: i32, %arg1: memref<8xi32, #tpu.memory_space<smem>>) -> (i32, i32) {
    %c0_i32 = arith.constant 0 : i32
    %c0_i32_0 = arith.constant 0 : i32
    return %c0_i32, %arg0 : i32, i32
  }
  func.func @transform_13(%arg0: i32, %arg1: memref<8xi32, #tpu.memory_space<smem>>) -> (i32, i32) {
    %c0_i32 = arith.constant 0 : i32
    %c0_i32_0 = arith.constant 0 : i32
    return %c0_i32, %arg0 : i32, i32
  }
  func.func @transform_14(%arg0: i32, %arg1: memref<8xi32, #tpu.memory_space<smem>>) -> (i32, i32) {
    %c0_i32 = arith.constant 0 : i32
    %c0_i32_0 = arith.constant 0 : i32
    return %c0_i32, %arg0 : i32, i32
  }
  func.func @transform_15(%arg0: i32, %arg1: memref<8xi32, #tpu.memory_space<smem>>) -> (i32, i32) {
    %c0_i32 = arith.constant 0 : i32
    %c0_i32_0 = arith.constant 0 : i32
    %c0_i32_1 = arith.constant 0 : i32
    return %c0_i32, %c0_i32_0 : i32, i32
  }
  func.func @transform_16(%arg0: i32, %arg1: memref<8xi32, #tpu.memory_space<smem>>) -> (i32, i32) {
    %c0_i32 = arith.constant 0 : i32
    %c0_i32_0 = arith.constant 0 : i32
    %c0_i32_1 = arith.constant 0 : i32
    return %c0_i32, %c0_i32_0 : i32, i32
  }
}

</mosaic_0001>

<llo_original>
// kernel: tpu_custom_call.1
$region0: #{tpu_custom_call.1}
  #allocation0 [shape = 'u32[]', space=smem, size = 0x4, offset = 0x4, fixed_abs, tag = 'smem constant byte address 0x4 - core index']
  #allocation1 [shape = 'u32[144,128]{1,0:T(1,128)}', space=vmem, size = 0x12000, scoped, tag = 'internal scratch']
  #allocation2 [shape = 'f32[8,128]{1,0:T(8,128)}', space=vmem, size = 0x1000, scoped, tag = 'scratch operand']
  #allocation3 [shape = 'bf16[8,384]{1,0:T(8,128)(2,1)}', space=vmem, size = 0x1800, scoped, tag = 'scratch operand']
  #allocation4 [shape = 's32[8]{0}', space=sflag, size = 0x20, scoped, tag = 'scratch operand']
  #allocation5 [shape = 's32[1]{0}', space=sflag, size = 0x4, scoped, tag = 'scoped memory for tpu_custom_call.1']
  #allocation6 [shape = 'u8[512]{0}', space=smem, size = 0x200, scoped, tag = 'prefetched SMEM operand 0']
  #allocation23 [shape = 's32[]', space=sflag, size = 0x4, offset = 0, fixed_abs, tag = 'sflag constant byte address 0x0 - dummy sync flag']
  #allocation24 [shape = 's32[]', space=sflag, size = 0x4, offset = 0, fixed_abs, tag = 'sflag constant byte address 0x0 - dummy sync flag']
  #allocation25 [shape = 'u32[]', space=smem, size = 0x4, offset = 0x44, fixed_abs, tag = 'smem constant byte address 0x44 - assertion arg 0']
  #allocation26 [shape = 'u32[]', space=smem, size = 0x4, offset = 0x48, fixed_abs, tag = 'smem constant byte address 0x48 - assertion arg 1']
  #allocation27 [shape = 's32[]', space=sflag, size = 0x4, offset = 0, fixed_abs, tag = 'sflag constant byte address 0x0 - dummy sync flag']
  #allocation28 [shape = 's32[]', space=sflag, size = 0x4, offset = 0, fixed_abs, tag = 'sflag constant byte address 0x0 - dummy sync flag']
  #allocation29 [shape = 's32[]', space=sflag, size = 0x4, offset = 0, fixed_abs, tag = 'sflag constant byte address 0x0 - dummy sync flag']
  #allocation30 [shape = 's32[]', space=sflag, size = 0x4, offset = 0, fixed_abs, tag = 'sflag constant byte address 0x0 - dummy sync flag']
  #allocation31 [shape = 's32[]', space=sflag, size = 0x4, offset = 0, fixed_abs, tag = 'sflag constant byte address 0x0 - dummy sync flag']
  #allocation32 [shape = 's32[]', space=sflag, size = 0x4, offset = 0, fixed_abs, tag = 'sflag constant byte address 0x0 - dummy sync flag']
  #allocation33 [shape = 's32[]', space=sflag, size = 0x4, offset = 0, fixed_abs, tag = 'sflag constant byte address 0x0 - dummy sync flag']
  #allocation34 [shape = 's32[]', space=sflag, size = 0x4, offset = 0, fixed_abs, tag = 'sflag constant byte address 0x0 - dummy sync flag']
  #allocation35 [shape = 's32[]', space=sflag, size = 0x4, offset = 0, fixed_abs, tag = 'sflag constant byte address 0x0 - dummy sync flag']
  #allocation36 [shape = 's32[]', space=sflag, size = 0x4, offset = 0, fixed_abs, tag = 'sflag constant byte address 0x0 - dummy sync flag']
  #allocation37 [shape = 's32[]', space=sflag, size = 0x4, offset = 0, fixed_abs, tag = 'sflag constant byte address 0x0 - dummy sync flag']
  #allocation38 [shape = 's32[]', space=sflag, size = 0x4, offset = 0, fixed_abs, tag = 'sflag constant byte address 0x0 - dummy sync flag']
  #allocation39 [shape = 's32[]', space=sflag, size = 0x4, offset = 0, fixed_abs, tag = 'sflag constant byte address 0x0 - dummy sync flag']
  #allocation40 [shape = 's32[]', space=sflag, size = 0x4, offset = 0, fixed_abs, tag = 'sflag constant byte address 0x0 - dummy sync flag']
  %s0 = inlined_call_operand.hbm [shape: s32[8], index: 0, kind: input, shape index: {}]
  %s1 = inlined_call_operand.hbm [shape: f32[8,128], index: 1, kind: input, shape index: {}]
  %s2 = inlined_call_operand.hbm [shape: bf16[8,128,128], index: 2, kind: input, shape index: {}]
  %s3 = inlined_call_operand.vmem [shape: f32[8,128], index: 3, kind: input, shape index: {}]
  %s4 = inlined_call_operand.hbm [shape: f32[256,128], index: 4, kind: input, shape index: {}]
  %s5 = inlined_call_operand.hbm [shape: bf16[128,128], index: 5, kind: input, shape index: {}]
  %s6 = inlined_call_operand.hbm [shape: bf16[128,128], index: 6, kind: input, shape index: {}]
  %s7 = inlined_call_operand.vmem [shape: f32[1,128], index: 7, kind: input, shape index: {}]
  %s8 = inlined_call_operand.vmem [shape: f32[1,128], index: 8, kind: input, shape index: {}]
  %s9 = inlined_call_operand.hbm [shape: bf16[256,384], index: 9, kind: input, shape index: {}]
  %s10 = inlined_call_operand.vmem [shape: f32[1,384], index: 10, kind: input, shape index: {}]
  %s11 = inlined_call_operand.hbm [shape: bf16[128,384], index: 11, kind: input, shape index: {}]
  %s12 = inlined_call_operand.vmem [shape: f32[1,384], index: 12, kind: input, shape index: {}]
  %s13 = inlined_call_operand.hbm [shape: bf16[384,256], index: 13, kind: input, shape index: {}]
  %s14 = inlined_call_operand.vmem [shape: f32[1,256], index: 14, kind: input, shape index: {}]
  %s15 = inlined_call_operand.hbm [shape: f32[8,256], index: 15, kind: output, shape index: {0}]
  %s16 = inlined_call_operand.hbm [shape: f32[8,128], index: 16, kind: output, shape index: {1}]
  %s17 = inlined_call_operand.hbm [shape: f32[8,128], index: 17, kind: output, shape index: {2}]
  %18 = xla_tuple %s15, %s16, %s17
  %s19 = sld [smem:[#allocation0]]
  $region142: #{tpu_custom_call.1} parent=0
    _
  %s21 = ssub.s32 1, %s19
  %s22 = scalar_select 0, %s21, %s19
  %24 = dma.hbm_to_smem %s0, 16, [#allocation6], [#allocation5]
  %25 = dma.done [#allocation5], 16
  %26 = sfence
  $region1: #{tpu_custom_call.1} parent=0
    #allocation7 [shape = 'u8[4096]{0}', space=vmem, size = 0x1000, scoped, tag = 'input window, operand 1, single buffered']
    #allocation8 [shape = 's32[1]{0}', space=sflag, size = 0x4, scoped, tag = 'scoped memory for tpu_custom_call.1']
    #allocation9 [shape = 's32[1]{0}', space=sflag, size = 0x4, scoped, tag = 'scoped memory for tpu_custom_call.1']
    #allocation10 [shape = 'u8[262144]{0}', space=vmem, size = 0x40000, scoped, tag = 'input window, operand 2, single buffered']
    #allocation11 [shape = 's32[1]{0}', space=sflag, size = 0x4, scoped, tag = 'scoped memory for tpu_custom_call.1']
    #allocation12 [shape = 'u8[32768]{0}', space=vmem, size = 0x8000, scoped, tag = 'input window, operand 5, single buffered']
    #allocation13 [shape = 'u8[32768]{0}', space=vmem, size = 0x8000, scoped, tag = 'input window, operand 6, single buffered']
    #allocation14 [shape = 's32[1]{0}', space=sflag, size = 0x4, scoped, tag = 'scoped memory for tpu_custom_call.1']
    #allocation15 [shape = 'u8[196608]{0}', space=vmem, size = 0x30000, scoped, tag = 'input window, operand 9, single buffered']
    #allocation16 [shape = 'u8[98304]{0}', space=vmem, size = 0x18000, scoped, tag = 'input window, operand 11, single buffered']
    #allocation17 [shape = 's32[1]{0}', space=sflag, size = 0x4, scoped, tag = 'scoped memory for tpu_custom_call.1']
    #allocation18 [shape = 'u8[196608]{0}', space=vmem, size = 0x30000, scoped, tag = 'input window, operand 13, single buffered']
    #allocation19 [shape = 'u8[8192]{0}', space=vmem, size = 0x2000, scoped, tag = 'output window, operand 0, single buffered']
    #allocation20 [shape = 'u8[4096]{0}', space=vmem, size = 0x1000, scoped, tag = 'output window, operand 1, single buffered']
    #allocation21 [shape = 's32[1]{0}', space=sflag, size = 0x4, scoped, tag = 'scoped memory for tpu_custom_call.1']
    #allocation22 [shape = 'u8[4096]{0}', space=vmem, size = 0x1000, scoped, tag = 'output window, operand 2, single buffered']
    %27 = vsyncpa [#allocation8], 0
    %28 = vsyncpa [#allocation11], 0
    %29 = vsyncpa [#allocation14], 0
    %30 = vsyncpa [#allocation17], 0
    %31 = vsyncpa [#allocation9], 0
    %32 = vsyncpa [#allocation21], 0
    // Predicated region
    $region2: #{tpu_custom_call.1} parent=1 // pred_check
      _
    $region3: #{tpu_custom_call.1} parent=1 // pred_check_branch
      %34 = sbr.rel (0) target = $region5
    $region4: #{tpu_custom_call.1} parent=1 // pred_region
      %s36 = ssub.s32 128, 128
      %37 = vsyncadd [#allocation8], %s36
      %s39 = sshll.u32 [#allocation7], 4
      %s40 = int_to_ptr.vmem [resolvable:$true] %s39
      %42 = dma.hbm_to_vmem [thread:$0]  %s1, 128, %s40, [#allocation8]
    $region5: #{tpu_custom_call.1} parent=1 // pred_fallthru
      _
    // Predicated region
    $region6: #{tpu_custom_call.1} parent=1 // pred_check
      _
    $region7: #{tpu_custom_call.1} parent=1 // pred_check_branch
      %44 = sbr.rel (0) target = $region9
    $region8: #{tpu_custom_call.1} parent=1 // pred_region
      %s46 = ssub.s32 8192, 8192
      %47 = vsyncadd [#allocation11], %s46
      %s48 = sshll.u32 [#allocation10], 4
      %s49 = int_to_ptr.vmem [resolvable:$true] %s48
      %54 = dma.hbm_to_vmem [thread:$0]  %s2, 8192, %s49, [#allocation11], 64, 64, 4
    $region9: #{tpu_custom_call.1} parent=1 // pred_fallthru
      _
    // Predicated region
    $region10: #{tpu_custom_call.1} parent=1 // pred_check
      _
    $region11: #{tpu_custom_call.1} parent=1 // pred_check_branch
      %56 = sbr.rel (0) target = $region13
    $region12: #{tpu_custom_call.1} parent=1 // pred_region
      _
    $region13: #{tpu_custom_call.1} parent=1 // pred_fallthru
      _
    // Predicated region
    $region14: #{tpu_custom_call.1} parent=1 // pred_check
      _
    $region15: #{tpu_custom_call.1} parent=1 // pred_check_branch
      %58 = sbr.rel (0) target = $region17
    $region16: #{tpu_custom_call.1} parent=1 // pred_region
      %s60 = ssub.s32 1024, 1024
      %61 = vsyncadd [#allocation11], %s60
      %s62 = sshll.u32 [#allocation12], 4
      %s63 = int_to_ptr.vmem [resolvable:$true] %s62
      %68 = dma.hbm_to_vmem [thread:$0]  %s5, 1024, %s63, [#allocation11], 64, 64, 4
    $region17: #{tpu_custom_call.1} parent=1 // pred_fallthru
      _
    // Predicated region
    $region18: #{tpu_custom_call.1} parent=1 // pred_check
      _
    $region19: #{tpu_custom_call.1} parent=1 // pred_check_branch
      %70 = sbr.rel (0) target = $region21
    $region20: #{tpu_custom_call.1} parent=1 // pred_region
      %s72 = ssub.s32 1024, 1024
      %73 = vsyncadd [#allocation14], %s72
      %s74 = sshll.u32 [#allocation13], 4
      %s75 = int_to_ptr.vmem [resolvable:$true] %s74
      %80 = dma.hbm_to_vmem [thread:$0]  %s6, 1024, %s75, [#allocation14], 64, 64, 4
    $region21: #{tpu_custom_call.1} parent=1 // pred_fallthru
      _
    // Predicated region
    $region22: #{tpu_custom_call.1} parent=1 // pred_check
      _
    $region23: #{tpu_custom_call.1} parent=1 // pred_check_branch
      %82 = sbr.rel (0) target = $region25
    $region24: #{tpu_custom_call.1} parent=1 // pred_region
      _
    $region25: #{tpu_custom_call.1} parent=1 // pred_fallthru
      _
    // Predicated region
    $region26: #{tpu_custom_call.1} parent=1 // pred_check
      _
    $region27: #{tpu_custom_call.1} parent=1 // pred_check_branch
      %84 = sbr.rel (0) target = $region29
    $region28: #{tpu_custom_call.1} parent=1 // pred_region
      _
    $region29: #{tpu_custom_call.1} parent=1 // pred_fallthru
      _
    // Predicated region
    $region30: #{tpu_custom_call.1} parent=1 // pred_check
      _
    $region31: #{tpu_custom_call.1} parent=1 // pred_check_branch
      %86 = sbr.rel (0) target = $region33
    $region32: #{tpu_custom_call.1} parent=1 // pred_region
      %s88 = ssub.s32 6144, 6144
      %89 = vsyncadd [#allocation14], %s88
      %s90 = sshll.u32 [#allocation15], 4
      %s91 = int_to_ptr.vmem [resolvable:$true] %s90
      %96 = dma.hbm_to_vmem [thread:$0]  %s9, 6144, %s91, [#allocation14], 192, 192, 12
    $region33: #{tpu_custom_call.1} parent=1 // pred_fallthru
      _
    // Predicated region
    $region34: #{tpu_custom_call.1} parent=1 // pred_check
      _
    $region35: #{tpu_custom_call.1} parent=1 // pred_check_branch
      %98 = sbr.rel (0) target = $region37
    $region36: #{tpu_custom_call.1} parent=1 // pred_region
      _
    $region37: #{tpu_custom_call.1} parent=1 // pred_fallthru
      _
    // Predicated region
    $region38: #{tpu_custom_call.1} parent=1 // pred_check
      _
    $region39: #{tpu_custom_call.1} parent=1 // pred_check_branch
      %100 = sbr.rel (0) target = $region41
    $region40: #{tpu_custom_call.1} parent=1 // pred_region
      %s102 = ssub.s32 3072, 3072
      %103 = vsyncadd [#allocation17], %s102
      %s104 = sshll.u32 [#allocation16], 4
      %s105 = int_to_ptr.vmem [resolvable:$true] %s104
      %110 = dma.hbm_to_vmem [thread:$0]  %s11, 3072, %s105, [#allocation17], 192, 192, 12
    $region41: #{tpu_custom_call.1} parent=1 // pred_fallthru
      _
    // Predicated region
    $region42: #{tpu_custom_call.1} parent=1 // pred_check
      _
    $region43: #{tpu_custom_call.1} parent=1 // pred_check_branch
      %112 = sbr.rel (0) target = $region45
    $region44: #{tpu_custom_call.1} parent=1 // pred_region
      _
    $region45: #{tpu_custom_call.1} parent=1 // pred_fallthru
      _
    // Predicated region
    $region46: #{tpu_custom_call.1} parent=1 // pred_check
      _
    $region47: #{tpu_custom_call.1} parent=1 // pred_check_branch
      %114 = sbr.rel (0) target = $region49
    $region48: #{tpu_custom_call.1} parent=1 // pred_region
      %s116 = ssub.s32 6144, 6144
      %117 = vsyncadd [#allocation17], %s116
      %s118 = sshll.u32 [#allocation18], 4
      %s119 = int_to_ptr.vmem [resolvable:$true] %s118
      %124 = dma.hbm_to_vmem [thread:$0]  %s13, 6144, %s119, [#allocation17], 128, 128, 8
    $region49: #{tpu_custom_call.1} parent=1 // pred_fallthru
      _
    // Predicated region
    $region50: #{tpu_custom_call.1} parent=1 // pred_check
      _
    $region51: #{tpu_custom_call.1} parent=1 // pred_check_branch
      %126 = sbr.rel (0) target = $region53
    $region52: #{tpu_custom_call.1} parent=1 // pred_region
      _
    $region53: #{tpu_custom_call.1} parent=1 // pred_fallthru
      _
    // Predicated region
    $region54: #{tpu_custom_call.1} parent=1 // pred_check
      _
    $region55: #{tpu_custom_call.1} parent=1 // pred_check_branch
      %128 = sbr.rel (0) target = $region57
    $region56: #{tpu_custom_call.1} parent=1 // pred_region
      %129 = dma.done [#allocation8], 128
    $region57: #{tpu_custom_call.1} parent=1 // pred_fallthru
      _
    // Predicated region
    $region58: #{tpu_custom_call.1} parent=1 // pred_check
      _
    $region59: #{tpu_custom_call.1} parent=1 // pred_check_branch
      %131 = sbr.rel (0) target = $region61
    $region60: #{tpu_custom_call.1} parent=1 // pred_region
      %132 = dma.done [#allocation11], 8192
    $region61: #{tpu_custom_call.1} parent=1 // pred_fallthru
      _
    // Predicated region
    $region62: #{tpu_custom_call.1} parent=1 // pred_check
      _
    $region63: #{tpu_custom_call.1} parent=1 // pred_check_branch
      %134 = sbr.rel (0) target = $region65
    $region64: #{tpu_custom_call.1} parent=1 // pred_region
      %135 = dma.done [#allocation11], 1024
    $region65: #{tpu_custom_call.1} parent=1 // pred_fallthru
      _
    // Predicated region
    $region66: #{tpu_custom_call.1} parent=1 // pred_check
      _
    $region67: #{tpu_custom_call.1} parent=1 // pred_check_branch
      %137 = sbr.rel (0) target = $region69
    $region68: #{tpu_custom_call.1} parent=1 // pred_region
      %138 = dma.done [#allocation14], 1024
    $region69: #{tpu_custom_call.1} parent=1 // pred_fallthru
      _
    // Predicated region
    $region70: #{tpu_custom_call.1} parent=1 // pred_check
      _
    $region71: #{tpu_custom_call.1} parent=1 // pred_check_branch
      %140 = sbr.rel (0) target = $region73
    $region72: #{tpu_custom_call.1} parent=1 // pred_region
      %141 = dma.done [#allocation14], 6144
    $region73: #{tpu_custom_call.1} parent=1 // pred_fallthru
      _
    // Predicated region
    $region74: #{tpu_custom_call.1} parent=1 // pred_check
      _
    $region75: #{tpu_custom_call.1} parent=1 // pred_check_branch
      %143 = sbr.rel (0) target = $region77
    $region76: #{tpu_custom_call.1} parent=1 // pred_region
      %144 = dma.done [#allocation17], 3072
    $region77: #{tpu_custom_call.1} parent=1 // pred_fallthru
      _
    // Predicated region
    $region78: #{tpu_custom_call.1} parent=1 // pred_check
      _
    $region79: #{tpu_custom_call.1} parent=1 // pred_check_branch
      %146 = sbr.rel (0) target = $region81
    $region80: #{tpu_custom_call.1} parent=1 // pred_region
      %147 = dma.done [#allocation17], 6144
    $region81: #{tpu_custom_call.1} parent=1 // pred_fallthru
      _
    %p149 = scmp.eq.s32.totalorder 0, 0
    // Predicated region
    $region82: #{tpu_custom_call.1} parent=1 // pred_check
      %p150 = pneg %p149
    $region83: #{tpu_custom_call.1} parent=1 // pred_check_branch
      %152 = sbr.rel (%p150) target = $region85
    $region84: #{tpu_custom_call.1} parent=1 // pred_region
      %s153 = sld [smem:[#allocation6]]
      %s154 = smul.addr %s153, 16
      %s155 = scalar_lea.hbm %s4, %s154
      // Predicated region
      $region86: #{tpu_custom_call.1} parent=84 // pred_check
        _
      $region87: #{tpu_custom_call.1} parent=84 // pred_check_branch
        %157 = sbr.rel target = $region89
      $region88: #{tpu_custom_call.1} parent=84 // pred_region
        %158 = sst [smem:[#allocation25]] [#allocation24]
        %159 = sst [smem:[#allocation26]] [#allocation23]
      $region89: #{tpu_custom_call.1} parent=84 // pred_fallthru
        _
      %161 = shalt.err (0)
      %s163 = sshll.u32 [#allocation2], 4
      %s164 = int_to_ptr.vmem [resolvable:$true] %s163
      %166 = dma.hbm_to_vmem [thread:$0]  %s155, 16, %s164, [#allocation4]
      %s167 = sld [smem:[#allocation6 + $0x1]]
      %s168 = smul.addr %s167, 16
      %s169 = scalar_lea.hbm %s4, %s168
      %s170 = scalar_lea.vmem [#allocation2], 1
      %s171 = scalar_lea.sflag [#allocation4], 1
      // Predicated region
      $region90: #{tpu_custom_call.1} parent=84 // pred_check
        _
      $region91: #{tpu_custom_call.1} parent=84 // pred_check_branch
        %173 = sbr.rel target = $region93
      $region92: #{tpu_custom_call.1} parent=84 // pred_region
        %174 = sst [smem:[#allocation25]] [#allocation28]
        %175 = sst [smem:[#allocation26]] [#allocation27]
      $region93: #{tpu_custom_call.1} parent=84 // pred_fallthru
        _
      %177 = shalt.err (0)
      %s179 = sshll.u32 %s170, 4
      %s180 = int_to_ptr.vmem [resolvable:$true] %s179
      %182 = dma.hbm_to_vmem [thread:$0]  %s169, 16, %s180, %s171
      %s183 = sld [smem:[#allocation6 + $0x2]]
      %s184 = smul.addr %s183, 16
      %s185 = scalar_lea.hbm %s4, %s184
      %s186 = scalar_lea.vmem [#allocation2], 2
      %s187 = scalar_lea.sflag [#allocation4], 2
      // Predicated region
      $region94: #{tpu_custom_call.1} parent=84 // pred_check
        _
      $region95: #{tpu_custom_call.1} parent=84 // pred_check_branch
        %189 = sbr.rel target = $region97
      $region96: #{tpu_custom_call.1} parent=84 // pred_region
        %190 = sst [smem:[#allocation25]] [#allocation30]
        %191 = sst [smem:[#allocation26]] [#allocation29]
      $region97: #{tpu_custom_call.1} parent=84 // pred_fallthru
        _
      %193 = shalt.err (0)
      %s195 = sshll.u32 %s186, 4
      %s196 = int_to_ptr.vmem [resolvable:$true] %s195
      %198 = dma.hbm_to_vmem [thread:$0]  %s185, 16, %s196, %s187
      %s199 = sld [smem:[#allocation6 + $0x3]]
      %s200 = smul.addr %s199, 16
      %s201 = scalar_lea.hbm %s4, %s200
      %s202 = scalar_lea.vmem [#allocation2], 3
      %s203 = scalar_lea.sflag [#allocation4], 3
      // Predicated region
      $region98: #{tpu_custom_call.1} parent=84 // pred_check
        _
      $region99: #{tpu_custom_call.1} parent=84 // pred_check_branch
        %205 = sbr.rel target = $region101
      $region100: #{tpu_custom_call.1} parent=84 // pred_region
        %206 = sst [smem:[#allocation25]] [#allocation32]
        %207 = sst [smem:[#allocation26]] [#allocation31]
      $region101: #{tpu_custom_call.1} parent=84 // pred_fallthru
        _
      %209 = shalt.err (0)
      %s211 = sshll.u32 %s202, 4
      %s212 = int_to_ptr.vmem [resolvable:$true] %s211
      %214 = dma.hbm_to_vmem [thread:$0]  %s201, 16, %s212, %s203
      %s215 = sld [smem:[#allocation6 + $0x4]]
      %s216 = smul.addr %s215, 16
      %s217 = scalar_lea.hbm %s4, %s216
      %s218 = scalar_lea.vmem [#allocation2], 4
      %s219 = scalar_lea.sflag [#allocation4], 4
      // Predicated region
      $region102: #{tpu_custom_call.1} parent=84 // pred_check
        _
      $region103: #{tpu_custom_call.1} parent=84 // pred_check_branch
        %221 = sbr.rel target = $region105
      $region104: #{tpu_custom_call.1} parent=84 // pred_region
        %222 = sst [smem:[#allocation25]] [#allocation34]
        %223 = sst [smem:[#allocation26]] [#allocation33]
      $region105: #{tpu_custom_call.1} parent=84 // pred_fallthru
        _
      %225 = shalt.err (0)
      %s227 = sshll.u32 %s218, 4
      %s228 = int_to_ptr.vmem [resolvable:$true] %s227
      %230 = dma.hbm_to_vmem [thread:$0]  %s217, 16, %s228, %s219
      %s231 = sld [smem:[#allocation6 + $0x5]]
      %s232 = smul.addr %s231, 16
      %s233 = scalar_lea.hbm %s4, %s232
      %s234 = scalar_lea.vmem [#allocation2], 5
      %s235 = scalar_lea.sflag [#allocation4], 5
      // Predicated region
      $region106: #{tpu_custom_call.1} parent=84 // pred_check
        _
      $region107: #{tpu_custom_call.1} parent=84 // pred_check_branch
        %237 = sbr.rel target = $region109
      $region108: #{tpu_custom_call.1} parent=84 // pred_region
        %238 = sst [smem:[#allocation25]] [#allocation36]
        %239 = sst [smem:[#allocation26]] [#allocation35]
      $region109: #{tpu_custom_call.1} parent=84 // pred_fallthru
        _
      %241 = shalt.err (0)
      %s243 = sshll.u32 %s234, 4
      %s244 = int_to_ptr.vmem [resolvable:$true] %s243
      %246 = dma.hbm_to_vmem [thread:$0]  %s233, 16, %s244, %s235
      %s247 = sld [smem:[#allocation6 + $0x6]]
      %s248 = smul.addr %s247, 16
      %s249 = scalar_lea.hbm %s4, %s248
      %s250 = scalar_lea.vmem [#allocation2], 6
      %s251 = scalar_lea.sflag [#allocation4], 6
      // Predicated region
      $region110: #{tpu_custom_call.1} parent=84 // pred_check
        _
      $region111: #{tpu_custom_call.1} parent=84 // pred_check_branch
        %253 = sbr.rel target = $region113
      $region112: #{tpu_custom_call.1} parent=84 // pred_region
        %254 = sst [smem:[#allocation25]] [#allocation38]
        %255 = sst [smem:[#allocation26]] [#allocation37]
      $region113: #{tpu_custom_call.1} parent=84 // pred_fallthru
        _
      %257 = shalt.err (0)
      %s259 = sshll.u32 %s250, 4
      %s260 = int_to_ptr.vmem [resolvable:$true] %s259
      %262 = dma.hbm_to_vmem [thread:$0]  %s249, 16, %s260, %s251
      %s263 = sld [smem:[#allocation6 + $0x7]]
      %s264 = smul.addr %s263, 16
      %s265 = scalar_lea.hbm %s4, %s264
      %s266 = scalar_lea.vmem [#allocation2], 7
      %s267 = scalar_lea.sflag [#allocation4], 7
      // Predicated region
      $region114: #{tpu_custom_call.1} parent=84 // pred_check
        _
      $region115: #{tpu_custom_call.1} parent=84 // pred_check_branch
        %269 = sbr.rel target = $region117
      $region116: #{tpu_custom_call.1} parent=84 // pred_region
        %270 = sst [smem:[#allocation25]] [#allocation40]
        %271 = sst [smem:[#allocation26]] [#allocation39]
      $region117: #{tpu_custom_call.1} parent=84 // pred_fallthru
        _
      %273 = shalt.err (0)
      %s275 = sshll.u32 %s266, 4
      %s276 = int_to_ptr.vmem [resolvable:$true] %s275
      %278 = dma.hbm_to_vmem [thread:$0]  %s265, 16, %s276, %s267
      %v279 = vld [vmem:[#allocation7] sm:$0xff]
      %v280 = vpack.c.bf16 %v279, %v279
      %v281 = vld [vmem:[#allocation10] sm:$0xf]
      %v282 = vld [vmem:[#allocation10 + $0x4] sm:$0xf]
      %v283 = vld [vmem:[#allocation10 + $0x8] sm:$0xf]
      %v284 = vld [vmem:[#allocation10 + $0xc] sm:$0xf]
      %v285 = vld [vmem:[#allocation10 + $0x10] sm:$0xf]
      %v286 = vld [vmem:[#allocation10 + $0x14] sm:$0xf]
      %v287 = vld [vmem:[#allocation10 + $0x18] sm:$0xf]
      %v288 = vld [vmem:[#allocation10 + $0x1c] sm:$0xf]
      %v289 = vld [vmem:[#allocation10 + $0x20] sm:$0xf]
      %v290 = vld [vmem:[#allocation10 + $0x24] sm:$0xf]
      %v291 = vld [vmem:[#allocation10 + $0x28] sm:$0xf]
      %v292 = vld [vmem:[#allocation10 + $0x2c] sm:$0xf]
      %v293 = vld [vmem:[#allocation10 + $0x30] sm:$0xf]
      %v294 = vld [vmem:[#allocation10 + $0x34] sm:$0xf]
      %v295 = vld [vmem:[#allocation10 + $0x38] sm:$0xf]
      %v296 = vld [vmem:[#allocation10 + $0x3c] sm:$0xf]
      %v297 = vld [vmem:[#allocation10 + $0x40] sm:$0xf]
      %v298 = vld [vmem:[#allocation10 + $0x44] sm:$0xf]
      %v299 = vld [vmem:[#allocation10 + $0x48] sm:$0xf]
      %v300 = vld [vmem:[#allocation10 + $0x4c] sm:$0xf]
      %v301 = vld [vmem:[#allocation10 + $0x50] sm:$0xf]
      %v302 = vld [vmem:[#allocation10 + $0x54] sm:$0xf]
      %v303 = vld [vmem:[#allocation10 + $0x58] sm:$0xf]
      %v304 = vld [vmem:[#allocation10 + $0x5c] sm:$0xf]
      %v305 = vld [vmem:[#allocation10 + $0x60] sm:$0xf]
      %v306 = vld [vmem:[#allocation10 + $0x64] sm:$0xf]
      %v307 = vld [vmem:[#allocation10 + $0x68] sm:$0xf]
      %v308 = vld [vmem:[#allocation10 + $0x6c] sm:$0xf]
      %v309 = vld [vmem:[#allocation10 + $0x70] sm:$0xf]
      %v310 = vld [vmem:[#allocation10 + $0x74] sm:$0xf]
      %v311 = vld [vmem:[#allocation10 + $0x78] sm:$0xf]
      %v312 = vld [vmem:[#allocation10 + $0x7c] sm:$0xf]
      %v313 = vld [vmem:[#allocation10 + $0x80] sm:$0xf]
      %v314 = vld [vmem:[#allocation10 + $0x84] sm:$0xf]
      %v315 = vld [vmem:[#allocation10 + $0x88] sm:$0xf]
      %v316 = vld [vmem:[#allocation10 + $0x8c] sm:$0xf]
      %v317 = vld [vmem:[#allocation10 + $0x90] sm:$0xf]
      %v318 = vld [vmem:[#allocation10 + $0x94] sm:$0xf]
      %v319 = vld [vmem:[#allocation10 + $0x98] sm:$0xf]
      %v320 = vld [vmem:[#allocation10 + $0x9c] sm:$0xf]
      %v321 = vld [vmem:[#allocation10 + $0xa0] sm:$0xf]
      %v322 = vld [vmem:[#allocation10 + $0xa4] sm:$0xf]
      %v323 = vld [vmem:[#allocation10 + $0xa8] sm:$0xf]
      %v324 = vld [vmem:[#allocation10 + $0xac] sm:$0xf]
      %v325 = vld [vmem:[#allocation10 + $0xb0] sm:$0xf]
      %v326 = vld [vmem:[#allocation10 + $0xb4] sm:$0xf]
      %v327 = vld [vmem:[#allocation10 + $0xb8] sm:$0xf]
      %v328 = vld [vmem:[#allocation10 + $0xbc] sm:$0xf]
      %v329 = vld [vmem:[#allocation10 + $0xc0] sm:$0xf]
      %v330 = vld [vmem:[#allocation10 + $0xc4] sm:$0xf]
      %v331 = vld [vmem:[#allocation10 + $0xc8] sm:$0xf]
      %v332 = vld [vmem:[#allocation10 + $0xcc] sm:$0xf]
      %v333 = vld [vmem:[#allocation10 + $0xd0] sm:$0xf]
      %v334 = vld [vmem:[#allocation10 + $0xd4] sm:$0xf]
      %v335 = vld [vmem:[#allocation10 + $0xd8] sm:$0xf]
      %v336 = vld [vmem:[#allocation10 + $0xdc] sm:$0xf]
      %v337 = vld [vmem:[#allocation10 + $0xe0] sm:$0xf]
      %v338 = vld [vmem:[#allocation10 + $0xe4] sm:$0xf]
      %v339 = vld [vmem:[#allocation10 + $0xe8] sm:$0xf]
      %v340 = vld [vmem:[#allocation10 + $0xec] sm:$0xf]
      %v341 = vld [vmem:[#allocation10 + $0xf0] sm:$0xf]
      %v342 = vld [vmem:[#allocation10 + $0xf4] sm:$0xf]
      %v343 = vld [vmem:[#allocation10 + $0xf8] sm:$0xf]
      %v344 = vld [vmem:[#allocation10 + $0xfc] sm:$0xf]
      %v345 = vld [vmem:[#allocation10 + $0x100] sm:$0xf]
      %v346 = vld [vmem:[#allocation10 + $0x104] sm:$0xf]
      %v347 = vld [vmem:[#allocation10 + $0x108] sm:$0xf]
      %v348 = vld [vmem:[#allocation10 + $0x10c] sm:$0xf]
      %v349 = vld [vmem:[#allocation10 + $0x110] sm:$0xf]
      %v350 = vld [vmem:[#allocation10 + $0x114] sm:$0xf]
      %v351 = vld [vmem:[#allocation10 + $0x118] sm:$0xf]
      %v352 = vld [vmem:[#allocation10 + $0x11c] sm:$0xf]
      %v353 = vld [vmem:[#allocation10 + $0x120] sm:$0xf]
      %v354 = vld [vmem:[#allocation10 + $0x124] sm:$0xf]
      %v355 = vld [vmem:[#allocation10 + $0x128] sm:$0xf]
      %v356 = vld [vmem:[#allocation10 + $0x12c] sm:$0xf]
      %v357 = vld [vmem:[#allocation10 + $0x130] sm:$0xf]
      %v358 = vld [vmem:[#allocation10 + $0x134] sm:$0xf]
      %v359 = vld [vmem:[#allocation10 + $0x138] sm:$0xf]
      %v360 = vld [vmem:[#allocation10 + $0x13c] sm:$0xf]
      %v361 = vld [vmem:[#allocation10 + $0x140] sm:$0xf]
      %v362 = vld [vmem:[#allocation10 + $0x144] sm:$0xf]
      %v363 = vld [vmem:[#allocation10 + $0x148] sm:$0xf]
      %v364 = vld [vmem:[#allocation10 + $0x14c] sm:$0xf]
      %v365 = vld [vmem:[#allocation10 + $0x150] sm:$0xf]
      %v366 = vld [vmem:[#allocation10 + $0x154] sm:$0xf]
      %v367 = vld [vmem:[#allocation10 + $0x158] sm:$0xf]
      %v368 = vld [vmem:[#allocation10 + $0x15c] sm:$0xf]
      %v369 = vld [vmem:[#allocation10 + $0x160] sm:$0xf]
      %v370 = vld [vmem:[#allocation10 + $0x164] sm:$0xf]
      %v371 = vld [vmem:[#allocation10 + $0x168] sm:$0xf]
      %v372 = vld [vmem:[#allocation10 + $0x16c] sm:$0xf]
      %v373 = vld [vmem:[#allocation10 + $0x170] sm:$0xf]
      %v374 = vld [vmem:[#allocation10 + $0x174] sm:$0xf]
      %v375 = vld [vmem:[#allocation10 + $0x178] sm:$0xf]
      %v376 = vld [vmem:[#allocation10 + $0x17c] sm:$0xf]
      %v377 = vld [vmem:[#allocation10 + $0x180] sm:$0xf]
      %v378 = vld [vmem:[#allocation10 + $0x184] sm:$0xf]
      %v379 = vld [vmem:[#allocation10 + $0x188] sm:$0xf]
      %v380 = vld [vmem:[#allocation10 + $0x18c] sm:$0xf]
      %v381 = vld [vmem:[#allocation10 + $0x190] sm:$0xf]
      %v382 = vld [vmem:[#allocation10 + $0x194] sm:$0xf]
      %v383 = vld [vmem:[#allocation10 + $0x198] sm:$0xf]
      %v384 = vld [vmem:[#allocation10 + $0x19c] sm:$0xf]
      %v385 = vld [vmem:[#allocation10 + $0x1a0] sm:$0xf]
      %v386 = vld [vmem:[#allocation10 + $0x1a4] sm:$0xf]
      %v387 = vld [vmem:[#allocation10 + $0x1a8] sm:$0xf]
      %v388 = vld [vmem:[#allocation10 + $0x1ac] sm:$0xf]
      %v389 = vld [vmem:[#allocation10 + $0x1b0] sm:$0xf]
      %v390 = vld [vmem:[#allocation10 + $0x1b4] sm:$0xf]
      %v391 = vld [vmem:[#allocation10 + $0x1b8] sm:$0xf]
      %v392 = vld [vmem:[#allocation10 + $0x1bc] sm:$0xf]
      %v393 = vld [vmem:[#allocation10 + $0x1c0] sm:$0xf]
      %v394 = vld [vmem:[#allocation10 + $0x1c4] sm:$0xf]
      %v395 = vld [vmem:[#allocation10 + $0x1c8] sm:$0xf]
      %v396 = vld [vmem:[#allocation10 + $0x1cc] sm:$0xf]
      %v397 = vld [vmem:[#allocation10 + $0x1d0] sm:$0xf]
      %v398 = vld [vmem:[#allocation10 + $0x1d4] sm:$0xf]
      %v399 = vld [vmem:[#allocation10 + $0x1d8] sm:$0xf]
      %v400 = vld [vmem:[#allocation10 + $0x1dc] sm:$0xf]
      %v401 = vld [vmem:[#allocation10 + $0x1e0] sm:$0xf]
      %v402 = vld [vmem:[#allocation10 + $0x1e4] sm:$0xf]
      %v403 = vld [vmem:[#allocation10 + $0x1e8] sm:$0xf]
      %v404 = vld [vmem:[#allocation10 + $0x1ec] sm:$0xf]
      %v405 = vld [vmem:[#allocation10 + $0x1f0] sm:$0xf]
      %v406 = vld [vmem:[#allocation10 + $0x1f4] sm:$0xf]
      %v407 = vld [vmem:[#allocation10 + $0x1f8] sm:$0xf]
      %v408 = vld [vmem:[#allocation10 + $0x1fc] sm:$0xf]
      %v409 = vld [vmem:[#allocation12] sm:$0xf]
      %v410 = vld [vmem:[#allocation12 + $0x4] sm:$0xf]
      %v411 = vld [vmem:[#allocation12 + $0x8] sm:$0xf]
      %v412 = vld [vmem:[#allocation12 + $0xc] sm:$0xf]
      %v413 = vld [vmem:[#allocation12 + $0x10] sm:$0xf]
      %v414 = vld [vmem:[#allocation12 + $0x14] sm:$0xf]
      %v415 = vld [vmem:[#allocation12 + $0x18] sm:$0xf]
      %v416 = vld [vmem:[#allocation12 + $0x1c] sm:$0xf]
      %v417 = vld [vmem:[#allocation12 + $0x20] sm:$0xf]
      %v418 = vld [vmem:[#allocation12 + $0x24] sm:$0xf]
      %v419 = vld [vmem:[#allocation12 + $0x28] sm:$0xf]
      %v420 = vld [vmem:[#allocation12 + $0x2c] sm:$0xf]
      %v421 = vld [vmem:[#allocation12 + $0x30] sm:$0xf]
      %v422 = vld [vmem:[#allocation12 + $0x34] sm:$0xf]
      %v423 = vld [vmem:[#allocation12 + $0x38] sm:$0xf]
      %v424 = vld [vmem:[#allocation12 + $0x3c] sm:$0xf]
      %v441 = vunpack.c.l.b16 %v409
      %v442 = vunpack.c.l.b16 %v410
      %v443 = vunpack.c.l.b16 %v411
      %v444 = vunpack.c.l.b16 %v412
      %v445 = vunpack.c.l.b16 %v413
      %v446 = vunpack.c.l.b16 %v414
      %v447 = vunpack.c.l.b16 %v415
      %v448 = vunpack.c.l.b16 %v416
      %v449 = vunpack.c.l.b16 %v417
      %v450 = vunpack.c.l.b16 %v418
      %v451 = vunpack.c.l.b16 %v419
      %v452 = vunpack.c.l.b16 %v420
      %v453 = vunpack.c.l.b16 %v421
      %v454 = vunpack.c.l.b16 %v422
      %v455 = vunpack.c.l.b16 %v423
      %v456 = vunpack.c.l.b16 %v424
      %v457 = vpack.c.b16 %v442, %v441
      %v458 = vpack.c.b16 %v444, %v443
      %v459 = vpack.c.b16 %v446, %v445
      %v460 = vpack.c.b16 %v448, %v447
      %v461 = vpack.c.b16 %v450, %v449
      %v462 = vpack.c.b16 %v452, %v451
      %v463 = vpack.c.b16 %v454, %v453
      %v464 = vpack.c.b16 %v456, %v455
      %473 = vmatprep.subr.bf16.mxu0 0
      %474 = vmatpush1.bf16.msra.mxu0 %v457
      %475 = vmatprep.subr.bf16.mxu0 0
      %476 = vmatpush1.bf16.msra.mxu0 %v458
      %477 = vmatprep.subr.bf16.mxu0 0
      %478 = vmatpush1.bf16.msra.mxu0 %v459
      %479 = vmatprep.subr.bf16.mxu0 0
      %480 = vmatpush1.bf16.msra.mxu0 %v460
      %481 = vmatprep.subr.bf16.mxu0 0
      %482 = vmatpush1.bf16.msra.mxu0 %v461
      %483 = vmatprep.subr.bf16.mxu0 0
      %484 = vmatpush1.bf16.msra.mxu0 %v462
      %485 = vmatprep.subr.bf16.mxu0 0
      %486 = vmatpush1.bf16.msra.mxu0 %v463
      %487 = vmatprep.subr.bf16.mxu0 0
      %488 = vmatpush1.bf16.msra.mxu0 %v464
      %489 = vmatprep.subr.bf16.mxu0 0
      %490 = vmatpush1.bf16.msra.mxu0 0
      %491 = vmatprep.subr.bf16.mxu0 0
      %492 = vmatpush1.bf16.msra.mxu0 0
      %493 = vmatprep.subr.bf16.mxu0 0
      %494 = vmatpush1.bf16.msra.mxu0 0
      %495 = vmatprep.subr.bf16.mxu0 0
      %496 = vmatpush1.bf16.msra.mxu0 0
      %497 = vmatprep.subr.bf16.mxu0 0
      %498 = vmatpush1.bf16.msra.mxu0 0
      %499 = vmatprep.subr.bf16.mxu0 0
      %500 = vmatpush1.bf16.msra.mxu0 0
      %501 = vmatprep.subr.bf16.mxu0 0
      %502 = vmatpush1.bf16.msra.mxu0 0
      %503 = vmatprep.subr.bf16.mxu0 0
      %504 = vmatpush1.bf16.msra.mxu0 0
      %505 = vmatprep.mubr.bf16.mxu0 0
      %506 = vmatmul.mubr.bf16.gmra.mrb[0].mxu0 %v280
      %v507 = vpop.f32.mrb[0].mxu0
      %v508 = vadd.f32 0.0, %v507
      %v509 = vpop.f32.mrb[0].mxu0
      %v510 = vpop.f32.mrb[0].mxu0
      %v511 = vpop.f32.mrb[0].mxu0
      %512 = vdwg.mxu0
      %v513 = vld [vmem:[#allocation13] sm:$0xf]
      %v514 = vld [vmem:[#allocation13 + $0x4] sm:$0xf]
      %v515 = vld [vmem:[#allocation13 + $0x8] sm:$0xf]
      %v516 = vld [vmem:[#allocation13 + $0xc] sm:$0xf]
      %v517 = vld [vmem:[#allocation13 + $0x10] sm:$0xf]
      %v518 = vld [vmem:[#allocation13 + $0x14] sm:$0xf]
      %v519 = vld [vmem:[#allocation13 + $0x18] sm:$0xf]
      %v520 = vld [vmem:[#allocation13 + $0x1c] sm:$0xf]
      %v521 = vld [vmem:[#allocation13 + $0x20] sm:$0xf]
      %v522 = vld [vmem:[#allocation13 + $0x24] sm:$0xf]
      %v523 = vld [vmem:[#allocation13 + $0x28] sm:$0xf]
      %v524 = vld [vmem:[#allocation13 + $0x2c] sm:$0xf]
      %v525 = vld [vmem:[#allocation13 + $0x30] sm:$0xf]
      %v526 = vld [vmem:[#allocation13 + $0x34] sm:$0xf]
      %v527 = vld [vmem:[#allocation13 + $0x38] sm:$0xf]
      %v528 = vld [vmem:[#allocation13 + $0x3c] sm:$0xf]
      %v657 = vunpack.c.l.b16 %v281
      %v658 = vunpack.c.l.b16 %v282
      %v659 = vunpack.c.l.b16 %v283
      %v660 = vunpack.c.l.b16 %v284
      %v661 = vunpack.c.l.b16 %v285
      %v662 = vunpack.c.l.b16 %v286
      %v663 = vunpack.c.l.b16 %v287
      %v664 = vunpack.c.l.b16 %v288
      %v665 = vunpack.c.l.b16 %v289
      %v666 = vunpack.c.l.b16 %v290
      %v667 = vunpack.c.l.b16 %v291
      %v668 = vunpack.c.l.b16 %v292
      %v669 = vunpack.c.l.b16 %v293
      %v670 = vunpack.c.l.b16 %v294
      %v671 = vunpack.c.l.b16 %v295
      %v672 = vunpack.c.l.b16 %v296
      %v673 = vunpack.c.l.b16 %v297
      %v674 = vunpack.c.l.b16 %v298
      %v675 = vunpack.c.l.b16 %v299
      %v676 = vunpack.c.l.b16 %v300
      %v677 = vunpack.c.l.b16 %v301
      %v678 = vunpack.c.l.b16 %v302
      %v679 = vunpack.c.l.b16 %v303
      %v680 = vunpack.c.l.b16 %v304
      %v681 = vunpack.c.l.b16 %v305
      %v682 = vunpack.c.l.b16 %v306
      %v683 = vunpack.c.l.b16 %v307
      %v684 = vunpack.c.l.b16 %v308
      %v685 = vunpack.c.l.b16 %v309
      %v686 = vunpack.c.l.b16 %v310
      %v687 = vunpack.c.l.b16 %v311
      %v688 = vunpack.c.l.b16 %v312
      %v689 = vunpack.c.l.b16 %v313
      %v690 = vunpack.c.l.b16 %v314
      %v691 = vunpack.c.l.b16 %v315
      %v692 = vunpack.c.l.b16 %v316
      %v693 = vunpack.c.l.b16 %v317
      %v694 = vunpack.c.l.b16 %v318
      %v695 = vunpack.c.l.b16 %v319
      %v696 = vunpack.c.l.b16 %v320
      %v697 = vunpack.c.l.b16 %v321
      %v698 = vunpack.c.l.b16 %v322
      %v699 = vunpack.c.l.b16 %v323
      %v700 = vunpack.c.l.b16 %v324
      %v701 = vunpack.c.l.b16 %v325
      %v702 = vunpack.c.l.b16 %v326
      %v703 = vunpack.c.l.b16 %v327
      %v704 = vunpack.c.l.b16 %v328
      %v705 = vunpack.c.l.b16 %v329
      %v706 = vunpack.c.l.b16 %v330
      %v707 = vunpack.c.l.b16 %v331
      %v708 = vunpack.c.l.b16 %v332
      %v709 = vunpack.c.l.b16 %v333
      %v710 = vunpack.c.l.b16 %v334
      %v711 = vunpack.c.l.b16 %v335
      %v712 = vunpack.c.l.b16 %v336
      %v713 = vunpack.c.l.b16 %v337
      %v714 = vunpack.c.l.b16 %v338
      %v715 = vunpack.c.l.b16 %v339
      %v716 = vunpack.c.l.b16 %v340
      %v717 = vunpack.c.l.b16 %v341
      %v718 = vunpack.c.l.b16 %v342
      %v719 = vunpack.c.l.b16 %v343
      %v720 = vunpack.c.l.b16 %v344
      %v721 = vunpack.c.l.b16 %v345
      %v722 = vunpack.c.l.b16 %v346
      %v723 = vunpack.c.l.b16 %v347
      %v724 = vunpack.c.l.b16 %v348
      %v725 = vunpack.c.l.b16 %v349
      %v726 = vunpack.c.l.b16 %v350
      %v727 = vunpack.c.l.b16 %v351
      %v728 = vunpack.c.l.b16 %v352
      %v729 = vunpack.c.l.b16 %v353
      %v730 = vunpack.c.l.b16 %v354
      %v731 = vunpack.c.l.b16 %v355
      %v732 = vunpack.c.l.b16 %v356
      %v733 = vunpack.c.l.b16 %v357
      %v734 = vunpack.c.l.b16 %v358
      %v735 = vunpack.c.l.b16 %v359
      %v736 = vunpack.c.l.b16 %v360
      %v737 = vunpack.c.l.b16 %v361
      %v738 = vunpack.c.l.b16 %v362
      %v739 = vunpack.c.l.b16 %v363
      %v740 = vunpack.c.l.b16 %v364
      %v741 = vunpack.c.l.b16 %v365
      %v742 = vunpack.c.l.b16 %v366
      %v743 = vunpack.c.l.b16 %v367
      %v744 = vunpack.c.l.b16 %v368
      %v745 = vunpack.c.l.b16 %v369
      %v746 = vunpack.c.l.b16 %v370
      %v747 = vunpack.c.l.b16 %v371
      %v748 = vunpack.c.l.b16 %v372
      %v749 = vunpack.c.l.b16 %v373
      %v750 = vunpack.c.l.b16 %v374
      %v751 = vunpack.c.l.b16 %v375
      %v752 = vunpack.c.l.b16 %v376
      %v753 = vunpack.c.l.b16 %v377
      %v754 = vunpack.c.l.b16 %v378
      %v755 = vunpack.c.l.b16 %v379
      %v756 = vunpack.c.l.b16 %v380
      %v757 = vunpack.c.l.b16 %v381
      %v758 = vunpack.c.l.b16 %v382
      %v759 = vunpack.c.l.b16 %v383
      %v760 = vunpack.c.l.b16 %v384
      %v761 = vunpack.c.l.b16 %v385
      %v762 = vunpack.c.l.b16 %v386
      %v763 = vunpack.c.l.b16 %v387
      %v764 = vunpack.c.l.b16 %v388
      %v765 = vunpack.c.l.b16 %v389
      %v766 = vunpack.c.l.b16 %v390
      %v767 = vunpack.c.l.b16 %v391
      %v768 = vunpack.c.l.b16 %v392
      %v769 = vunpack.c.l.b16 %v393
      %v770 = vunpack.c.l.b16 %v394
      %v771 = vunpack.c.l.b16 %v395
      %v772 = vunpack.c.l.b16 %v396
      %v773 = vunpack.c.l.b16 %v397
      %v774 = vunpack.c.l.b16 %v398
      %v775 = vunpack.c.l.b16 %v399
      %v776 = vunpack.c.l.b16 %v400
      %v777 = vunpack.c.l.b16 %v401
      %v778 = vunpack.c.l.b16 %v402
      %v779 = vunpack.c.l.b16 %v403
      %v780 = vunpack.c.l.b16 %v404
      %v781 = vunpack.c.l.b16 %v405
      %v782 = vunpack.c.l.b16 %v406
      %v783 = vunpack.c.l.b16 %v407
      %v784 = vunpack.c.l.b16 %v408
      %v785 = vpack.c.b16 %v658, %v657
      %v786 = vpack.c.b16 %v660, %v659
      %v787 = vpack.c.b16 %v662, %v661
      %v788 = vpack.c.b16 %v664, %v663
      %v789 = vpack.c.b16 %v666, %v665
      %v790 = vpack.c.b16 %v668, %v667
      %v791 = vpack.c.b16 %v670, %v669
      %v792 = vpack.c.b16 %v672, %v671
      %v793 = vpack.c.b16 %v674, %v673
      %v794 = vpack.c.b16 %v676, %v675
      %v795 = vpack.c.b16 %v678, %v677
      %v796 = vpack.c.b16 %v680, %v679
      %v797 = vpack.c.b16 %v682, %v681
      %v798 = vpack.c.b16 %v684, %v683
      %v799 = vpack.c.b16 %v686, %v685
      %v800 = vpack.c.b16 %v688, %v687
      %v801 = vpack.c.b16 %v690, %v689
      %v802 = vpack.c.b16 %v692, %v691
      %v803 = vpack.c.b16 %v694, %v693
      %v804 = vpack.c.b16 %v696, %v695
      %v805 = vpack.c.b16 %v698, %v697
      %v806 = vpack.c.b16 %v700, %v699
      %v807 = vpack.c.b16 %v702, %v701
      %v808 = vpack.c.b16 %v704, %v703
      %v809 = vpack.c.b16 %v706, %v705
      %v810 = vpack.c.b16 %v708, %v707
      %v811 = vpack.c.b16 %v710, %v709
      %v812 = vpack.c.b16 %v712, %v711
      %v813 = vpack.c.b16 %v714, %v713
      %v814 = vpack.c.b16 %v716, %v715
      %v815 = vpack.c.b16 %v718, %v717
      %v816 = vpack.c.b16 %v720, %v719
      %v817 = vpack.c.b16 %v722, %v721
      %v818 = vpack.c.b16 %v724, %v723
      %v819 = vpack.c.b16 %v726, %v725
      %v820 = vpack.c.b16 %v728, %v727
      %v821 = vpack.c.b16 %v730, %v729
      %v822 = vpack.c.b16 %v732, %v731
      %v823 = vpack.c.b16 %v734, %v733
      %v824 = vpack.c.b16 %v736, %v735
      %v825 = vpack.c.b16 %v738, %v737
      %v826 = vpack.c.b16 %v740, %v739
      %v827 = vpack.c.b16 %v742, %v741
      %v828 = vpack.c.b16 %v744, %v743
      %v829 = vpack.c.b16 %v746, %v745
      %v830 = vpack.c.b16 %v748, %v747
      %v831 = vpack.c.b16 %v750, %v749
      %v832 = vpack.c.b16 %v752, %v751
      %v833 = vpack.c.b16 %v754, %v753
      %v834 = vpack.c.b16 %v756, %v755
      %v835 = vpack.c.b16 %v758, %v757
      %v836 = vpack.c.b16 %v760, %v759
      %v837 = vpack.c.b16 %v762, %v761
      %v838 = vpack.c.b16 %v764, %v763
      %v839 = vpack.c.b16 %v766, %v765
      %v840 = vpack.c.b16 %v768, %v767
      %v841 = vpack.c.b16 %v770, %v769
      %v842 = vpack.c.b16 %v772, %v771
      %v843 = vpack.c.b16 %v774, %v773
      %v844 = vpack.c.b16 %v776, %v775
      %v845 = vpack.c.b16 %v778, %v777
      %v846 = vpack.c.b16 %v780, %v779
      %v847 = vpack.c.b16 %v782, %v781
      %v848 = vpack.c.b16 %v784, %v783
      %v929 = vunpack.c.l.b16 %v513
      %v930 = vunpack.c.l.b16 %v514
      %v931 = vunpack.c.l.b16 %v515
      %v932 = vunpack.c.l.b16 %v516
      %v933 = vunpack.c.l.b16 %v517
      %v934 = vunpack.c.l.b16 %v518
      %v935 = vunpack.c.l.b16 %v519
      %v936 = vunpack.c.l.b16 %v520
      %v937 = vunpack.c.l.b16 %v521
      %v938 = vunpack.c.l.b16 %v522
      %v939 = vunpack.c.l.b16 %v523
      %v940 = vunpack.c.l.b16 %v524
      %v941 = vunpack.c.l.b16 %v525
      %v942 = vunpack.c.l.b16 %v526
      %v943 = vunpack.c.l.b16 %v527
      %v944 = vunpack.c.l.b16 %v528
      %v945 = vpack.c.b16 %v930, %v929
      %v946 = vpack.c.b16 %v932, %v931
      %v947 = vpack.c.b16 %v934, %v933
      %v948 = vpack.c.b16 %v936, %v935
      %v949 = vpack.c.b16 %v938, %v937
      %v950 = vpack.c.b16 %v940, %v939
      %v951 = vpack.c.b16 %v942, %v941
      %v952 = vpack.c.b16 %v944, %v943
      %961 = vmatprep.subr.bf16.mxu0 0
      %962 = vmatpush1.bf16.msra.mxu0 %v945
      %963 = vmatprep.subr.bf16.mxu0 0
      %964 = vmatpush1.bf16.msra.mxu0 %v946
      %965 = vmatprep.subr.bf16.mxu0 0
      %966 = vmatpush1.bf16.msra.mxu0 %v947
      %967 = vmatprep.subr.bf16.mxu0 0
      %968 = vmatpush1.bf16.msra.mxu0 %v948
      %969 = vmatprep.subr.bf16.mxu0 0
      %970 = vmatpush1.bf16.msra.mxu0 %v949
      %971 = vmatprep.subr.bf16.mxu0 0
      %972 = vmatpush1.bf16.msra.mxu0 %v950
      %973 = vmatprep.subr.bf16.mxu0 0
      %974 = vmatpush1.bf16.msra.mxu0 %v951
      %975 = vmatprep.subr.bf16.mxu0 0
      %976 = vmatpush1.bf16.msra.mxu0 %v952
      %977 = vmatprep.subr.bf16.mxu0 0
      %978 = vmatpush1.bf16.msra.mxu0 0
      %979 = vmatprep.subr.bf16.mxu0 0
      %980 = vmatpush1.bf16.msra.mxu0 0
      %981 = vmatprep.subr.bf16.mxu0 0
      %982 = vmatpush1.bf16.msra.mxu0 0
      %983 = vmatprep.subr.bf16.mxu0 0
      %984 = vmatpush1.bf16.msra.mxu0 0
      %985 = vmatprep.subr.bf16.mxu0 0
      %986 = vmatpush1.bf16.msra.mxu0 0
      %987 = vmatprep.subr.bf16.mxu0 0
      %988 = vmatpush1.bf16.msra.mxu0 0
      %989 = vmatprep.subr.bf16.mxu0 0
      %990 = vmatpush1.bf16.msra.mxu0 0
      %991 = vmatprep.subr.bf16.mxu0 0
      %992 = vmatpush1.bf16.msra.mxu0 0
      %993 = vmatprep.mubr.bf16.mxu0 0
      %994 = vmatmul.mubr.bf16.gmra.mrb[0].mxu0 %v785
      %v995 = vpop.f32.mrb[0].mxu0
      %v996 = vadd.f32 0.0, %v995
      %v997 = vpop.f32.mrb[0].mxu0
      %v998 = vpop.f32.mrb[0].mxu0
      %v999 = vadd.f32 0.0, %v998
      %v1000 = vpop.f32.mrb[0].mxu0
      %1001 = vmatprep.mubr.bf16.mxu0 0
      %1002 = vmatmul.mubr.bf16.gmra.mrb[0].mxu0 %v786
      %v1003 = vpop.f32.mrb[0].mxu0
      %v1004 = vadd.f32 0.0, %v1003
      %v1005 = vpop.f32.mrb[0].mxu0
      %v1006 = vpop.f32.mrb[0].mxu0
      %v1007 = vadd.f32 0.0, %v1006
      %v1008 = vpop.f32.mrb[0].mxu0
      %1009 = vmatprep.mubr.bf16.mxu0 0
      %1010 = vmatmul.mubr.bf16.gmra.mrb[0].mxu0 %v787
      %v1011 = vpop.f32.mrb[0].mxu0
      %v1012 = vadd.f32 0.0, %v1011
      %v1013 = vpop.f32.mrb[0].mxu0
      %v1014 = vpop.f32.mrb[0].mxu0
      %v1015 = vadd.f32 0.0, %v1014
      %v1016 = vpop.f32.mrb[0].mxu0
      %1017 = vmatprep.mubr.bf16.mxu0 0
      %1018 = vmatmul.mubr.bf16.gmra.mrb[0].mxu0 %v788
      %v1019 = vpop.f32.mrb[0].mxu0
      %v1020 = vadd.f32 0.0, %v1019
      %v1021 = vpop.f32.mrb[0].mxu0
      %v1022 = vpop.f32.mrb[0].mxu0
      %v1023 = vadd.f32 0.0, %v1022
      %v1024 = vpop.f32.mrb[0].mxu0
      %1025 = vmatprep.mubr.bf16.mxu0 0
      %1026 = vmatmul.mubr.bf16.gmra.mrb[0].mxu0 %v789
      %v1027 = vpop.f32.mrb[0].mxu0
      %v1028 = vadd.f32 0.0, %v1027
      %v1029 = vpop.f32.mrb[0].mxu0
      %v1030 = vpop.f32.mrb[0].mxu0
      %v1031 = vadd.f32 0.0, %v1030
      %v1032 = vpop.f32.mrb[0].mxu0
      %1033 = vmatprep.mubr.bf16.mxu0 0
      %1034 = vmatmul.mubr.bf16.gmra.mrb[0].mxu0 %v790
      %v1035 = vpop.f32.mrb[0].mxu0
      %v1036 = vadd.f32 0.0, %v1035
      %v1037 = vpop.f32.mrb[0].mxu0
      %v1038 = vpop.f32.mrb[0].mxu0
      %v1039 = vadd.f32 0.0, %v1038
      %v1040 = vpop.f32.mrb[0].mxu0
      %1041 = vmatprep.mubr.bf16.mxu0 0
      %1042 = vmatmul.mubr.bf16.gmra.mrb[0].mxu0 %v791
      %v1043 = vpop.f32.mrb[0].mxu0
      %v1044 = vadd.f32 0.0, %v1043
      %v1045 = vpop.f32.mrb[0].mxu0
      %v1046 = vpop.f32.mrb[0].mxu0
      %v1047 = vadd.f32 0.0, %v1046
      %v1048 = vpop.f32.mrb[0].mxu0
      %1049 = vmatprep.mubr.bf16.mxu0 0
      %1050 = vmatmul.mubr.bf16.gmra.mrb[0].mxu0 %v792
      %v1051 = vpop.f32.mrb[0].mxu0
      %v1052 = vadd.f32 0.0, %v1051
      %v1053 = vpop.f32.mrb[0].mxu0
      %v1054 = vpop.f32.mrb[0].mxu0
      %v1055 = vadd.f32 0.0, %v1054
      %v1056 = vpop.f32.mrb[0].mxu0
      %1057 = vmatprep.mubr.bf16.mxu0 0
      %1058 = vmatmul.mubr.bf16.gmra.mrb[0].mxu0 %v793
      %v1059 = vpop.f32.mrb[0].mxu0
      %v1060 = vadd.f32 0.0, %v1059
      %v1061 = vpop.f32.mrb[0].mxu0
      %v1062 = vpop.f32.mrb[0].mxu0
      %v1063 = vadd.f32 0.0, %v1062
      %v1064 = vpop.f32.mrb[0].mxu0
      %1065 = vmatprep.mubr.bf16.mxu0 0
      %1066 = vmatmul.mubr.bf16.gmra.mrb[0].mxu0 %v794
      %v1067 = vpop.f32.mrb[0].mxu0
      %v1068 = vadd.f32 0.0, %v1067
      %v1069 = vpop.f32.mrb[0].mxu0
      %v1070 = vpop.f32.mrb[0].mxu0
      %v1071 = vadd.f32 0.0, %v1070
      %v1072 = vpop.f32.mrb[0].mxu0
      %1073 = vmatprep.mubr.bf16.mxu0 0
      %1074 = vmatmul.mubr.bf16.gmra.mrb[0].mxu0 %v795
      %v1075 = vpop.f32.mrb[0].mxu0
      %v1076 = vadd.f32 0.0, %v1075
      %v1077 = vpop.f32.mrb[0].mxu0
      %v1078 = vpop.f32.mrb[0].mxu0
      %v1079 = vadd.f32 0.0, %v1078
      %v1080 = vpop.f32.mrb[0].mxu0
      %1081 = vmatprep.mubr.bf16.mxu0 0
      %1082 = vmatmul.mubr.bf16.gmra.mrb[0].mxu0 %v796
      %v1083 = vpop.f32.mrb[0].mxu0
      %v1084 = vadd.f32 0.0, %v1083
      %v1085 = vpop.f32.mrb[0].mxu0
      %v1086 = vpop.f32.mrb[0].mxu0
      %v1087 = vadd.f32 0.0, %v1086
      %v1088 = vpop.f32.mrb[0].mxu0
      %1089 = vmatprep.mubr.bf16.mxu0 0
      %1090 = vmatmul.mubr.bf16.gmra.mrb[0].mxu0 %v797
      %v1091 = vpop.f32.mrb[0].mxu0
      %v1092 = vadd.f32 0.0, %v1091
      %v1093 = vpop.f32.mrb[0].mxu0
      %v1094 = vpop.f32.mrb[0].mxu0
      %v1095 = vadd.f32 0.0, %v1094
      %v1096 = vpop.f32.mrb[0].mxu0
      %1097 = vmatprep.mubr.bf16.mxu0 0
      %1098 = vmatmul.mubr.bf16.gmra.mrb[0].mxu0 %v798
      %v1099 = vpop.f32.mrb[0].mxu0
      %v1100 = vadd.f32 0.0, %v1099
      %v1101 = vpop.f32.mrb[0].mxu0
      %v1102 = vpop.f32.mrb[0].mxu0
      %v1103 = vadd.f32 0.0, %v1102
      %v1104 = vpop.f32.mrb[0].mxu0
      %1105 = vmatprep.mubr.bf16.mxu0 0
      %1106 = vmatmul.mubr.bf16.gmra.mrb[0].mxu0 %v799
      %v1107 = vpop.f32.mrb[0].mxu0
      %v1108 = vadd.f32 0.0, %v1107
      %v1109 = vpop.f32.mrb[0].mxu0
      %v1110 = vpop.f32.mrb[0].mxu0
      %v1111 = vadd.f32 0.0, %v1110
      %v1112 = vpop.f32.mrb[0].mxu0
      %1113 = vmatprep.mubr.bf16.mxu0 0
      %1114 = vmatmul.mubr.bf16.gmra.mrb[0].mxu0 %v800
      %v1115 = vpop.f32.mrb[0].mxu0
      %v1116 = vadd.f32 0.0, %v1115
      %v1117 = vpop.f32.mrb[0].mxu0
      %v1118 = vpop.f32.mrb[0].mxu0
      %v1119 = vadd.f32 0.0, %v1118
      %v1120 = vpop.f32.mrb[0].mxu0
      %1121 = vmatprep.mubr.bf16.mxu0 0
      %1122 = vmatmul.mubr.bf16.gmra.mrb[0].mxu0 %v801
      %v1123 = vpop.f32.mrb[0].mxu0
      %v1124 = vadd.f32 0.0, %v1123
      %v1125 = vpop.f32.mrb[0].mxu0
      %v1126 = vpop.f32.mrb[0].mxu0
      %v1127 = vadd.f32 0.0, %v1126
      %v1128 = vpop.f32.mrb[0].mxu0
      %1129 = vmatprep.mubr.bf16.mxu0 0
      %1130 = vmatmul.mubr.bf16.gmra.mrb[0].mxu0 %v802
      %v1131 = vpop.f32.mrb[0].mxu0
      %v1132 = vadd.f32 0.0, %v1131
      %v1133 = vpop.f32.mrb[0].mxu0
      %v1134 = vpop.f32.mrb[0].mxu0
      %v1135 = vadd.f32 0.0, %v1134
      %v1136 = vpop.f32.mrb[0].mxu0
      %1137 = vmatprep.mubr.bf16.mxu0 0
      %1138 = vmatmul.mubr.bf16.gmra.mrb[0].mxu0 %v803
      %v1139 = vpop.f32.mrb[0].mxu0
      %v1140 = vadd.f32 0.0, %v1139
      %v1141 = vpop.f32.mrb[0].mxu0
      %v1142 = vpop.f32.mrb[0].mxu0
      %v1143 = vadd.f32 0.0, %v1142
      %v1144 = vpop.f32.mrb[0].mxu0
      %1145 = vmatprep.mubr.bf16.mxu0 0
      %1146 = vmatmul.mubr.bf16.gmra.mrb[0].mxu0 %v804
      %v1147 = vpop.f32.mrb[0].mxu0
      %v1148 = vadd.f32 0.0, %v1147
      %v1149 = vpop.f32.mrb[0].mxu0
      %v1150 = vpop.f32.mrb[0].mxu0
      %v1151 = vadd.f32 0.0, %v1150
      %v1152 = vpop.f32.mrb[0].mxu0
      %1153 = vmatprep.mubr.bf16.mxu0 0
      %1154 = vmatmul.mubr.bf16.gmra.mrb[0].mxu0 %v805
      %v1155 = vpop.f32.mrb[0].mxu0
      %v1156 = vadd.f32 0.0, %v1155
      %v1157 = vpop.f32.mrb[0].mxu0
      %v1158 = vpop.f32.mrb[0].mxu0
      %v1159 = vadd.f32 0.0, %v1158
      %v1160 = vpop.f32.mrb[0].mxu0
      %1161 = vmatprep.mubr.bf16.mxu0 0
      %1162 = vmatmul.mubr.bf16.gmra.mrb[0].mxu0 %v806
      %v1163 = vpop.f32.mrb[0].mxu0
      %v1164 = vadd.f32 0.0, %v1163
      %v1165 = vpop.f32.mrb[0].mxu0
      %v1166 = vpop.f32.mrb[0].mxu0
      %v1167 = vadd.f32 0.0, %v1166
      %v1168 = vpop.f32.mrb[0].mxu0
      %1169 = vmatprep.mubr.bf16.mxu0 0
      %1170 = vmatmul.mubr.bf16.gmra.mrb[0].mxu0 %v807
      %v1171 = vpop.f32.mrb[0].mxu0
      %v1172 = vadd.f32 0.0, %v1171
      %v1173 = vpop.f32.mrb[0].mxu0
      %v1174 = vpop.f32.mrb[0].mxu0
      %v1175 = vadd.f32 0.0, %v1174
      %v1176 = vpop.f32.mrb[0].mxu0
      %1177 = vmatprep.mubr.bf16.mxu0 0
      %1178 = vmatmul.mubr.bf16.gmra.mrb[0].mxu0 %v808
      %v1179 = vpop.f32.mrb[0].mxu0
      %v1180 = vadd.f32 0.0, %v1179
      %v1181 = vpop.f32.mrb[0].mxu0
      %v1182 = vpop.f32.mrb[0].mxu0
      %v1183 = vadd.f32 0.0, %v1182
      %v1184 = vpop.f32.mrb[0].mxu0
      %1185 = vmatprep.mubr.bf16.mxu0 0
      %1186 = vmatmul.mubr.bf16.gmra.mrb[0].mxu0 %v809
      %v1187 = vpop.f32.mrb[0].mxu0
      %v1188 = vadd.f32 0.0, %v1187
      %v1189 = vpop.f32.mrb[0].mxu0
      %v1190 = vpop.f32.mrb[0].mxu0
      %v1191 = vadd.f32 0.0, %v1190
      %v1192 = vpop.f32.mrb[0].mxu0
      %1193 = vmatprep.mubr.bf16.mxu0 0
      %1194 = vmatmul.mubr.bf16.gmra.mrb[0].mxu0 %v810
      %v1195 = vpop.f32.mrb[0].mxu0
      %v1196 = vadd.f32 0.0, %v1195
      %v1197 = vpop.f32.mrb[0].mxu0
      %v1198 = vpop.f32.mrb[0].mxu0
      %v1199 = vadd.f32 0.0, %v1198
      %v1200 = vpop.f32.mrb[0].mxu0
      %1201 = vmatprep.mubr.bf16.mxu0 0
      %1202 = vmatmul.mubr.bf16.gmra.mrb[0].mxu0 %v811
      %v1203 = vpop.f32.mrb[0].mxu0
      %v1204 = vadd.f32 0.0, %v1203
      %v1205 = vpop.f32.mrb[0].mxu0
      %v1206 = vpop.f32.mrb[0].mxu0
      %v1207 = vadd.f32 0.0, %v1206
      %v1208 = vpop.f32.mrb[0].mxu0
      %1209 = vmatprep.mubr.bf16.mxu0 0
      %1210 = vmatmul.mubr.bf16.gmra.mrb[0].mxu0 %v812
      %v1211 = vpop.f32.mrb[0].mxu0
      %v1212 = vadd.f32 0.0, %v1211
      %v1213 = vpop.f32.mrb[0].mxu0
      %v1214 = vpop.f32.mrb[0].mxu0
      %v1215 = vadd.f32 0.0, %v1214
      %v1216 = vpop.f32.mrb[0].mxu0
      %1217 = vmatprep.mubr.bf16.mxu0 0
      %1218 = vmatmul.mubr.bf16.gmra.mrb[0].mxu0 %v813
      %v1219 = vpop.f32.mrb[0].mxu0
      %v1220 = vadd.f32 0.0, %v1219
      %v1221 = vpop.f32.mrb[0].mxu0
      %v1222 = vpop.f32.mrb[0].mxu0
      %v1223 = vadd.f32 0.0, %v1222
      %v1224 = vpop.f32.mrb[0].mxu0
      %1225 = vmatprep.mubr.bf16.mxu0 0
      %1226 = vmatmul.mubr.bf16.gmra.mrb[0].mxu0 %v814
      %v1227 = vpop.f32.mrb[0].mxu0
      %v1228 = vadd.f32 0.0, %v1227
      %v1229 = vpop.f32.mrb[0].mxu0
      %v1230 = vpop.f32.mrb[0].mxu0
      %v1231 = vadd.f32 0.0, %v1230
      %v1232 = vpop.f32.mrb[0].mxu0
      %1233 = vmatprep.mubr.bf16.mxu0 0
      %1234 = vmatmul.mubr.bf16.gmra.mrb[0].mxu0 %v815
      %v1235 = vpop.f32.mrb[0].mxu0
      %v1236 = vadd.f32 0.0, %v1235
      %v1237 = vpop.f32.mrb[0].mxu0
      %v1238 = vpop.f32.mrb[0].mxu0
      %v1239 = vadd.f32 0.0, %v1238
      %v1240 = vpop.f32.mrb[0].mxu0
      %1241 = vmatprep.mubr.bf16.mxu0 0
      %1242 = vmatmul.mubr.bf16.gmra.mrb[0].mxu0 %v816
      %v1243 = vpop.f32.mrb[0].mxu0
      %v1244 = vadd.f32 0.0, %v1243
      %v1245 = vpop.f32.mrb[0].mxu0
      %v1246 = vpop.f32.mrb[0].mxu0
      %v1247 = vadd.f32 0.0, %v1246
      %v1248 = vpop.f32.mrb[0].mxu0
      %1249 = vmatprep.mubr.bf16.mxu0 0
      %1250 = vmatmul.mubr.bf16.gmra.mrb[0].mxu0 %v817
      %v1251 = vpop.f32.mrb[0].mxu0
      %v1252 = vadd.f32 0.0, %v1251
      %v1253 = vpop.f32.mrb[0].mxu0
      %v1254 = vpop.f32.mrb[0].mxu0
      %v1255 = vadd.f32 0.0, %v1254
      %v1256 = vpop.f32.mrb[0].mxu0
      %1257 = vmatprep.mubr.bf16.mxu0 0
      %1258 = vmatmul.mubr.bf16.gmra.mrb[0].mxu0 %v818
      %v1259 = vpop.f32.mrb[0].mxu0
      %v1260 = vadd.f32 0.0, %v1259
      %v1261 = vpop.f32.mrb[0].mxu0
      %v1262 = vpop.f32.mrb[0].mxu0
      %v1263 = vadd.f32 0.0, %v1262
      %v1264 = vpop.f32.mrb[0].mxu0
      %1265 = vmatprep.mubr.bf16.mxu0 0
      %1266 = vmatmul.mubr.bf16.gmra.mrb[0].mxu0 %v819
      %v1267 = vpop.f32.mrb[0].mxu0
      %v1268 = vadd.f32 0.0, %v1267
      %v1269 = vpop.f32.mrb[0].mxu0
      %v1270 = vpop.f32.mrb[0].mxu0
      %v1271 = vadd.f32 0.0, %v1270
      %v1272 = vpop.f32.mrb[0].mxu0
      %1273 = vmatprep.mubr.bf16.mxu0 0
      %1274 = vmatmul.mubr.bf16.gmra.mrb[0].mxu0 %v820
      %v1275 = vpop.f32.mrb[0].mxu0
      %v1276 = vadd.f32 0.0, %v1275
      %v1277 = vpop.f32.mrb[0].mxu0
      %v1278 = vpop.f32.mrb[0].mxu0
      %v1279 = vadd.f32 0.0, %v1278
      %v1280 = vpop.f32.mrb[0].mxu0
      %1281 = vmatprep.mubr.bf16.mxu0 0
      %1282 = vmatmul.mubr.bf16.gmra.mrb[0].mxu0 %v821
      %v1283 = vpop.f32.mrb[0].mxu0
      %v1284 = vadd.f32 0.0, %v1283
      %v1285 = vpop.f32.mrb[0].mxu0
      %v1286 = vpop.f32.mrb[0].mxu0
      %v1287 = vadd.f32 0.0, %v1286
      %v1288 = vpop.f32.mrb[0].mxu0
      %1289 = vmatprep.mubr.bf16.mxu0 0
      %1290 = vmatmul.mubr.bf16.gmra.mrb[0].mxu0 %v822
      %v1291 = vpop.f32.mrb[0].mxu0
      %v1292 = vadd.f32 0.0, %v1291
      %v1293 = vpop.f32.mrb[0].mxu0
      %v1294 = vpop.f32.mrb[0].mxu0
      %v1295 = vadd.f32 0.0, %v1294
      %v1296 = vpop.f32.mrb[0].mxu0
      %1297 = vmatprep.mubr.bf16.mxu0 0
      %1298 = vmatmul.mubr.bf16.gmra.mrb[0].mxu0 %v823
      %v1299 = vpop.f32.mrb[0].mxu0
      %v1300 = vadd.f32 0.0, %v1299
      %v1301 = vpop.f32.mrb[0].mxu0
      %v1302 = vpop.f32.mrb[0].mxu0
      %v1303 = vadd.f32 0.0, %v1302
      %v1304 = vpop.f32.mrb[0].mxu0
      %1305 = vmatprep.mubr.bf16.mxu0 0
      %1306 = vmatmul.mubr.bf16.gmra.mrb[0].mxu0 %v824
      %v1307 = vpop.f32.mrb[0].mxu0
      %v1308 = vadd.f32 0.0, %v1307
      %v1309 = vpop.f32.mrb[0].mxu0
      %v1310 = vpop.f32.mrb[0].mxu0
      %v1311 = vadd.f32 0.0, %v1310
      %v1312 = vpop.f32.mrb[0].mxu0
      %1313 = vmatprep.mubr.bf16.mxu0 0
      %1314 = vmatmul.mubr.bf16.gmra.mrb[0].mxu0 %v825
      %v1315 = vpop.f32.mrb[0].mxu0
      %v1316 = vadd.f32 0.0, %v1315
      %v1317 = vpop.f32.mrb[0].mxu0
      %v1318 = vpop.f32.mrb[0].mxu0
      %v1319 = vadd.f32 0.0, %v1318
      %v1320 = vpop.f32.mrb[0].mxu0
      %1321 = vmatprep.mubr.bf16.mxu0 0
      %1322 = vmatmul.mubr.bf16.gmra.mrb[0].mxu0 %v826
      %v1323 = vpop.f32.mrb[0].mxu0
      %v1324 = vadd.f32 0.0, %v1323
      %v1325 = vpop.f32.mrb[0].mxu0
      %v1326 = vpop.f32.mrb[0].mxu0
      %v1327 = vadd.f32 0.0, %v1326
      %v1328 = vpop.f32.mrb[0].mxu0
      %1329 = vmatprep.mubr.bf16.mxu0 0
      %1330 = vmatmul.mubr.bf16.gmra.mrb[0].mxu0 %v827
      %v1331 = vpop.f32.mrb[0].mxu0
      %v1332 = vadd.f32 0.0, %v1331
      %v1333 = vpop.f32.mrb[0].mxu0
      %v1334 = vpop.f32.mrb[0].mxu0
      %v1335 = vadd.f32 0.0, %v1334
      %v1336 = vpop.f32.mrb[0].mxu0
      %1337 = vmatprep.mubr.bf16.mxu0 0
      %1338 = vmatmul.mubr.bf16.gmra.mrb[0].mxu0 %v828
      %v1339 = vpop.f32.mrb[0].mxu0
      %v1340 = vadd.f32 0.0, %v1339
      %v1341 = vpop.f32.mrb[0].mxu0
      %v1342 = vpop.f32.mrb[0].mxu0
      %v1343 = vadd.f32 0.0, %v1342
      %v1344 = vpop.f32.mrb[0].mxu0
      %1345 = vmatprep.mubr.bf16.mxu0 0
      %1346 = vmatmul.mubr.bf16.gmra.mrb[0].mxu0 %v829
      %v1347 = vpop.f32.mrb[0].mxu0
      %v1348 = vadd.f32 0.0, %v1347
      %v1349 = vpop.f32.mrb[0].mxu0
      %v1350 = vpop.f32.mrb[0].mxu0
      %v1351 = vadd.f32 0.0, %v1350
      %v1352 = vpop.f32.mrb[0].mxu0
      %1353 = vmatprep.mubr.bf16.mxu0 0
      %1354 = vmatmul.mubr.bf16.gmra.mrb[0].mxu0 %v830
      %v1355 = vpop.f32.mrb[0].mxu0
      %v1356 = vadd.f32 0.0, %v1355
      %v1357 = vpop.f32.mrb[0].mxu0
      %v1358 = vpop.f32.mrb[0].mxu0
      %v1359 = vadd.f32 0.0, %v1358
      %v1360 = vpop.f32.mrb[0].mxu0
      %1361 = vmatprep.mubr.bf16.mxu0 0
      %1362 = vmatmul.mubr.bf16.gmra.mrb[0].mxu0 %v831
      %v1363 = vpop.f32.mrb[0].mxu0
      %v1364 = vadd.f32 0.0, %v1363
      %v1365 = vpop.f32.mrb[0].mxu0
      %v1366 = vpop.f32.mrb[0].mxu0
      %v1367 = vadd.f32 0.0, %v1366
      %v1368 = vpop.f32.mrb[0].mxu0
      %1369 = vmatprep.mubr.bf16.mxu0 0
      %1370 = vmatmul.mubr.bf16.gmra.mrb[0].mxu0 %v832
      %v1371 = vpop.f32.mrb[0].mxu0
      %v1372 = vadd.f32 0.0, %v1371
      %v1373 = vpop.f32.mrb[0].mxu0
      %v1374 = vpop.f32.mrb[0].mxu0
      %v1375 = vadd.f32 0.0, %v1374
      %v1376 = vpop.f32.mrb[0].mxu0
      %1377 = vmatprep.mubr.bf16.mxu0 0
      %1378 = vmatmul.mubr.bf16.gmra.mrb[0].mxu0 %v833
      %v1379 = vpop.f32.mrb[0].mxu0
      %v1380 = vadd.f32 0.0, %v1379
      %v1381 = vpop.f32.mrb[0].mxu0
      %v1382 = vpop.f32.mrb[0].mxu0
      %v1383 = vadd.f32 0.0, %v1382
      %v1384 = vpop.f32.mrb[0].mxu0
      %1385 = vmatprep.mubr.bf16.mxu0 0
      %1386 = vmatmul.mubr.bf16.gmra.mrb[0].mxu0 %v834
      %v1387 = vpop.f32.mrb[0].mxu0
      %v1388 = vadd.f32 0.0, %v1387
      %v1389 = vpop.f32.mrb[0].mxu0
      %v1390 = vpop.f32.mrb[0].mxu0
      %v1391 = vadd.f32 0.0, %v1390
      %v1392 = vpop.f32.mrb[0].mxu0
      %1393 = vmatprep.mubr.bf16.mxu0 0
      %1394 = vmatmul.mubr.bf16.gmra.mrb[0].mxu0 %v835
      %v1395 = vpop.f32.mrb[0].mxu0
      %v1396 = vadd.f32 0.0, %v1395
      %v1397 = vpop.f32.mrb[0].mxu0
      %v1398 = vpop.f32.mrb[0].mxu0
      %v1399 = vadd.f32 0.0, %v1398
      %v1400 = vpop.f32.mrb[0].mxu0
      %1401 = vmatprep.mubr.bf16.mxu0 0
      %1402 = vmatmul.mubr.bf16.gmra.mrb[0].mxu0 %v836
      %v1403 = vpop.f32.mrb[0].mxu0
      %v1404 = vadd.f32 0.0, %v1403
      %v1405 = vpop.f32.mrb[0].mxu0
      %v1406 = vpop.f32.mrb[0].mxu0
      %v1407 = vadd.f32 0.0, %v1406
      %v1408 = vpop.f32.mrb[0].mxu0
      %1409 = vmatprep.mubr.bf16.mxu0 0
      %1410 = vmatmul.mubr.bf16.gmra.mrb[0].mxu0 %v837
      %v1411 = vpop.f32.mrb[0].mxu0
      %v1412 = vadd.f32 0.0, %v1411
      %v1413 = vpop.f32.mrb[0].mxu0
      %v1414 = vpop.f32.mrb[0].mxu0
      %v1415 = vadd.f32 0.0, %v1414
      %v1416 = vpop.f32.mrb[0].mxu0
      %1417 = vmatprep.mubr.bf16.mxu0 0
      %1418 = vmatmul.mubr.bf16.gmra.mrb[0].mxu0 %v838
      %v1419 = vpop.f32.mrb[0].mxu0
      %v1420 = vadd.f32 0.0, %v1419
      %v1421 = vpop.f32.mrb[0].mxu0
      %v1422 = vpop.f32.mrb[0].mxu0
      %v1423 = vadd.f32 0.0, %v1422
      %v1424 = vpop.f32.mrb[0].mxu0
      %1425 = vmatprep.mubr.bf16.mxu0 0
      %1426 = vmatmul.mubr.bf16.gmra.mrb[0].mxu0 %v839
      %v1427 = vpop.f32.mrb[0].mxu0
      %v1428 = vadd.f32 0.0, %v1427
      %v1429 = vpop.f32.mrb[0].mxu0
      %v1430 = vpop.f32.mrb[0].mxu0
      %v1431 = vadd.f32 0.0, %v1430
      %v1432 = vpop.f32.mrb[0].mxu0
      %1433 = vmatprep.mubr.bf16.mxu0 0
      %1434 = vmatmul.mubr.bf16.gmra.mrb[0].mxu0 %v840
      %v1435 = vpop.f32.mrb[0].mxu0
      %v1436 = vadd.f32 0.0, %v1435
      %v1437 = vpop.f32.mrb[0].mxu0
      %v1438 = vpop.f32.mrb[0].mxu0
      %v1439 = vadd.f32 0.0, %v1438
      %v1440 = vpop.f32.mrb[0].mxu0
      %1441 = vmatprep.mubr.bf16.mxu0 0
      %1442 = vmatmul.mubr.bf16.gmra.mrb[0].mxu0 %v841
      %v1443 = vpop.f32.mrb[0].mxu0
      %v1444 = vadd.f32 0.0, %v1443
      %v1445 = vpop.f32.mrb[0].mxu0
      %v1446 = vpop.f32.mrb[0].mxu0
      %v1447 = vadd.f32 0.0, %v1446
      %v1448 = vpop.f32.mrb[0].mxu0
      %1449 = vmatprep.mubr.bf16.mxu0 0
      %1450 = vmatmul.mubr.bf16.gmra.mrb[0].mxu0 %v842
      %v1451 = vpop.f32.mrb[0].mxu0
      %v1452 = vadd.f32 0.0, %v1451
      %v1453 = vpop.f32.mrb[0].mxu0
      %v1454 = vpop.f32.mrb[0].mxu0
      %v1455 = vadd.f32 0.0, %v1454
      %v1456 = vpop.f32.mrb[0].mxu0
      %1457 = vmatprep.mubr.bf16.mxu0 0
      %1458 = vmatmul.mubr.bf16.gmra.mrb[0].mxu0 %v843
      %v1459 = vpop.f32.mrb[0].mxu0
      %v1460 = vadd.f32 0.0, %v1459
      %v1461 = vpop.f32.mrb[0].mxu0
      %v1462 = vpop.f32.mrb[0].mxu0
      %v1463 = vadd.f32 0.0, %v1462
      %v1464 = vpop.f32.mrb[0].mxu0
      %1465 = vmatprep.mubr.bf16.mxu0 0
      %1466 = vmatmul.mubr.bf16.gmra.mrb[0].mxu0 %v844
      %v1467 = vpop.f32.mrb[0].mxu0
      %v1468 = vadd.f32 0.0, %v1467
      %v1469 = vpop.f32.mrb[0].mxu0
      %v1470 = vpop.f32.mrb[0].mxu0
      %v1471 = vadd.f32 0.0, %v1470
      %v1472 = vpop.f32.mrb[0].mxu0
      %1473 = vmatprep.mubr.bf16.mxu0 0
      %1474 = vmatmul.mubr.bf16.gmra.mrb[0].mxu0 %v845
      %v1475 = vpop.f32.mrb[0].mxu0
      %v1476 = vadd.f32 0.0, %v1475
      %v1477 = vpop.f32.mrb[0].mxu0
      %v1478 = vpop.f32.mrb[0].mxu0
      %v1479 = vadd.f32 0.0, %v1478
      %v1480 = vpop.f32.mrb[0].mxu0
      %1481 = vmatprep.mubr.bf16.mxu0 0
      %1482 = vmatmul.mubr.bf16.gmra.mrb[0].mxu0 %v846
      %v1483 = vpop.f32.mrb[0].mxu0
      %v1484 = vadd.f32 0.0, %v1483
      %v1485 = vpop.f32.mrb[0].mxu0
      %v1486 = vpop.f32.mrb[0].mxu0
      %v1487 = vadd.f32 0.0, %v1486
      %v1488 = vpop.f32.mrb[0].mxu0
      %1489 = vmatprep.mubr.bf16.mxu0 0
      %1490 = vmatmul.mubr.bf16.gmra.mrb[0].mxu0 %v847
      %v1491 = vpop.f32.mrb[0].mxu0
      %v1492 = vadd.f32 0.0, %v1491
      %v1493 = vpop.f32.mrb[0].mxu0
      %v1494 = vpop.f32.mrb[0].mxu0
      %v1495 = vadd.f32 0.0, %v1494
      %v1496 = vpop.f32.mrb[0].mxu0
      %1497 = vmatprep.mubr.bf16.mxu0 0
      %1498 = vmatmul.mubr.bf16.gmra.mrb[0].mxu0 %v848
      %v1499 = vpop.f32.mrb[0].mxu0
      %v1500 = vadd.f32 0.0, %v1499
      %v1501 = vpop.f32.mrb[0].mxu0
      %v1502 = vpop.f32.mrb[0].mxu0
      %v1503 = vadd.f32 0.0, %v1502
      %v1504 = vpop.f32.mrb[0].mxu0
      %1505 = vdwg.mxu0
      %v1507 = vcombine.high %v508, %v508
      %v1509 = vunpack.c.l.s4 1966171168
      %v1510 = vunpack.c.0.s8 %v1509
      %v1511 = vlaneseq
      %v1512 = vshrl.u32 %v1511, 7
      %v1513 = vsub.s32 %v1510, %v1512
      %v1514 = vrot.slane %v508, %v1513
      %v1516 = vunpack.c.l.s4 1966171168
      %v1517 = vunpack.c.0.s8 %v1516
      %v1518 = vlaneseq
      %v1519 = vshrl.u32 %v1518, 7
      %v1520 = vsub.s32 %v1517, %v1519
      %v1521 = vrot.slane %v1507, %v1520
      %v1522 = vcombine.high %v1514, %v1514
      %v1523 = vcombine.high %v1521, %v1521
      %v1525 = vunpack.c.l.s4 1966171168
      %v1526 = vunpack.c.0.s8 %v1525
      %v1527 = vlaneseq
      %v1528 = vshrl.u32 %v1527, 7
      %v1529 = vsub.s32 %v1526, %v1528
      %v1530 = vrot.slane %v1514, %v1529
      %v1532 = vunpack.c.l.s4 1966171168
      %v1533 = vunpack.c.0.s8 %v1532
      %v1534 = vlaneseq
      %v1535 = vshrl.u32 %v1534, 7
      %v1536 = vsub.s32 %v1533, %v1535
      %v1537 = vrot.slane %v1521, %v1536
      %v1539 = vunpack.c.l.s4 1966171168
      %v1540 = vunpack.c.0.s8 %v1539
      %v1541 = vlaneseq
      %v1542 = vshrl.u32 %v1541, 7
      %v1543 = vsub.s32 %v1540, %v1542
      %v1544 = vrot.slane %v1522, %v1543
      %v1546 = vunpack.c.l.s4 1966171168
      %v1547 = vunpack.c.0.s8 %v1546
      %v1548 = vlaneseq
      %v1549 = vshrl.u32 %v1548, 7
      %v1550 = vsub.s32 %v1547, %v1549
      %v1551 = vrot.slane %v1523, %v1550
      %v1552 = vcombine.high %v1530, %v1530
      %v1553 = vcombine.high %v1537, %v1537
      %v1554 = vcombine.high %v1544, %v1544
      %v1555 = vcombine.high %v1551, %v1551
      %v1556 = vlaneseq
      %v1557 = vshrl.u32 %v1556, 7
      %v1558 = vsub.s32 0, %v1557
      %v1559 = vrot.slane %v1530, %v1558
      %v1560 = vlaneseq
      %v1561 = vshrl.u32 %v1560, 7
      %v1562 = vsub.s32 0, %v1561
      %v1563 = vrot.slane %v1544, %v1562
      %v1564 = vlaneseq
      %v1565 = vshrl.u32 %v1564, 7
      %v1566 = vsub.s32 0, %v1565
      %v1567 = vrot.slane %v1552, %v1566
      %v1568 = vlaneseq
      %v1569 = vshrl.u32 %v1568, 7
      %v1570 = vsub.s32 0, %v1569
      %v1571 = vrot.slane %v1554, %v1570
      %v1572 = vlaneseq
      %v1573 = vshrl.u32 %v1572, 7
      %v1574 = vsub.s32 0, %v1573
      %v1575 = vrot.slane %v1537, %v1574
      %v1576 = vlaneseq
      %v1577 = vshrl.u32 %v1576, 7
      %v1578 = vsub.s32 0, %v1577
      %v1579 = vrot.slane %v1551, %v1578
      %v1580 = vlaneseq
      %v1581 = vshrl.u32 %v1580, 7
      %v1582 = vsub.s32 0, %v1581
      %v1583 = vrot.slane %v1553, %v1582
      %v1584 = vlaneseq
      %v1585 = vshrl.u32 %v1584, 7
      %v1586 = vsub.s32 0, %v1585
      %v1587 = vrot.slane %v1555, %v1586
      %v1596 = vadd.f32 %v1559, %v996
      %v1597 = vadd.f32 %v1559, %v999
      %v1598 = vadd.f32 %v1559, %v1004
      %v1599 = vadd.f32 %v1559, %v1007
      %v1600 = vadd.f32 %v1559, %v1012
      %v1601 = vadd.f32 %v1559, %v1015
      %v1602 = vadd.f32 %v1559, %v1020
      %v1603 = vadd.f32 %v1559, %v1023
      %v1604 = vadd.f32 %v1559, %v1028
      %v1605 = vadd.f32 %v1559, %v1031
      %v1606 = vadd.f32 %v1559, %v1036
      %v1607 = vadd.f32 %v1559, %v1039
      %v1608 = vadd.f32 %v1559, %v1044
      %v1609 = vadd.f32 %v1559, %v1047
      %v1610 = vadd.f32 %v1559, %v1052
      %v1611 = vadd.f32 %v1559, %v1055
      %v1612 = vadd.f32 %v1563, %v1060
      %v1613 = vadd.f32 %v1563, %v1063
      %v1614 = vadd.f32 %v1563, %v1068
      %v1615 = vadd.f32 %v1563, %v1071
      %v1616 = vadd.f32 %v1563, %v1076
      %v1617 = vadd.f32 %v1563, %v1079
      %v1618 = vadd.f32 %v1563, %v1084
      %v1619 = vadd.f32 %v1563, %v1087
      %v1620 = vadd.f32 %v1563, %v1092
      %v1621 = vadd.f32 %v1563, %v1095
      %v1622 = vadd.f32 %v1563, %v1100
      %v1623 = vadd.f32 %v1563, %v1103
      %v1624 = vadd.f32 %v1563, %v1108
      %v1625 = vadd.f32 %v1563, %v1111
      %v1626 = vadd.f32 %v1563, %v1116
      %v1627 = vadd.f32 %v1563, %v1119
      %v1628 = vadd.f32 %v1567, %v1124
      %v1629 = vadd.f32 %v1567, %v1127
      %v1630 = vadd.f32 %v1567, %v1132
      %v1631 = vadd.f32 %v1567, %v1135
      %v1632 = vadd.f32 %v1567, %v1140
      %v1633 = vadd.f32 %v1567, %v1143
      %v1634 = vadd.f32 %v1567, %v1148
      %v1635 = vadd.f32 %v1567, %v1151
      %v1636 = vadd.f32 %v1567, %v1156
      %v1637 = vadd.f32 %v1567, %v1159
      %v1638 = vadd.f32 %v1567, %v1164
      %v1639 = vadd.f32 %v1567, %v1167
      %v1640 = vadd.f32 %v1567, %v1172
      %v1641 = vadd.f32 %v1567, %v1175
      %v1642 = vadd.f32 %v1567, %v1180
      %v1643 = vadd.f32 %v1567, %v1183
      %v1644 = vadd.f32 %v1571, %v1188
      %v1645 = vadd.f32 %v1571, %v1191
      %v1646 = vadd.f32 %v1571, %v1196
      %v1647 = vadd.f32 %v1571, %v1199
      %v1648 = vadd.f32 %v1571, %v1204
      %v1649 = vadd.f32 %v1571, %v1207
      %v1650 = vadd.f32 %v1571, %v1212
      %v1651 = vadd.f32 %v1571, %v1215
      %v1652 = vadd.f32 %v1571, %v1220
      %v1653 = vadd.f32 %v1571, %v1223
      %v1654 = vadd.f32 %v1571, %v1228
      %v1655 = vadd.f32 %v1571, %v1231
      %v1656 = vadd.f32 %v1571, %v1236
      %v1657 = vadd.f32 %v1571, %v1239
      %v1658 = vadd.f32 %v1571, %v1244
      %v1659 = vadd.f32 %v1571, %v1247
      %v1660 = vadd.f32 %v1575, %v1252
      %v1661 = vadd.f32 %v1575, %v1255
      %v1662 = vadd.f32 %v1575, %v1260
      %v1663 = vadd.f32 %v1575, %v1263
      %v1664 = vadd.f32 %v1575, %v1268
      %v1665 = vadd.f32 %v1575, %v1271
      %v1666 = vadd.f32 %v1575, %v1276
      %v1667 = vadd.f32 %v1575, %v1279
      %v1668 = vadd.f32 %v1575, %v1284
      %v1669 = vadd.f32 %v1575, %v1287
      %v1670 = vadd.f32 %v1575, %v1292
      %v1671 = vadd.f32 %v1575, %v1295
      %v1672 = vadd.f32 %v1575, %v1300
      %v1673 = vadd.f32 %v1575, %v1303
      %v1674 = vadd.f32 %v1575, %v1308
      %v1675 = vadd.f32 %v1575, %v1311
      %v1676 = vadd.f32 %v1579, %v1316
      %v1677 = vadd.f32 %v1579, %v1319
      %v1678 = vadd.f32 %v1579, %v1324
      %v1679 = vadd.f32 %v1579, %v1327
      %v1680 = vadd.f32 %v1579, %v1332
      %v1681 = vadd.f32 %v1579, %v1335
      %v1682 = vadd.f32 %v1579, %v1340
      %v1683 = vadd.f32 %v1579, %v1343
      %v1684 = vadd.f32 %v1579, %v1348
      %v1685 = vadd.f32 %v1579, %v1351
      %v1686 = vadd.f32 %v1579, %v1356
      %v1687 = vadd.f32 %v1579, %v1359
      %v1688 = vadd.f32 %v1579, %v1364
      %v1689 = vadd.f32 %v1579, %v1367
      %v1690 = vadd.f32 %v1579, %v1372
      %v1691 = vadd.f32 %v1579, %v1375
      %v1692 = vadd.f32 %v1583, %v1380
      %v1693 = vadd.f32 %v1583, %v1383
      %v1694 = vadd.f32 %v1583, %v1388
      %v1695 = vadd.f32 %v1583, %v1391
      %v1696 = vadd.f32 %v1583, %v1396
      %v1697 = vadd.f32 %v1583, %v1399
      %v1698 = vadd.f32 %v1583, %v1404
      %v1699 = vadd.f32 %v1583, %v1407
      %v1700 = vadd.f32 %v1583, %v1412
      %v1701 = vadd.f32 %v1583, %v1415
      %v1702 = vadd.f32 %v1583, %v1420
      %v1703 = vadd.f32 %v1583, %v1423
      %v1704 = vadd.f32 %v1583, %v1428
      %v1705 = vadd.f32 %v1583, %v1431
      %v1706 = vadd.f32 %v1583, %v1436
      %v1707 = vadd.f32 %v1583, %v1439
      %v1708 = vadd.f32 %v1587, %v1444
      %v1709 = vadd.f32 %v1587, %v1447
      %v1710 = vadd.f32 %v1587, %v1452
      %v1711 = vadd.f32 %v1587, %v1455
      %v1712 = vadd.f32 %v1587, %v1460
      %v1713 = vadd.f32 %v1587, %v1463
      %v1714 = vadd.f32 %v1587, %v1468
      %v1715 = vadd.f32 %v1587, %v1471
      %v1716 = vadd.f32 %v1587, %v1476
      %v1717 = vadd.f32 %v1587, %v1479
      %v1718 = vadd.f32 %v1587, %v1484
      %v1719 = vadd.f32 %v1587, %v1487
      %v1720 = vadd.f32 %v1587, %v1492
      %v1721 = vadd.f32 %v1587, %v1495
      %v1722 = vadd.f32 %v1587, %v1500
      %v1723 = vadd.f32 %v1587, %v1503
      %v1724 = vld [vmem:[%s7] sm:$0x1]
      %v1726 = vlaneseq
      %v1727 = vshrl.u32 %v1726, 7
      %v1728 = vsub.s32 0, %v1727
      %v1729 = vrot.slane %v1724, %v1728
      %v1731 = vadd.f32 %v1596, %v1729
      %v1732 = vadd.f32 %v1597, %v1729
      %v1733 = vadd.f32 %v1598, %v1729
      %v1734 = vadd.f32 %v1599, %v1729
      %v1735 = vadd.f32 %v1600, %v1729
      %v1736 = vadd.f32 %v1601, %v1729
      %v1737 = vadd.f32 %v1602, %v1729
      %v1738 = vadd.f32 %v1603, %v1729
      %v1739 = vadd.f32 %v1604, %v1729
      %v1740 = vadd.f32 %v1605, %v1729
      %v1741 = vadd.f32 %v1606, %v1729
      %v1742 = vadd.f32 %v1607, %v1729
      %v1743 = vadd.f32 %v1608, %v1729
      %v1744 = vadd.f32 %v1609, %v1729
      %v1745 = vadd.f32 %v1610, %v1729
      %v1746 = vadd.f32 %v1611, %v1729
      %v1747 = vadd.f32 %v1612, %v1729
      %v1748 = vadd.f32 %v1613, %v1729
      %v1749 = vadd.f32 %v1614, %v1729
      %v1750 = vadd.f32 %v1615, %v1729
      %v1751 = vadd.f32 %v1616, %v1729
      %v1752 = vadd.f32 %v1617, %v1729
      %v1753 = vadd.f32 %v1618, %v1729
      %v1754 = vadd.f32 %v1619, %v1729
      %v1755 = vadd.f32 %v1620, %v1729
      %v1756 = vadd.f32 %v1621, %v1729
      %v1757 = vadd.f32 %v1622, %v1729
      %v1758 = vadd.f32 %v1623, %v1729
      %v1759 = vadd.f32 %v1624, %v1729
      %v1760 = vadd.f32 %v1625, %v1729
      %v1761 = vadd.f32 %v1626, %v1729
      %v1762 = vadd.f32 %v1627, %v1729
      %v1763 = vadd.f32 %v1628, %v1729
      %v1764 = vadd.f32 %v1629, %v1729
      %v1765 = vadd.f32 %v1630, %v1729
      %v1766 = vadd.f32 %v1631, %v1729
      %v1767 = vadd.f32 %v1632, %v1729
      %v1768 = vadd.f32 %v1633, %v1729
      %v1769 = vadd.f32 %v1634, %v1729
      %v1770 = vadd.f32 %v1635, %v1729
      %v1771 = vadd.f32 %v1636, %v1729
      %v1772 = vadd.f32 %v1637, %v1729
      %v1773 = vadd.f32 %v1638, %v1729
      %v1774 = vadd.f32 %v1639, %v1729
      %v1775 = vadd.f32 %v1640, %v1729
      %v1776 = vadd.f32 %v1641, %v1729
      %v1777 = vadd.f32 %v1642, %v1729
      %v1778 = vadd.f32 %v1643, %v1729
      %v1779 = vadd.f32 %v1644, %v1729
      %v1780 = vadd.f32 %v1645, %v1729
      %v1781 = vadd.f32 %v1646, %v1729
      %v1782 = vadd.f32 %v1647, %v1729
      %v1783 = vadd.f32 %v1648, %v1729
      %v1784 = vadd.f32 %v1649, %v1729
      %v1785 = vadd.f32 %v1650, %v1729
      %v1786 = vadd.f32 %v1651, %v1729
      %v1787 = vadd.f32 %v1652, %v1729
      %v1788 = vadd.f32 %v1653, %v1729
      %v1789 = vadd.f32 %v1654, %v1729
      %v1790 = vadd.f32 %v1655, %v1729
      %v1791 = vadd.f32 %v1656, %v1729
      %v1792 = vadd.f32 %v1657, %v1729
      %v1793 = vadd.f32 %v1658, %v1729
      %v1794 = vadd.f32 %v1659, %v1729
      %v1795 = vadd.f32 %v1660, %v1729
      %v1796 = vadd.f32 %v1661, %v1729
      %v1797 = vadd.f32 %v1662, %v1729
      %v1798 = vadd.f32 %v1663, %v1729
      %v1799 = vadd.f32 %v1664, %v1729
      %v1800 = vadd.f32 %v1665, %v1729
      %v1801 = vadd.f32 %v1666, %v1729
      %v1802 = vadd.f32 %v1667, %v1729
      %v1803 = vadd.f32 %v1668, %v1729
      %v1804 = vadd.f32 %v1669, %v1729
      %v1805 = vadd.f32 %v1670, %v1729
      %v1806 = vadd.f32 %v1671, %v1729
      %v1807 = vadd.f32 %v1672, %v1729
      %v1808 = vadd.f32 %v1673, %v1729
      %v1809 = vadd.f32 %v1674, %v1729
      %v1810 = vadd.f32 %v1675, %v1729
      %v1811 = vadd.f32 %v1676, %v1729
      %v1812 = vadd.f32 %v1677, %v1729
      %v1813 = vadd.f32 %v1678, %v1729
      %v1814 = vadd.f32 %v1679, %v1729
      %v1815 = vadd.f32 %v1680, %v1729
      %v1816 = vadd.f32 %v1681, %v1729
      %v1817 = vadd.f32 %v1682, %v1729
      %v1818 = vadd.f32 %v1683, %v1729
      %v1819 = vadd.f32 %v1684, %v1729
      %v1820 = vadd.f32 %v1685, %v1729
      %v1821 = vadd.f32 %v1686, %v1729
      %v1822 = vadd.f32 %v1687, %v1729
      %v1823 = vadd.f32 %v1688, %v1729
      %v1824 = vadd.f32 %v1689, %v1729
      %v1825 = vadd.f32 %v1690, %v1729
      %v1826 = vadd.f32 %v1691, %v1729
      %v1827 = vadd.f32 %v1692, %v1729
      %v1828 = vadd.f32 %v1693, %v1729
      %v1829 = vadd.f32 %v1694, %v1729
      %v1830 = vadd.f32 %v1695, %v1729
      %v1831 = vadd.f32 %v1696, %v1729
      %v1832 = vadd.f32 %v1697, %v1729
      %v1833 = vadd.f32 %v1698, %v1729
      %v1834 = vadd.f32 %v1699, %v1729
      %v1835 = vadd.f32 %v1700, %v1729
      %v1836 = vadd.f32 %v1701, %v1729
      %v1837 = vadd.f32 %v1702, %v1729
      %v1838 = vadd.f32 %v1703, %v1729
      %v1839 = vadd.f32 %v1704, %v1729
      %v1840 = vadd.f32 %v1705, %v1729
      %v1841 = vadd.f32 %v1706, %v1729
      %v1842 = vadd.f32 %v1707, %v1729
      %v1843 = vadd.f32 %v1708, %v1729
      %v1844 = vadd.f32 %v1709, %v1729
      %v1845 = vadd.f32 %v1710, %v1729
      %v1846 = vadd.f32 %v1711, %v1729
      %v1847 = vadd.f32 %v1712, %v1729
      %v1848 = vadd.f32 %v1713, %v1729
      %v1849 = vadd.f32 %v1714, %v1729
      %v1850 = vadd.f32 %v1715, %v1729
      %v1851 = vadd.f32 %v1716, %v1729
      %v1852 = vadd.f32 %v1717, %v1729
      %v1853 = vadd.f32 %v1718, %v1729
      %v1854 = vadd.f32 %v1719, %v1729
      %v1855 = vadd.f32 %v1720, %v1729
      %v1856 = vadd.f32 %v1721, %v1729
      %v1857 = vadd.f32 %v1722, %v1729
      %v1858 = vadd.f32 %v1723, %v1729
      %v1859 = vpack.c.bf16 %v1732, %v1731
      %v1860 = vpack.c.bf16 %v1734, %v1733
      %v1861 = vpack.c.bf16 %v1736, %v1735
      %v1862 = vpack.c.bf16 %v1738, %v1737
      %v1863 = vpack.c.bf16 %v1740, %v1739
      %v1864 = vpack.c.bf16 %v1742, %v1741
      %v1865 = vpack.c.bf16 %v1744, %v1743
      %v1866 = vpack.c.bf16 %v1746, %v1745
      %v1867 = vpack.c.bf16 %v1748, %v1747
      %v1868 = vpack.c.bf16 %v1750, %v1749
      %v1869 = vpack.c.bf16 %v1752, %v1751
      %v1870 = vpack.c.bf16 %v1754, %v1753
      %v1871 = vpack.c.bf16 %v1756, %v1755
      %v1872 = vpack.c.bf16 %v1758, %v1757
      %v1873 = vpack.c.bf16 %v1760, %v1759
      %v1874 = vpack.c.bf16 %v1762, %v1761
      %v1875 = vpack.c.bf16 %v1764, %v1763
      %v1876 = vpack.c.bf16 %v1766, %v1765
      %v1877 = vpack.c.bf16 %v1768, %v1767
      %v1878 = vpack.c.bf16 %v1770, %v1769
      %v1879 = vpack.c.bf16 %v1772, %v1771
      %v1880 = vpack.c.bf16 %v1774, %v1773
      %v1881 = vpack.c.bf16 %v1776, %v1775
      %v1882 = vpack.c.bf16 %v1778, %v1777
      %v1883 = vpack.c.bf16 %v1780, %v1779
      %v1884 = vpack.c.bf16 %v1782, %v1781
      %v1885 = vpack.c.bf16 %v1784, %v1783
      %v1886 = vpack.c.bf16 %v1786, %v1785
      %v1887 = vpack.c.bf16 %v1788, %v1787
      %v1888 = vpack.c.bf16 %v1790, %v1789
      %v1889 = vpack.c.bf16 %v1792, %v1791
      %v1890 = vpack.c.bf16 %v1794, %v1793
      %v1891 = vpack.c.bf16 %v1796, %v1795
      %v1892 = vpack.c.bf16 %v1798, %v1797
      %v1893 = vpack.c.bf16 %v1800, %v1799
      %v1894 = vpack.c.bf16 %v1802, %v1801
      %v1895 = vpack.c.bf16 %v1804, %v1803
      %v1896 = vpack.c.bf16 %v1806, %v1805
      %v1897 = vpack.c.bf16 %v1808, %v1807
      %v1898 = vpack.c.bf16 %v1810, %v1809
      %v1899 = vpack.c.bf16 %v1812, %v1811
      %v1900 = vpack.c.bf16 %v1814, %v1813
      %v1901 = vpack.c.bf16 %v1816, %v1815
      %v1902 = vpack.c.bf16 %v1818, %v1817
      %v1903 = vpack.c.bf16 %v1820, %v1819
      %v1904 = vpack.c.bf16 %v1822, %v1821
      %v1905 = vpack.c.bf16 %v1824, %v1823
      %v1906 = vpack.c.bf16 %v1826, %v1825
      %v1907 = vpack.c.bf16 %v1828, %v1827
      %v1908 = vpack.c.bf16 %v1830, %v1829
      %v1909 = vpack.c.bf16 %v1832, %v1831
      %v1910 = vpack.c.bf16 %v1834, %v1833
      %v1911 = vpack.c.bf16 %v1836, %v1835
      %v1912 = vpack.c.bf16 %v1838, %v1837
      %v1913 = vpack.c.bf16 %v1840, %v1839
      %v1914 = vpack.c.bf16 %v1842, %v1841
      %v1915 = vpack.c.bf16 %v1844, %v1843
      %v1916 = vpack.c.bf16 %v1846, %v1845
      %v1917 = vpack.c.bf16 %v1848, %v1847
      %v1918 = vpack.c.bf16 %v1850, %v1849
      %v1919 = vpack.c.bf16 %v1852, %v1851
      %v1920 = vpack.c.bf16 %v1854, %v1853
      %v1921 = vpack.c.bf16 %v1856, %v1855
      %v1922 = vpack.c.bf16 %v1858, %v1857
      %v1923 = vtanh.bf16.pop %v1859
      %v1924 = vtanh.bf16.pop %v1860
      %v1925 = vtanh.bf16.pop %v1861
      %v1926 = vtanh.bf16.pop %v1862
      %v1927 = vtanh.bf16.pop %v1863
      %v1928 = vtanh.bf16.pop %v1864
      %v1929 = vtanh.bf16.pop %v1865
      %v1930 = vtanh.bf16.pop %v1866
      %v1931 = vtanh.bf16.pop %v1867
      %v1932 = vtanh.bf16.pop %v1868
      %v1933 = vtanh.bf16.pop %v1869
      %v1934 = vtanh.bf16.pop %v1870
      %v1935 = vtanh.bf16.pop %v1871
      %v1936 = vtanh.bf16.pop %v1872
      %v1937 = vtanh.bf16.pop %v1873
      %v1938 = vtanh.bf16.pop %v1874
      %v1939 = vtanh.bf16.pop %v1875
      %v1940 = vtanh.bf16.pop %v1876
      %v1941 = vtanh.bf16.pop %v1877
      %v1942 = vtanh.bf16.pop %v1878
      %v1943 = vtanh.bf16.pop %v1879
      %v1944 = vtanh.bf16.pop %v1880
      %v1945 = vtanh.bf16.pop %v1881
      %v1946 = vtanh.bf16.pop %v1882
      %v1947 = vtanh.bf16.pop %v1883
      %v1948 = vtanh.bf16.pop %v1884
      %v1949 = vtanh.bf16.pop %v1885
      %v1950 = vtanh.bf16.pop %v1886
      %v1951 = vtanh.bf16.pop %v1887
      %v1952 = vtanh.bf16.pop %v1888
      %v1953 = vtanh.bf16.pop %v1889
      %v1954 = vtanh.bf16.pop %v1890
      %v1955 = vtanh.bf16.pop %v1891
      %v1956 = vtanh.bf16.pop %v1892
      %v1957 = vtanh.bf16.pop %v1893
      %v1958 = vtanh.bf16.pop %v1894
      %v1959 = vtanh.bf16.pop %v1895
      %v1960 = vtanh.bf16.pop %v1896
      %v1961 = vtanh.bf16.pop %v1897
      %v1962 = vtanh.bf16.pop %v1898
      %v1963 = vtanh.bf16.pop %v1899
      %v1964 = vtanh.bf16.pop %v1900
      %v1965 = vtanh.bf16.pop %v1901
      %v1966 = vtanh.bf16.pop %v1902
      %v1967 = vtanh.bf16.pop %v1903
      %v1968 = vtanh.bf16.pop %v1904
      %v1969 = vtanh.bf16.pop %v1905
      %v1970 = vtanh.bf16.pop %v1906
      %v1971 = vtanh.bf16.pop %v1907
      %v1972 = vtanh.bf16.pop %v1908
      %v1973 = vtanh.bf16.pop %v1909
      %v1974 = vtanh.bf16.pop %v1910
      %v1975 = vtanh.bf16.pop %v1911
      %v1976 = vtanh.bf16.pop %v1912
      %v1977 = vtanh.bf16.pop %v1913
      %v1978 = vtanh.bf16.pop %v1914
      %v1979 = vtanh.bf16.pop %v1915
      %v1980 = vtanh.bf16.pop %v1916
      %v1981 = vtanh.bf16.pop %v1917
      %v1982 = vtanh.bf16.pop %v1918
      %v1983 = vtanh.bf16.pop %v1919
      %v1984 = vtanh.bf16.pop %v1920
      %v1985 = vtanh.bf16.pop %v1921
      %v1986 = vtanh.bf16.pop %v1922
      %v1987 = vunpack.c.l.bf16 %v1923
      %v1988 = vunpack.c.h.bf16 %v1923
      %v1989 = vunpack.c.l.bf16 %v1924
      %v1990 = vunpack.c.h.bf16 %v1924
      %v1991 = vunpack.c.l.bf16 %v1925
      %v1992 = vunpack.c.h.bf16 %v1925
      %v1993 = vunpack.c.l.bf16 %v1926
      %v1994 = vunpack.c.h.bf16 %v1926
      %v1995 = vunpack.c.l.bf16 %v1927
      %v1996 = vunpack.c.h.bf16 %v1927
      %v1997 = vunpack.c.l.bf16 %v1928
      %v1998 = vunpack.c.h.bf16 %v1928
      %v1999 = vunpack.c.l.bf16 %v1929
      %v2000 = vunpack.c.h.bf16 %v1929
      %v2001 = vunpack.c.l.bf16 %v1930
      %v2002 = vunpack.c.h.bf16 %v1930
      %v2003 = vunpack.c.l.bf16 %v1931
      %v2004 = vunpack.c.h.bf16 %v1931
      %v2005 = vunpack.c.l.bf16 %v1932
      %v2006 = vunpack.c.h.bf16 %v1932
      %v2007 = vunpack.c.l.bf16 %v1933
      %v2008 = vunpack.c.h.bf16 %v1933
      %v2009 = vunpack.c.l.bf16 %v1934
      %v2010 = vunpack.c.h.bf16 %v1934
      %v2011 = vunpack.c.l.bf16 %v1935
      %v2012 = vunpack.c.h.bf16 %v1935
      %v2013 = vunpack.c.l.bf16 %v1936
      %v2014 = vunpack.c.h.bf16 %v1936
      %v2015 = vunpack.c.l.bf16 %v1937
      %v2016 = vunpack.c.h.bf16 %v1937
      %v2017 = vunpack.c.l.bf16 %v1938
      %v2018 = vunpack.c.h.bf16 %v1938
      %v2019 = vunpack.c.l.bf16 %v1939
      %v2020 = vunpack.c.h.bf16 %v1939
      %v2021 = vunpack.c.l.bf16 %v1940
      %v2022 = vunpack.c.h.bf16 %v1940
      %v2023 = vunpack.c.l.bf16 %v1941
      %v2024 = vunpack.c.h.bf16 %v1941
      %v2025 = vunpack.c.l.bf16 %v1942
      %v2026 = vunpack.c.h.bf16 %v1942
      %v2027 = vunpack.c.l.bf16 %v1943
      %v2028 = vunpack.c.h.bf16 %v1943
      %v2029 = vunpack.c.l.bf16 %v1944
      %v2030 = vunpack.c.h.bf16 %v1944
      %v2031 = vunpack.c.l.bf16 %v1945
      %v2032 = vunpack.c.h.bf16 %v1945
      %v2033 = vunpack.c.l.bf16 %v1946
      %v2034 = vunpack.c.h.bf16 %v1946
      %v2035 = vunpack.c.l.bf16 %v1947
      %v2036 = vunpack.c.h.bf16 %v1947
      %v2037 = vunpack.c.l.bf16 %v1948
      %v2038 = vunpack.c.h.bf16 %v1948
      %v2039 = vunpack.c.l.bf16 %v1949
      %v2040 = vunpack.c.h.bf16 %v1949
      %v2041 = vunpack.c.l.bf16 %v1950
      %v2042 = vunpack.c.h.bf16 %v1950
      %v2043 = vunpack.c.l.bf16 %v1951
      %v2044 = vunpack.c.h.bf16 %v1951
      %v2045 = vunpack.c.l.bf16 %v1952
      %v2046 = vunpack.c.h.bf16 %v1952
      %v2047 = vunpack.c.l.bf16 %v1953
      %v2048 = vunpack.c.h.bf16 %v1953
      %v2049 = vunpack.c.l.bf16 %v1954
      %v2050 = vunpack.c.h.bf16 %v1954
      %v2051 = vunpack.c.l.bf16 %v1955
      %v2052 = vunpack.c.h.bf16 %v1955
      %v2053 = vunpack.c.l.bf16 %v1956
      %v2054 = vunpack.c.h.bf16 %v1956
      %v2055 = vunpack.c.l.bf16 %v1957
      %v2056 = vunpack.c.h.bf16 %v1957
      %v2057 = vunpack.c.l.bf16 %v1958
      %v2058 = vunpack.c.h.bf16 %v1958
      %v2059 = vunpack.c.l.bf16 %v1959
      %v2060 = vunpack.c.h.bf16 %v1959
      %v2061 = vunpack.c.l.bf16 %v1960
      %v2062 = vunpack.c.h.bf16 %v1960
      %v2063 = vunpack.c.l.bf16 %v1961
      %v2064 = vunpack.c.h.bf16 %v1961
      %v2065 = vunpack.c.l.bf16 %v1962
      %v2066 = vunpack.c.h.bf16 %v1962
      %v2067 = vunpack.c.l.bf16 %v1963
      %v2068 = vunpack.c.h.bf16 %v1963
      %v2069 = vunpack.c.l.bf16 %v1964
      %v2070 = vunpack.c.h.bf16 %v1964
      %v2071 = vunpack.c.l.bf16 %v1965
      %v2072 = vunpack.c.h.bf16 %v1965
      %v2073 = vunpack.c.l.bf16 %v1966
      %v2074 = vunpack.c.h.bf16 %v1966
      %v2075 = vunpack.c.l.bf16 %v1967
      %v2076 = vunpack.c.h.bf16 %v1967
      %v2077 = vunpack.c.l.bf16 %v1968
      %v2078 = vunpack.c.h.bf16 %v1968
      %v2079 = vunpack.c.l.bf16 %v1969
      %v2080 = vunpack.c.h.bf16 %v1969
      %v2081 = vunpack.c.l.bf16 %v1970
      %v2082 = vunpack.c.h.bf16 %v1970
      %v2083 = vunpack.c.l.bf16 %v1971
      %v2084 = vunpack.c.h.bf16 %v1971
      %v2085 = vunpack.c.l.bf16 %v1972
      %v2086 = vunpack.c.h.bf16 %v1972
      %v2087 = vunpack.c.l.bf16 %v1973
      %v2088 = vunpack.c.h.bf16 %v1973
      %v2089 = vunpack.c.l.bf16 %v1974
      %v2090 = vunpack.c.h.bf16 %v1974
      %v2091 = vunpack.c.l.bf16 %v1975
      %v2092 = vunpack.c.h.bf16 %v1975
      %v2093 = vunpack.c.l.bf16 %v1976
      %v2094 = vunpack.c.h.bf16 %v1976
      %v2095 = vunpack.c.l.bf16 %v1977
      %v2096 = vunpack.c.h.bf16 %v1977
      %v2097 = vunpack.c.l.bf16 %v1978
      %v2098 = vunpack.c.h.bf16 %v1978
      %v2099 = vunpack.c.l.bf16 %v1979
      %v2100 = vunpack.c.h.bf16 %v1979
      %v2101 = vunpack.c.l.bf16 %v1980
      %v2102 = vunpack.c.h.bf16 %v1980
      %v2103 = vunpack.c.l.bf16 %v1981
      %v2104 = vunpack.c.h.bf16 %v1981
      %v2105 = vunpack.c.l.bf16 %v1982
      %v2106 = vunpack.c.h.bf16 %v1982
      %v2107 = vunpack.c.l.bf16 %v1983
      %v2108 = vunpack.c.h.bf16 %v1983
      %v2109 = vunpack.c.l.bf16 %v1984
      %v2110 = vunpack.c.h.bf16 %v1984
      %v2111 = vunpack.c.l.bf16 %v1985
      %v2112 = vunpack.c.h.bf16 %v1985
      %v2113 = vunpack.c.l.bf16 %v1986
      %v2114 = vunpack.c.h.bf16 %v1986
      %v2115 = vld [vmem:[%s8] sm:$0x1]
      %v2117 = vlaneseq
      %v2118 = vshrl.u32 %v2117, 7
      %v2119 = vsub.s32 0, %v2118
      %v2120 = vrot.slane %v2115, %v2119
      %v2122 = vmul.f32 %v1987, %v2120
      %v2123 = vmul.f32 %v1988, %v2120
      %v2124 = vmul.f32 %v1989, %v2120
      %v2125 = vmul.f32 %v1990, %v2120
      %v2126 = vmul.f32 %v1991, %v2120
      %v2127 = vmul.f32 %v1992, %v2120
      %v2128 = vmul.f32 %v1993, %v2120
      %v2129 = vmul.f32 %v1994, %v2120
      %v2130 = vmul.f32 %v1995, %v2120
      %v2131 = vmul.f32 %v1996, %v2120
      %v2132 = vmul.f32 %v1997, %v2120
      %v2133 = vmul.f32 %v1998, %v2120
      %v2134 = vmul.f32 %v1999, %v2120
      %v2135 = vmul.f32 %v2000, %v2120
      %v2136 = vmul.f32 %v2001, %v2120
      %v2137 = vmul.f32 %v2002, %v2120
      %v2138 = vmul.f32 %v2003, %v2120
      %v2139 = vmul.f32 %v2004, %v2120
      %v2140 = vmul.f32 %v2005, %v2120
      %v2141 = vmul.f32 %v2006, %v2120
      %v2142 = vmul.f32 %v2007, %v2120
      %v2143 = vmul.f32 %v2008, %v2120
      %v2144 = vmul.f32 %v2009, %v2120
      %v2145 = vmul.f32 %v2010, %v2120
      %v2146 = vmul.f32 %v2011, %v2120
      %v2147 = vmul.f32 %v2012, %v2120
      %v2148 = vmul.f32 %v2013, %v2120
      %v2149 = vmul.f32 %v2014, %v2120
      %v2150 = vmul.f32 %v2015, %v2120
      %v2151 = vmul.f32 %v2016, %v2120
      %v2152 = vmul.f32 %v2017, %v2120
      %v2153 = vmul.f32 %v2018, %v2120
      %v2154 = vmul.f32 %v2019, %v2120
      %v2155 = vmul.f32 %v2020, %v2120
      %v2156 = vmul.f32 %v2021, %v2120
      %v2157 = vmul.f32 %v2022, %v2120
      %v2158 = vmul.f32 %v2023, %v2120
      %v2159 = vmul.f32 %v2024, %v2120
      %v2160 = vmul.f32 %v2025, %v2120
      %v2161 = vmul.f32 %v2026, %v2120
      %v2162 = vmul.f32 %v2027, %v2120
      %v2163 = vmul.f32 %v2028, %v2120
      %v2164 = vmul.f32 %v2029, %v2120
      %v2165 = vmul.f32 %v2030, %v2120
      %v2166 = vmul.f32 %v2031, %v2120
      %v2167 = vmul.f32 %v2032, %v2120
      %v2168 = vmul.f32 %v2033, %v2120
      %v2169 = vmul.f32 %v2034, %v2120
      %v2170 = vmul.f32 %v2035, %v2120
      %v2171 = vmul.f32 %v2036, %v2120
      %v2172 = vmul.f32 %v2037, %v2120
      %v2173 = vmul.f32 %v2038, %v2120
      %v2174 = vmul.f32 %v2039, %v2120
      %v2175 = vmul.f32 %v2040, %v2120
      %v2176 = vmul.f32 %v2041, %v2120
      %v2177 = vmul.f32 %v2042, %v2120
      %v2178 = vmul.f32 %v2043, %v2120
      %v2179 = vmul.f32 %v2044, %v2120
      %v2180 = vmul.f32 %v2045, %v2120
      %v2181 = vmul.f32 %v2046, %v2120
      %v2182 = vmul.f32 %v2047, %v2120
      %v2183 = vmul.f32 %v2048, %v2120
      %v2184 = vmul.f32 %v2049, %v2120
      %v2185 = vmul.f32 %v2050, %v2120
      %v2186 = vmul.f32 %v2051, %v2120
      %v2187 = vmul.f32 %v2052, %v2120
      %v2188 = vmul.f32 %v2053, %v2120
      %v2189 = vmul.f32 %v2054, %v2120
      %v2190 = vmul.f32 %v2055, %v2120
      %v2191 = vmul.f32 %v2056, %v2120
      %v2192 = vmul.f32 %v2057, %v2120
      %v2193 = vmul.f32 %v2058, %v2120
      %v2194 = vmul.f32 %v2059, %v2120
      %v2195 = vmul.f32 %v2060, %v2120
      %v2196 = vmul.f32 %v2061, %v2120
      %v2197 = vmul.f32 %v2062, %v2120
      %v2198 = vmul.f32 %v2063, %v2120
      %v2199 = vmul.f32 %v2064, %v2120
      %v2200 = vmul.f32 %v2065, %v2120
      %v2201 = vmul.f32 %v2066, %v2120
      %v2202 = vmul.f32 %v2067, %v2120
      %v2203 = vmul.f32 %v2068, %v2120
      %v2204 = vmul.f32 %v2069, %v2120
      %v2205 = vmul.f32 %v2070, %v2120
      %v2206 = vmul.f32 %v2071, %v2120
      %v2207 = vmul.f32 %v2072, %v2120
      %v2208 = vmul.f32 %v2073, %v2120
      %v2209 = vmul.f32 %v2074, %v2120
      %v2210 = vmul.f32 %v2075, %v2120
      %v2211 = vmul.f32 %v2076, %v2120
      %v2212 = vmul.f32 %v2077, %v2120
      %v2213 = vmul.f32 %v2078, %v2120
      %v2214 = vmul.f32 %v2079, %v2120
      %v2215 = vmul.f32 %v2080, %v2120
      %v2216 = vmul.f32 %v2081, %v2120
      %v2217 = vmul.f32 %v2082, %v2120
      %v2218 = vmul.f32 %v2083, %v2120
      %v2219 = vmul.f32 %v2084, %v2120
      %v2220 = vmul.f32 %v2085, %v2120
      %v2221 = vmul.f32 %v2086, %v2120
      %v2222 = vmul.f32 %v2087, %v2120
      %v2223 = vmul.f32 %v2088, %v2120
      %v2224 = vmul.f32 %v2089, %v2120
      %v2225 = vmul.f32 %v2090, %v2120
      %v2226 = vmul.f32 %v2091, %v2120
      %v2227 = vmul.f32 %v2092, %v2120
      %v2228 = vmul.f32 %v2093, %v2120
      %v2229 = vmul.f32 %v2094, %v2120
      %v2230 = vmul.f32 %v2095, %v2120
      %v2231 = vmul.f32 %v2096, %v2120
      %v2232 = vmul.f32 %v2097, %v2120
      %v2233 = vmul.f32 %v2098, %v2120
      %v2234 = vmul.f32 %v2099, %v2120
      %v2235 = vmul.f32 %v2100, %v2120
      %v2236 = vmul.f32 %v2101, %v2120
      %v2237 = vmul.f32 %v2102, %v2120
      %v2238 = vmul.f32 %v2103, %v2120
      %v2239 = vmul.f32 %v2104, %v2120
      %v2240 = vmul.f32 %v2105, %v2120
      %v2241 = vmul.f32 %v2106, %v2120
      %v2242 = vmul.f32 %v2107, %v2120
      %v2243 = vmul.f32 %v2108, %v2120
      %v2244 = vmul.f32 %v2109, %v2120
      %v2245 = vmul.f32 %v2110, %v2120
      %v2246 = vmul.f32 %v2111, %v2120
      %v2247 = vmul.f32 %v2112, %v2120
      %v2248 = vmul.f32 %v2113, %v2120
      %v2249 = vmul.f32 %v2114, %v2120
      %2250 = vadd.xlane.f32.xlu0 %v2122
      %v2251 = vpop.xlane.xlu0 %2250
      %2252 = vadd.xlane.f32.xlu0 %v2123
      %v2253 = vpop.xlane.xlu0 %2252
      %2254 = vadd.xlane.f32.xlu0 %v2124
      %v2255 = vpop.xlane.xlu0 %2254
      %2256 = vadd.xlane.f32.xlu0 %v2125
      %v2257 = vpop.xlane.xlu0 %2256
      %2258 = vadd.xlane.f32.xlu0 %v2126
      %v2259 = vpop.xlane.xlu0 %2258
      %2260 = vadd.xlane.f32.xlu0 %v2127
      %v2261 = vpop.xlane.xlu0 %2260
      %2262 = vadd.xlane.f32.xlu0 %v2128
      %v2263 = vpop.xlane.xlu0 %2262
      %2264 = vadd.xlane.f32.xlu0 %v2129
      %v2265 = vpop.xlane.xlu0 %2264
      %2266 = vadd.xlane.f32.xlu0 %v2130
      %v2267 = vpop.xlane.xlu0 %2266
      %2268 = vadd.xlane.f32.xlu0 %v2131
      %v2269 = vpop.xlane.xlu0 %2268
      %2270 = vadd.xlane.f32.xlu0 %v2132
      %v2271 = vpop.xlane.xlu0 %2270
      %2272 = vadd.xlane.f32.xlu0 %v2133
      %v2273 = vpop.xlane.xlu0 %2272
      %2274 = vadd.xlane.f32.xlu0 %v2134
      %v2275 = vpop.xlane.xlu0 %2274
      %2276 = vadd.xlane.f32.xlu0 %v2135
      %v2277 = vpop.xlane.xlu0 %2276
      %2278 = vadd.xlane.f32.xlu0 %v2136
      %v2279 = vpop.xlane.xlu0 %2278
      %2280 = vadd.xlane.f32.xlu0 %v2137
      %v2281 = vpop.xlane.xlu0 %2280
      %2282 = vadd.xlane.f32.xlu0 %v2138
      %v2283 = vpop.xlane.xlu0 %2282
      %2284 = vadd.xlane.f32.xlu0 %v2139
      %v2285 = vpop.xlane.xlu0 %2284
      %2286 = vadd.xlane.f32.xlu0 %v2140
      %v2287 = vpop.xlane.xlu0 %2286
      %2288 = vadd.xlane.f32.xlu0 %v2141
      %v2289 = vpop.xlane.xlu0 %2288
      %2290 = vadd.xlane.f32.xlu0 %v2142
      %v2291 = vpop.xlane.xlu0 %2290
      %2292 = vadd.xlane.f32.xlu0 %v2143
      %v2293 = vpop.xlane.xlu0 %2292
      %2294 = vadd.xlane.f32.xlu0 %v2144
      %v2295 = vpop.xlane.xlu0 %2294
      %2296 = vadd.xlane.f32.xlu0 %v2145
      %v2297 = vpop.xlane.xlu0 %2296
      %2298 = vadd.xlane.f32.xlu0 %v2146
      %v2299 = vpop.xlane.xlu0 %2298
      %2300 = vadd.xlane.f32.xlu0 %v2147
      %v2301 = vpop.xlane.xlu0 %2300
      %2302 = vadd.xlane.f32.xlu0 %v2148
      %v2303 = vpop.xlane.xlu0 %2302
      %2304 = vadd.xlane.f32.xlu0 %v2149
      %v2305 = vpop.xlane.xlu0 %2304
      %2306 = vadd.xlane.f32.xlu0 %v2150
      %v2307 = vpop.xlane.xlu0 %2306
      %2308 = vadd.xlane.f32.xlu0 %v2151
      %v2309 = vpop.xlane.xlu0 %2308
      %2310 = vadd.xlane.f32.xlu0 %v2152
      %v2311 = vpop.xlane.xlu0 %2310
      %2312 = vadd.xlane.f32.xlu0 %v2153
      %v2313 = vpop.xlane.xlu0 %2312
      %2314 = vadd.xlane.f32.xlu0 %v2154
      %v2315 = vpop.xlane.xlu0 %2314
      %2316 = vadd.xlane.f32.xlu0 %v2155
      %v2317 = vpop.xlane.xlu0 %2316
      %2318 = vadd.xlane.f32.xlu0 %v2156
      %v2319 = vpop.xlane.xlu0 %2318
      %2320 = vadd.xlane.f32.xlu0 %v2157
      %v2321 = vpop.xlane.xlu0 %2320
      %2322 = vadd.xlane.f32.xlu0 %v2158
      %v2323 = vpop.xlane.xlu0 %2322
      %2324 = vadd.xlane.f32.xlu0 %v2159
      %v2325 = vpop.xlane.xlu0 %2324
      %2326 = vadd.xlane.f32.xlu0 %v2160
      %v2327 = vpop.xlane.xlu0 %2326
      %2328 = vadd.xlane.f32.xlu0 %v2161
      %v2329 = vpop.xlane.xlu0 %2328
      %2330 = vadd.xlane.f32.xlu0 %v2162
      %v2331 = vpop.xlane.xlu0 %2330
      %2332 = vadd.xlane.f32.xlu0 %v2163
      %v2333 = vpop.xlane.xlu0 %2332
      %2334 = vadd.xlane.f32.xlu0 %v2164
      %v2335 = vpop.xlane.xlu0 %2334
      %2336 = vadd.xlane.f32.xlu0 %v2165
      %v2337 = vpop.xlane.xlu0 %2336
      %2338 = vadd.xlane.f32.xlu0 %v2166
      %v2339 = vpop.xlane.xlu0 %2338
      %2340 = vadd.xlane.f32.xlu0 %v2167
      %v2341 = vpop.xlane.xlu0 %2340
      %2342 = vadd.xlane.f32.xlu0 %v2168
      %v2343 = vpop.xlane.xlu0 %2342
      %2344 = vadd.xlane.f32.xlu0 %v2169
      %v2345 = vpop.xlane.xlu0 %2344
      %2346 = vadd.xlane.f32.xlu0 %v2170
      %v2347 = vpop.xlane.xlu0 %2346
      %2348 = vadd.xlane.f32.xlu0 %v2171
      %v2349 = vpop.xlane.xlu0 %2348
      %2350 = vadd.xlane.f32.xlu0 %v2172
      %v2351 = vpop.xlane.xlu0 %2350
      %2352 = vadd.xlane.f32.xlu0 %v2173
      %v2353 = vpop.xlane.xlu0 %2352
      %2354 = vadd.xlane.f32.xlu0 %v2174
      %v2355 = vpop.xlane.xlu0 %2354
      %2356 = vadd.xlane.f32.xlu0 %v2175
      %v2357 = vpop.xlane.xlu0 %2356
      %2358 = vadd.xlane.f32.xlu0 %v2176
      %v2359 = vpop.xlane.xlu0 %2358
      %2360 = vadd.xlane.f32.xlu0 %v2177
      %v2361 = vpop.xlane.xlu0 %2360
      %2362 = vadd.xlane.f32.xlu0 %v2178
      %v2363 = vpop.xlane.xlu0 %2362
      %2364 = vadd.xlane.f32.xlu0 %v2179
      %v2365 = vpop.xlane.xlu0 %2364
      %2366 = vadd.xlane.f32.xlu0 %v2180
      %v2367 = vpop.xlane.xlu0 %2366
      %2368 = vadd.xlane.f32.xlu0 %v2181
      %v2369 = vpop.xlane.xlu0 %2368
      %2370 = vadd.xlane.f32.xlu0 %v2182
      %v2371 = vpop.xlane.xlu0 %2370
      %2372 = vadd.xlane.f32.xlu0 %v2183
      %v2373 = vpop.xlane.xlu0 %2372
      %2374 = vadd.xlane.f32.xlu0 %v2184
      %v2375 = vpop.xlane.xlu0 %2374
      %2376 = vadd.xlane.f32.xlu0 %v2185
      %v2377 = vpop.xlane.xlu0 %2376
      %2378 = vadd.xlane.f32.xlu0 %v2186
      %v2379 = vpop.xlane.xlu0 %2378
      %2380 = vadd.xlane.f32.xlu0 %v2187
      %v2381 = vpop.xlane.xlu0 %2380
      %2382 = vadd.xlane.f32.xlu0 %v2188
      %v2383 = vpop.xlane.xlu0 %2382
      %2384 = vadd.xlane.f32.xlu0 %v2189
      %v2385 = vpop.xlane.xlu0 %2384
      %2386 = vadd.xlane.f32.xlu0 %v2190
      %v2387 = vpop.xlane.xlu0 %2386
      %2388 = vadd.xlane.f32.xlu0 %v2191
      %v2389 = vpop.xlane.xlu0 %2388
      %2390 = vadd.xlane.f32.xlu0 %v2192
      %v2391 = vpop.xlane.xlu0 %2390
      %2392 = vadd.xlane.f32.xlu0 %v2193
      %v2393 = vpop.xlane.xlu0 %2392
      %2394 = vadd.xlane.f32.xlu0 %v2194
      %v2395 = vpop.xlane.xlu0 %2394
      %2396 = vadd.xlane.f32.xlu0 %v2195
      %v2397 = vpop.xlane.xlu0 %2396
      %2398 = vadd.xlane.f32.xlu0 %v2196
      %v2399 = vpop.xlane.xlu0 %2398
      %2400 = vadd.xlane.f32.xlu0 %v2197
      %v2401 = vpop.xlane.xlu0 %2400
      %2402 = vadd.xlane.f32.xlu0 %v2198
      %v2403 = vpop.xlane.xlu0 %2402
      %2404 = vadd.xlane.f32.xlu0 %v2199
      %v2405 = vpop.xlane.xlu0 %2404
      %2406 = vadd.xlane.f32.xlu0 %v2200
      %v2407 = vpop.xlane.xlu0 %2406
      %2408 = vadd.xlane.f32.xlu0 %v2201
      %v2409 = vpop.xlane.xlu0 %2408
      %2410 = vadd.xlane.f32.xlu0 %v2202
      %v2411 = vpop.xlane.xlu0 %2410
      %2412 = vadd.xlane.f32.xlu0 %v2203
      %v2413 = vpop.xlane.xlu0 %2412
      %2414 = vadd.xlane.f32.xlu0 %v2204
      %v2415 = vpop.xlane.xlu0 %2414
      %2416 = vadd.xlane.f32.xlu0 %v2205
      %v2417 = vpop.xlane.xlu0 %2416
      %2418 = vadd.xlane.f32.xlu0 %v2206
      %v2419 = vpop.xlane.xlu0 %2418
      %2420 = vadd.xlane.f32.xlu0 %v2207
      %v2421 = vpop.xlane.xlu0 %2420
      %2422 = vadd.xlane.f32.xlu0 %v2208
      %v2423 = vpop.xlane.xlu0 %2422
      %2424 = vadd.xlane.f32.xlu0 %v2209
      %v2425 = vpop.xlane.xlu0 %2424
      %2426 = vadd.xlane.f32.xlu0 %v2210
      %v2427 = vpop.xlane.xlu0 %2426
      %2428 = vadd.xlane.f32.xlu0 %v2211
      %v2429 = vpop.xlane.xlu0 %2428
      %2430 = vadd.xlane.f32.xlu0 %v2212
      %v2431 = vpop.xlane.xlu0 %2430
      %2432 = vadd.xlane.f32.xlu0 %v2213
      %v2433 = vpop.xlane.xlu0 %2432
      %2434 = vadd.xlane.f32.xlu0 %v2214
      %v2435 = vpop.xlane.xlu0 %2434
      %2436 = vadd.xlane.f32.xlu0 %v2215
      %v2437 = vpop.xlane.xlu0 %2436
      %2438 = vadd.xlane.f32.xlu0 %v2216
      %v2439 = vpop.xlane.xlu0 %2438
      %2440 = vadd.xlane.f32.xlu0 %v2217
      %v2441 = vpop.xlane.xlu0 %2440
      %2442 = vadd.xlane.f32.xlu0 %v2218
      %v2443 = vpop.xlane.xlu0 %2442
      %2444 = vadd.xlane.f32.xlu0 %v2219
      %v2445 = vpop.xlane.xlu0 %2444
      %2446 = vadd.xlane.f32.xlu0 %v2220
      %v2447 = vpop.xlane.xlu0 %2446
      %2448 = vadd.xlane.f32.xlu0 %v2221
      %v2449 = vpop.xlane.xlu0 %2448
      %2450 = vadd.xlane.f32.xlu0 %v2222
      %v2451 = vpop.xlane.xlu0 %2450
      %2452 = vadd.xlane.f32.xlu0 %v2223
      %v2453 = vpop.xlane.xlu0 %2452
      %2454 = vadd.xlane.f32.xlu0 %v2224
      %v2455 = vpop.xlane.xlu0 %2454
      %2456 = vadd.xlane.f32.xlu0 %v2225
      %v2457 = vpop.xlane.xlu0 %2456
      %2458 = vadd.xlane.f32.xlu0 %v2226
      %v2459 = vpop.xlane.xlu0 %2458
      %2460 = vadd.xlane.f32.xlu0 %v2227
      %v2461 = vpop.xlane.xlu0 %2460
      %2462 = vadd.xlane.f32.xlu0 %v2228
      %v2463 = vpop.xlane.xlu0 %2462
      %2464 = vadd.xlane.f32.xlu0 %v2229
      %v2465 = vpop.xlane.xlu0 %2464
      %2466 = vadd.xlane.f32.xlu0 %v2230
      %v2467 = vpop.xlane.xlu0 %2466
      %2468 = vadd.xlane.f32.xlu0 %v2231
      %v2469 = vpop.xlane.xlu0 %2468
      %2470 = vadd.xlane.f32.xlu0 %v2232
      %v2471 = vpop.xlane.xlu0 %2470
      %2472 = vadd.xlane.f32.xlu0 %v2233
      %v2473 = vpop.xlane.xlu0 %2472
      %2474 = vadd.xlane.f32.xlu0 %v2234
      %v2475 = vpop.xlane.xlu0 %2474
      %2476 = vadd.xlane.f32.xlu0 %v2235
      %v2477 = vpop.xlane.xlu0 %2476
      %2478 = vadd.xlane.f32.xlu0 %v2236
      %v2479 = vpop.xlane.xlu0 %2478
      %2480 = vadd.xlane.f32.xlu0 %v2237
      %v2481 = vpop.xlane.xlu0 %2480
      %2482 = vadd.xlane.f32.xlu0 %v2238
      %v2483 = vpop.xlane.xlu0 %2482
      %2484 = vadd.xlane.f32.xlu0 %v2239
      %v2485 = vpop.xlane.xlu0 %2484
      %2486 = vadd.xlane.f32.xlu0 %v2240
      %v2487 = vpop.xlane.xlu0 %2486
      %2488 = vadd.xlane.f32.xlu0 %v2241
      %v2489 = vpop.xlane.xlu0 %2488
      %2490 = vadd.xlane.f32.xlu0 %v2242
      %v2491 = vpop.xlane.xlu0 %2490
      %2492 = vadd.xlane.f32.xlu0 %v2243
      %v2493 = vpop.xlane.xlu0 %2492
      %2494 = vadd.xlane.f32.xlu0 %v2244
      %v2495 = vpop.xlane.xlu0 %2494
      %2496 = vadd.xlane.f32.xlu0 %v2245
      %v2497 = vpop.xlane.xlu0 %2496
      %2498 = vadd.xlane.f32.xlu0 %v2246
      %v2499 = vpop.xlane.xlu0 %2498
      %2500 = vadd.xlane.f32.xlu0 %v2247
      %v2501 = vpop.xlane.xlu0 %2500
      %2502 = vadd.xlane.f32.xlu0 %v2248
      %v2503 = vpop.xlane.xlu0 %2502
      %2504 = vadd.xlane.f32.xlu0 %v2249
      %v2505 = vpop.xlane.xlu0 %2504
      %v2506 = vld [vmem:[%s3] sm:$0xff]
      %vm2507 = vcmp.gt.f32.partialorder %v2506, 0.0
      %v2636 = vlaneseq
      %v2637 = vand.u32 %v2636, 127
      %v2638 = vlaneseq
      %v2639 = vshrl.u32 %v2638, 7
      %v2640 = vsub.s32 %v2637, %v2639
      %v2641 = vrot.slane %v2251, %v2640
      %v2642 = vadd.s32 %v2637, 4294967288
      %v2643 = vlaneseq
      %v2644 = vshrl.u32 %v2643, 7
      %v2645 = vsub.s32 %v2642, %v2644
      %v2646 = vrot.slane %v2253, %v2645
      %vm2647 = vcmask 130112
      %v2648 = vsel %vm2647, %v2646, %v2641
      %v2649 = vadd.s32 %v2637, 4294967280
      %v2650 = vlaneseq
      %v2651 = vshrl.u32 %v2650, 7
      %v2652 = vsub.s32 %v2649, %v2651
      %v2653 = vrot.slane %v2255, %v2652
      %vm2654 = vcmask 195712
      %v2655 = vsel %vm2654, %v2653, %v2648
      %v2656 = vadd.s32 %v2637, 4294967272
      %v2657 = vlaneseq
      %v2658 = vshrl.u32 %v2657, 7
      %v2659 = vsub.s32 %v2656, %v2658
      %v2660 = vrot.slane %v2257, %v2659
      %vm2661 = vcmask 261312
      %v2662 = vsel %vm2661, %v2660, %v2655
      %v2663 = vadd.s32 %v2637, 4294967264
      %v2664 = vlaneseq
      %v2665 = vshrl.u32 %v2664, 7
      %v2666 = vsub.s32 %v2663, %v2665
      %v2667 = vrot.slane %v2259, %v2666
      %vm2668 = vcmask 326912
      %v2669 = vsel %vm2668, %v2667, %v2662
      %v2670 = vadd.s32 %v2637, 4294967256
      %v2671 = vlaneseq
      %v2672 = vshrl.u32 %v2671, 7
      %v2673 = vsub.s32 %v2670, %v2672
      %v2674 = vrot.slane %v2261, %v2673
      %vm2675 = vcmask 392512
      %v2676 = vsel %vm2675, %v2674, %v2669
      %v2677 = vadd.s32 %v2637, 4294967248
      %v2678 = vlaneseq
      %v2679 = vshrl.u32 %v2678, 7
      %v2680 = vsub.s32 %v2677, %v2679
      %v2681 = vrot.slane %v2263, %v2680
      %vm2682 = vcmask 458112
      %v2683 = vsel %vm2682, %v2681, %v2676
      %v2684 = vadd.s32 %v2637, 4294967240
      %v2685 = vlaneseq
      %v2686 = vshrl.u32 %v2685, 7
      %v2687 = vsub.s32 %v2684, %v2686
      %v2688 = vrot.slane %v2265, %v2687
      %vm2689 = vcmask 523712
      %v2690 = vsel %vm2689, %v2688, %v2683
      %v2691 = vadd.s32 %v2637, 4294967232
      %v2692 = vlaneseq
      %v2693 = vshrl.u32 %v2692, 7
      %v2694 = vsub.s32 %v2691, %v2693
      %v2695 = vrot.slane %v2267, %v2694
      %vm2696 = vcmask 589312
      %v2697 = vsel %vm2696, %v2695, %v2690
      %v2698 = vadd.s32 %v2637, 4294967224
      %v2699 = vlaneseq
      %v2700 = vshrl.u32 %v2699, 7
      %v2701 = vsub.s32 %v2698, %v2700
      %v2702 = vrot.slane %v2269, %v2701
      %vm2703 = vcmask 654912
      %v2704 = vsel %vm2703, %v2702, %v2697
      %v2705 = vadd.s32 %v2637, 4294967216
      %v2706 = vlaneseq
      %v2707 = vshrl.u32 %v2706, 7
      %v2708 = vsub.s32 %v2705, %v2707
      %v2709 = vrot.slane %v2271, %v2708
      %vm2710 = vcmask 720512
      %v2711 = vsel %vm2710, %v2709, %v2704
      %v2712 = vadd.s32 %v2637, 4294967208
      %v2713 = vlaneseq
      %v2714 = vshrl.u32 %v2713, 7
      %v2715 = vsub.s32 %v2712, %v2714
      %v2716 = vrot.slane %v2273, %v2715
      %vm2717 = vcmask 786112
      %v2718 = vsel %vm2717, %v2716, %v2711
      %v2719 = vadd.s32 %v2637, 4294967200
      %v2720 = vlaneseq
      %v2721 = vshrl.u32 %v2720, 7
      %v2722 = vsub.s32 %v2719, %v2721
      %v2723 = vrot.slane %v2275, %v2722
      %vm2724 = vcmask 851712
      %v2725 = vsel %vm2724, %v2723, %v2718
      %v2726 = vadd.s32 %v2637, 4294967192
      %v2727 = vlaneseq
      %v2728 = vshrl.u32 %v2727, 7
      %v2729 = vsub.s32 %v2726, %v2728
      %v2730 = vrot.slane %v2277, %v2729
      %vm2731 = vcmask 917312
      %v2732 = vsel %vm2731, %v2730, %v2725
      %v2733 = vadd.s32 %v2637, 4294967184
      %v2734 = vlaneseq
      %v2735 = vshrl.u32 %v2734, 7
      %v2736 = vsub.s32 %v2733, %v2735
      %v2737 = vrot.slane %v2279, %v2736
      %vm2738 = vcmask 982912
      %v2739 = vsel %vm2738, %v2737, %v2732
      %v2740 = vadd.s32 %v2637, 4294967176
      %v2741 = vlaneseq
      %v2742 = vshrl.u32 %v2741, 7
      %v2743 = vsub.s32 %v2740, %v2742
      %v2744 = vrot.slane %v2281, %v2743
      %vm2745 = vcmask 1048512
      %v2746 = vsel %vm2745, %v2744, %v2739
      %v2747 = vlaneseq
      %v2748 = vshrl.u32 %v2747, 7
      %v2749 = vsub.s32 %v2637, %v2748
      %v2750 = vrot.slane %v2283, %v2749
      %v2751 = vlaneseq
      %v2752 = vshrl.u32 %v2751, 7
      %v2753 = vsub.s32 %v2642, %v2752
      %v2754 = vrot.slane %v2285, %v2753
      %v2755 = vsel %vm2647, %v2754, %v2750
      %v2756 = vlaneseq
      %v2757 = vshrl.u32 %v2756, 7
      %v2758 = vsub.s32 %v2649, %v2757
      %v2759 = vrot.slane %v2287, %v2758
      %v2760 = vsel %vm2654, %v2759, %v2755
      %v2761 = vlaneseq
      %v2762 = vshrl.u32 %v2761, 7
      %v2763 = vsub.s32 %v2656, %v2762
      %v2764 = vrot.slane %v2289, %v2763
      %v2765 = vsel %vm2661, %v2764, %v2760
      %v2766 = vlaneseq
      %v2767 = vshrl.u32 %v2766, 7
      %v2768 = vsub.s32 %v2663, %v2767
      %v2769 = vrot.slane %v2291, %v2768
      %v2770 = vsel %vm2668, %v2769, %v2765
      %v2771 = vlaneseq
      %v2772 = vshrl.u32 %v2771, 7
      %v2773 = vsub.s32 %v2670, %v2772
      %v2774 = vrot.slane %v2293, %v2773
      %v2775 = vsel %vm2675, %v2774, %v2770
      %v2776 = vlaneseq
      %v2777 = vshrl.u32 %v2776, 7
      %v2778 = vsub.s32 %v2677, %v2777
      %v2779 = vrot.slane %v2295, %v2778
      %v2780 = vsel %vm2682, %v2779, %v2775
      %v2781 = vlaneseq
      %v2782 = vshrl.u32 %v2781, 7
      %v2783 = vsub.s32 %v2684, %v2782
      %v2784 = vrot.slane %v2297, %v2783
      %v2785 = vsel %vm2689, %v2784, %v2780
      %v2786 = vlaneseq
      %v2787 = vshrl.u32 %v2786, 7
      %v2788 = vsub.s32 %v2691, %v2787
      %v2789 = vrot.slane %v2299, %v2788
      %v2790 = vsel %vm2696, %v2789, %v2785
      %v2791 = vlaneseq
      %v2792 = vshrl.u32 %v2791, 7
      %v2793 = vsub.s32 %v2698, %v2792
      %v2794 = vrot.slane %v2301, %v2793
      %v2795 = vsel %vm2703, %v2794, %v2790
      %v2796 = vlaneseq
      %v2797 = vshrl.u32 %v2796, 7
      %v2798 = vsub.s32 %v2705, %v2797
      %v2799 = vrot.slane %v2303, %v2798
      %v2800 = vsel %vm2710, %v2799, %v2795
      %v2801 = vlaneseq
      %v2802 = vshrl.u32 %v2801, 7
      %v2803 = vsub.s32 %v2712, %v2802
      %v2804 = vrot.slane %v2305, %v2803
      %v2805 = vsel %vm2717, %v2804, %v2800
      %v2806 = vlaneseq
      %v2807 = vshrl.u32 %v2806, 7
      %v2808 = vsub.s32 %v2719, %v2807
      %v2809 = vrot.slane %v2307, %v2808
      %v2810 = vsel %vm2724, %v2809, %v2805
      %v2811 = vlaneseq
      %v2812 = vshrl.u32 %v2811, 7
      %v2813 = vsub.s32 %v2726, %v2812
      %v2814 = vrot.slane %v2309, %v2813
      %v2815 = vsel %vm2731, %v2814, %v2810
      %v2816 = vlaneseq
      %v2817 = vshrl.u32 %v2816, 7
      %v2818 = vsub.s32 %v2733, %v2817
      %v2819 = vrot.slane %v2311, %v2818
      %v2820 = vsel %vm2738, %v2819, %v2815
      %v2821 = vlaneseq
      %v2822 = vshrl.u32 %v2821, 7
      %v2823 = vsub.s32 %v2740, %v2822
      %v2824 = vrot.slane %v2313, %v2823
      %v2825 = vsel %vm2745, %v2824, %v2820
      %v2826 = vlaneseq
      %v2827 = vshrl.u32 %v2826, 7
      %v2828 = vsub.s32 %v2637, %v2827
      %v2829 = vrot.slane %v2315, %v2828
      %v2830 = vlaneseq
      %v2831 = vshrl.u32 %v2830, 7
      %v2832 = vsub.s32 %v2642, %v2831
      %v2833 = vrot.slane %v2317, %v2832
      %v2834 = vsel %vm2647, %v2833, %v2829
      %v2835 = vlaneseq
      %v2836 = vshrl.u32 %v2835, 7
      %v2837 = vsub.s32 %v2649, %v2836
      %v2838 = vrot.slane %v2319, %v2837
      %v2839 = vsel %vm2654, %v2838, %v2834
      %v2840 = vlaneseq
      %v2841 = vshrl.u32 %v2840, 7
      %v2842 = vsub.s32 %v2656, %v2841
      %v2843 = vrot.slane %v2321, %v2842
      %v2844 = vsel %vm2661, %v2843, %v2839
      %v2845 = vlaneseq
      %v2846 = vshrl.u32 %v2845, 7
      %v2847 = vsub.s32 %v2663, %v2846
      %v2848 = vrot.slane %v2323, %v2847
      %v2849 = vsel %vm2668, %v2848, %v2844
      %v2850 = vlaneseq
      %v2851 = vshrl.u32 %v2850, 7
      %v2852 = vsub.s32 %v2670, %v2851
      %v2853 = vrot.slane %v2325, %v2852
      %v2854 = vsel %vm2675, %v2853, %v2849
      %v2855 = vlaneseq
      %v2856 = vshrl.u32 %v2855, 7
      %v2857 = vsub.s32 %v2677, %v2856
      %v2858 = vrot.slane %v2327, %v2857
      %v2859 = vsel %vm2682, %v2858, %v2854
      %v2860 = vlaneseq
      %v2861 = vshrl.u32 %v2860, 7
      %v2862 = vsub.s32 %v2684, %v2861
      %v2863 = vrot.slane %v2329, %v2862
      %v2864 = vsel %vm2689, %v2863, %v2859
      %v2865 = vlaneseq
      %v2866 = vshrl.u32 %v2865, 7
      %v2867 = vsub.s32 %v2691, %v2866
      %v2868 = vrot.slane %v2331, %v2867
      %v2869 = vsel %vm2696, %v2868, %v2864
      %v2870 = vlaneseq
      %v2871 = vshrl.u32 %v2870, 7
      %v2872 = vsub.s32 %v2698, %v2871
      %v2873 = vrot.slane %v2333, %v2872
      %v2874 = vsel %vm2703, %v2873, %v2869
      %v2875 = vlaneseq
      %v2876 = vshrl.u32 %v2875, 7
      %v2877 = vsub.s32 %v2705, %v2876
      %v2878 = vrot.slane %v2335, %v2877
      %v2879 = vsel %vm2710, %v2878, %v2874
      %v2880 = vlaneseq
      %v2881 = vshrl.u32 %v2880, 7
      %v2882 = vsub.s32 %v2712, %v2881
      %v2883 = vrot.slane %v2337, %v2882
      %v2884 = vsel %vm2717, %v2883, %v2879
      %v2885 = vlaneseq
      %v2886 = vshrl.u32 %v2885, 7
      %v2887 = vsub.s32 %v2719, %v2886
      %v2888 = vrot.slane %v2339, %v2887
      %v2889 = vsel %vm2724, %v2888, %v2884
      %v2890 = vlaneseq
      %v2891 = vshrl.u32 %v2890, 7
      %v2892 = vsub.s32 %v2726, %v2891
      %v2893 = vrot.slane %v2341, %v2892
      %v2894 = vsel %vm2731, %v2893, %v2889
      %v2895 = vlaneseq
      %v2896 = vshrl.u32 %v2895, 7
      %v2897 = vsub.s32 %v2733, %v2896
      %v2898 = vrot.slane %v2343, %v2897
      %v2899 = vsel %vm2738, %v2898, %v2894
      %v2900 = vlaneseq
      %v2901 = vshrl.u32 %v2900, 7
      %v2902 = vsub.s32 %v2740, %v2901
      %v2903 = vrot.slane %v2345, %v2902
      %v2904 = vsel %vm2745, %v2903, %v2899
      %v2905 = vlaneseq
      %v2906 = vshrl.u32 %v2905, 7
      %v2907 = vsub.s32 %v2637, %v2906
      %v2908 = vrot.slane %v2347, %v2907
      %v2909 = vlaneseq
      %v2910 = vshrl.u32 %v2909, 7
      %v2911 = vsub.s32 %v2642, %v2910
      %v2912 = vrot.slane %v2349, %v2911
      %v2913 = vsel %vm2647, %v2912, %v2908
      %v2914 = vlaneseq
      %v2915 = vshrl.u32 %v2914, 7
      %v2916 = vsub.s32 %v2649, %v2915
      %v2917 = vrot.slane %v2351, %v2916
      %v2918 = vsel %vm2654, %v2917, %v2913
      %v2919 = vlaneseq
      %v2920 = vshrl.u32 %v2919, 7
      %v2921 = vsub.s32 %v2656, %v2920
      %v2922 = vrot.slane %v2353, %v2921
      %v2923 = vsel %vm2661, %v2922, %v2918
      %v2924 = vlaneseq
      %v2925 = vshrl.u32 %v2924, 7
      %v2926 = vsub.s32 %v2663, %v2925
      %v2927 = vrot.slane %v2355, %v2926
      %v2928 = vsel %vm2668, %v2927, %v2923
      %v2929 = vlaneseq
      %v2930 = vshrl.u32 %v2929, 7
      %v2931 = vsub.s32 %v2670, %v2930
      %v2932 = vrot.slane %v2357, %v2931
      %v2933 = vsel %vm2675, %v2932, %v2928
      %v2934 = vlaneseq
      %v2935 = vshrl.u32 %v2934, 7
      %v2936 = vsub.s32 %v2677, %v2935
      %v2937 = vrot.slane %v2359, %v2936
      %v2938 = vsel %vm2682, %v2937, %v2933
      %v2939 = vlaneseq
      %v2940 = vshrl.u32 %v2939, 7
      %v2941 = vsub.s32 %v2684, %v2940
      %v2942 = vrot.slane %v2361, %v2941
      %v2943 = vsel %vm2689, %v2942, %v2938
      %v2944 = vlaneseq
      %v2945 = vshrl.u32 %v2944, 7
      %v2946 = vsub.s32 %v2691, %v2945
      %v2947 = vrot.slane %v2363, %v2946
      %v2948 = vsel %vm2696, %v2947, %v2943
      %v2949 = vlaneseq
      %v2950 = vshrl.u32 %v2949, 7
      %v2951 = vsub.s32 %v2698, %v2950
      %v2952 = vrot.slane %v2365, %v2951
      %v2953 = vsel %vm2703, %v2952, %v2948
      %v2954 = vlaneseq
      %v2955 = vshrl.u32 %v2954, 7
      %v2956 = vsub.s32 %v2705, %v2955
      %v2957 = vrot.slane %v2367, %v2956
      %v2958 = vsel %vm2710, %v2957, %v2953
      %v2959 = vlaneseq
      %v2960 = vshrl.u32 %v2959, 7
      %v2961 = vsub.s32 %v2712, %v2960
      %v2962 = vrot.slane %v2369, %v2961
      %v2963 = vsel %vm2717, %v2962, %v2958
      %v2964 = vlaneseq
      %v2965 = vshrl.u32 %v2964, 7
      %v2966 = vsub.s32 %v2719, %v2965
      %v2967 = vrot.slane %v2371, %v2966
      %v2968 = vsel %vm2724, %v2967, %v2963
      %v2969 = vlaneseq
      %v2970 = vshrl.u32 %v2969, 7
      %v2971 = vsub.s32 %v2726, %v2970
      %v2972 = vrot.slane %v2373, %v2971
      %v2973 = vsel %vm2731, %v2972, %v2968
      %v2974 = vlaneseq
      %v2975 = vshrl.u32 %v2974, 7
      %v2976 = vsub.s32 %v2733, %v2975
      %v2977 = vrot.slane %v2375, %v2976
      %v2978 = vsel %vm2738, %v2977, %v2973
      %v2979 = vlaneseq
      %v2980 = vshrl.u32 %v2979, 7
      %v2981 = vsub.s32 %v2740, %v2980
      %v2982 = vrot.slane %v2377, %v2981
      %v2983 = vsel %vm2745, %v2982, %v2978
      %v2984 = vlaneseq
      %v2985 = vshrl.u32 %v2984, 7
      %v2986 = vsub.s32 %v2637, %v2985
      %v2987 = vrot.slane %v2379, %v2986
      %v2988 = vlaneseq
      %v2989 = vshrl.u32 %v2988, 7
      %v2990 = vsub.s32 %v2642, %v2989
      %v2991 = vrot.slane %v2381, %v2990
      %v2992 = vsel %vm2647, %v2991, %v2987
      %v2993 = vlaneseq
      %v2994 = vshrl.u32 %v2993, 7
      %v2995 = vsub.s32 %v2649, %v2994
      %v2996 = vrot.slane %v2383, %v2995
      %v2997 = vsel %vm2654, %v2996, %v2992
      %v2998 = vlaneseq
      %v2999 = vshrl.u32 %v2998, 7
      %v3000 = vsub.s32 %v2656, %v2999
      %v3001 = vrot.slane %v2385, %v3000
      %v3002 = vsel %vm2661, %v3001, %v2997
      %v3003 = vlaneseq
      %v3004 = vshrl.u32 %v3003, 7
      %v3005 = vsub.s32 %v2663, %v3004
      %v3006 = vrot.slane %v2387, %v3005
      %v3007 = vsel %vm2668, %v3006, %v3002
      %v3008 = vlaneseq
      %v3009 = vshrl.u32 %v3008, 7
      %v3010 = vsub.s32 %v2670, %v3009
      %v3011 = vrot.slane %v2389, %v3010
      %v3012 = vsel %vm2675, %v3011, %v3007
      %v3013 = vlaneseq
      %v3014 = vshrl.u32 %v3013, 7
      %v3015 = vsub.s32 %v2677, %v3014
      %v3016 = vrot.slane %v2391, %v3015
      %v3017 = vsel %vm2682, %v3016, %v3012
      %v3018 = vlaneseq
      %v3019 = vshrl.u32 %v3018, 7
      %v3020 = vsub.s32 %v2684, %v3019
      %v3021 = vrot.slane %v2393, %v3020
      %v3022 = vsel %vm2689, %v3021, %v3017
      %v3023 = vlaneseq
      %v3024 = vshrl.u32 %v3023, 7
      %v3025 = vsub.s32 %v2691, %v3024
      %v3026 = vrot.slane %v2395, %v3025
      %v3027 = vsel %vm2696, %v3026, %v3022
      %v3028 = vlaneseq
      %v3029 = vshrl.u32 %v3028, 7
      %v3030 = vsub.s32 %v2698, %v3029
      %v3031 = vrot.slane %v2397, %v3030
      %v3032 = vsel %vm2703, %v3031, %v3027
      %v3033 = vlaneseq
      %v3034 = vshrl.u32 %v3033, 7
      %v3035 = vsub.s32 %v2705, %v3034
      %v3036 = vrot.slane %v2399, %v3035
      %v3037 = vsel %vm2710, %v3036, %v3032
      %v3038 = vlaneseq
      %v3039 = vshrl.u32 %v3038, 7
      %v3040 = vsub.s32 %v2712, %v3039
      %v3041 = vrot.slane %v2401, %v3040
      %v3042 = vsel %vm2717, %v3041, %v3037
      %v3043 = vlaneseq
      %v3044 = vshrl.u32 %v3043, 7
      %v3045 = vsub.s32 %v2719, %v3044
      %v3046 = vrot.slane %v2403, %v3045
      %v3047 = vsel %vm2724, %v3046, %v3042
      %v3048 = vlaneseq
      %v3049 = vshrl.u32 %v3048, 7
      %v3050 = vsub.s32 %v2726, %v3049
      %v3051 = vrot.slane %v2405, %v3050
      %v3052 = vsel %vm2731, %v3051, %v3047
      %v3053 = vlaneseq
      %v3054 = vshrl.u32 %v3053, 7
      %v3055 = vsub.s32 %v2733, %v3054
      %v3056 = vrot.slane %v2407, %v3055
      %v3057 = vsel %vm2738, %v3056, %v3052
      %v3058 = vlaneseq
      %v3059 = vshrl.u32 %v3058, 7
      %v3060 = vsub.s32 %v2740, %v3059
      %v3061 = vrot.slane %v2409, %v3060
      %v3062 = vsel %vm2745, %v3061, %v3057
      %v3063 = vlaneseq
      %v3064 = vshrl.u32 %v3063, 7
      %v3065 = vsub.s32 %v2637, %v3064
      %v3066 = vrot.slane %v2411, %v3065
      %v3067 = vlaneseq
      %v3068 = vshrl.u32 %v3067, 7
      %v3069 = vsub.s32 %v2642, %v3068
      %v3070 = vrot.slane %v2413, %v3069
      %v3071 = vsel %vm2647, %v3070, %v3066
      %v3072 = vlaneseq
      %v3073 = vshrl.u32 %v3072, 7
      %v3074 = vsub.s32 %v2649, %v3073
      %v3075 = vrot.slane %v2415, %v3074
      %v3076 = vsel %vm2654, %v3075, %v3071
      %v3077 = vlaneseq
      %v3078 = vshrl.u32 %v3077, 7
      %v3079 = vsub.s32 %v2656, %v3078
      %v3080 = vrot.slane %v2417, %v3079
      %v3081 = vsel %vm2661, %v3080, %v3076
      %v3082 = vlaneseq
      %v3083 = vshrl.u32 %v3082, 7
      %v3084 = vsub.s32 %v2663, %v3083
      %v3085 = vrot.slane %v2419, %v3084
      %v3086 = vsel %vm2668, %v3085, %v3081
      %v3087 = vlaneseq
      %v3088 = vshrl.u32 %v3087, 7
      %v3089 = vsub.s32 %v2670, %v3088
      %v3090 = vrot.slane %v2421, %v3089
      %v3091 = vsel %vm2675, %v3090, %v3086
      %v3092 = vlaneseq
      %v3093 = vshrl.u32 %v3092, 7
      %v3094 = vsub.s32 %v2677, %v3093
      %v3095 = vrot.slane %v2423, %v3094
      %v3096 = vsel %vm2682, %v3095, %v3091
      %v3097 = vlaneseq
      %v3098 = vshrl.u32 %v3097, 7
      %v3099 = vsub.s32 %v2684, %v3098
      %v3100 = vrot.slane %v2425, %v3099
      %v3101 = vsel %vm2689, %v3100, %v3096
      %v3102 = vlaneseq
      %v3103 = vshrl.u32 %v3102, 7
      %v3104 = vsub.s32 %v2691, %v3103
      %v3105 = vrot.slane %v2427, %v3104
      %v3106 = vsel %vm2696, %v3105, %v3101
      %v3107 = vlaneseq
      %v3108 = vshrl.u32 %v3107, 7
      %v3109 = vsub.s32 %v2698, %v3108
      %v3110 = vrot.slane %v2429, %v3109
      %v3111 = vsel %vm2703, %v3110, %v3106
      %v3112 = vlaneseq
      %v3113 = vshrl.u32 %v3112, 7
      %v3114 = vsub.s32 %v2705, %v3113
      %v3115 = vrot.slane %v2431, %v3114
      %v3116 = vsel %vm2710, %v3115, %v3111
      %v3117 = vlaneseq
      %v3118 = vshrl.u32 %v3117, 7
      %v3119 = vsub.s32 %v2712, %v3118
      %v3120 = vrot.slane %v2433, %v3119
      %v3121 = vsel %vm2717, %v3120, %v3116
      %v3122 = vlaneseq
      %v3123 = vshrl.u32 %v3122, 7
      %v3124 = vsub.s32 %v2719, %v3123
      %v3125 = vrot.slane %v2435, %v3124
      %v3126 = vsel %vm2724, %v3125, %v3121
      %v3127 = vlaneseq
      %v3128 = vshrl.u32 %v3127, 7
      %v3129 = vsub.s32 %v2726, %v3128
      %v3130 = vrot.slane %v2437, %v3129
      %v3131 = vsel %vm2731, %v3130, %v3126
      %v3132 = vlaneseq
      %v3133 = vshrl.u32 %v3132, 7
      %v3134 = vsub.s32 %v2733, %v3133
      %v3135 = vrot.slane %v2439, %v3134
      %v3136 = vsel %vm2738, %v3135, %v3131
      %v3137 = vlaneseq
      %v3138 = vshrl.u32 %v3137, 7
      %v3139 = vsub.s32 %v2740, %v3138
      %v3140 = vrot.slane %v2441, %v3139
      %v3141 = vsel %vm2745, %v3140, %v3136
      %v3142 = vlaneseq
      %v3143 = vshrl.u32 %v3142, 7
      %v3144 = vsub.s32 %v2637, %v3143
      %v3145 = vrot.slane %v2443, %v3144
      %v3146 = vlaneseq
      %v3147 = vshrl.u32 %v3146, 7
      %v3148 = vsub.s32 %v2642, %v3147
      %v3149 = vrot.slane %v2445, %v3148
      %v3150 = vsel %vm2647, %v3149, %v3145
      %v3151 = vlaneseq
      %v3152 = vshrl.u32 %v3151, 7
      %v3153 = vsub.s32 %v2649, %v3152
      %v3154 = vrot.slane %v2447, %v3153
      %v3155 = vsel %vm2654, %v3154, %v3150
      %v3156 = vlaneseq
      %v3157 = vshrl.u32 %v3156, 7
      %v3158 = vsub.s32 %v2656, %v3157
      %v3159 = vrot.slane %v2449, %v3158
      %v3160 = vsel %vm2661, %v3159, %v3155
      %v3161 = vlaneseq
      %v3162 = vshrl.u32 %v3161, 7
      %v3163 = vsub.s32 %v2663, %v3162
      %v3164 = vrot.slane %v2451, %v3163
      %v3165 = vsel %vm2668, %v3164, %v3160
      %v3166 = vlaneseq
      %v3167 = vshrl.u32 %v3166, 7
      %v3168 = vsub.s32 %v2670, %v3167
      %v3169 = vrot.slane %v2453, %v3168
      %v3170 = vsel %vm2675, %v3169, %v3165
      %v3171 = vlaneseq
      %v3172 = vshrl.u32 %v3171, 7
      %v3173 = vsub.s32 %v2677, %v3172
      %v3174 = vrot.slane %v2455, %v3173
      %v3175 = vsel %vm2682, %v3174, %v3170
      %v3176 = vlaneseq
      %v3177 = vshrl.u32 %v3176, 7
      %v3178 = vsub.s32 %v2684, %v3177
      %v3179 = vrot.slane %v2457, %v3178
      %v3180 = vsel %vm2689, %v3179, %v3175
      %v3181 = vlaneseq
      %v3182 = vshrl.u32 %v3181, 7
      %v3183 = vsub.s32 %v2691, %v3182
      %v3184 = vrot.slane %v2459, %v3183
      %v3185 = vsel %vm2696, %v3184, %v3180
      %v3186 = vlaneseq
      %v3187 = vshrl.u32 %v3186, 7
      %v3188 = vsub.s32 %v2698, %v3187
      %v3189 = vrot.slane %v2461, %v3188
      %v3190 = vsel %vm2703, %v3189, %v3185
      %v3191 = vlaneseq
      %v3192 = vshrl.u32 %v3191, 7
      %v3193 = vsub.s32 %v2705, %v3192
      %v3194 = vrot.slane %v2463, %v3193
      %v3195 = vsel %vm2710, %v3194, %v3190
      %v3196 = vlaneseq
      %v3197 = vshrl.u32 %v3196, 7
      %v3198 = vsub.s32 %v2712, %v3197
      %v3199 = vrot.slane %v2465, %v3198
      %v3200 = vsel %vm2717, %v3199, %v3195
      %v3201 = vlaneseq
      %v3202 = vshrl.u32 %v3201, 7
      %v3203 = vsub.s32 %v2719, %v3202
      %v3204 = vrot.slane %v2467, %v3203
      %v3205 = vsel %vm2724, %v3204, %v3200
      %v3206 = vlaneseq
      %v3207 = vshrl.u32 %v3206, 7
      %v3208 = vsub.s32 %v2726, %v3207
      %v3209 = vrot.slane %v2469, %v3208
      %v3210 = vsel %vm2731, %v3209, %v3205
      %v3211 = vlaneseq
      %v3212 = vshrl.u32 %v3211, 7
      %v3213 = vsub.s32 %v2733, %v3212
      %v3214 = vrot.slane %v2471, %v3213
      %v3215 = vsel %vm2738, %v3214, %v3210
      %v3216 = vlaneseq
      %v3217 = vshrl.u32 %v3216, 7
      %v3218 = vsub.s32 %v2740, %v3217
      %v3219 = vrot.slane %v2473, %v3218
      %v3220 = vsel %vm2745, %v3219, %v3215
      %v3221 = vlaneseq
      %v3222 = vshrl.u32 %v3221, 7
      %v3223 = vsub.s32 %v2637, %v3222
      %v3224 = vrot.slane %v2475, %v3223
      %v3225 = vlaneseq
      %v3226 = vshrl.u32 %v3225, 7
      %v3227 = vsub.s32 %v2642, %v3226
      %v3228 = vrot.slane %v2477, %v3227
      %v3229 = vsel %vm2647, %v3228, %v3224
      %v3230 = vlaneseq
      %v3231 = vshrl.u32 %v3230, 7
      %v3232 = vsub.s32 %v2649, %v3231
      %v3233 = vrot.slane %v2479, %v3232
      %v3234 = vsel %vm2654, %v3233, %v3229
      %v3235 = vlaneseq
      %v3236 = vshrl.u32 %v3235, 7
      %v3237 = vsub.s32 %v2656, %v3236
      %v3238 = vrot.slane %v2481, %v3237
      %v3239 = vsel %vm2661, %v3238, %v3234
      %v3240 = vlaneseq
      %v3241 = vshrl.u32 %v3240, 7
      %v3242 = vsub.s32 %v2663, %v3241
      %v3243 = vrot.slane %v2483, %v3242
      %v3244 = vsel %vm2668, %v3243, %v3239
      %v3245 = vlaneseq
      %v3246 = vshrl.u32 %v3245, 7
      %v3247 = vsub.s32 %v2670, %v3246
      %v3248 = vrot.slane %v2485, %v3247
      %v3249 = vsel %vm2675, %v3248, %v3244
      %v3250 = vlaneseq
      %v3251 = vshrl.u32 %v3250, 7
      %v3252 = vsub.s32 %v2677, %v3251
      %v3253 = vrot.slane %v2487, %v3252
      %v3254 = vsel %vm2682, %v3253, %v3249
      %v3255 = vlaneseq
      %v3256 = vshrl.u32 %v3255, 7
      %v3257 = vsub.s32 %v2684, %v3256
      %v3258 = vrot.slane %v2489, %v3257
      %v3259 = vsel %vm2689, %v3258, %v3254
      %v3260 = vlaneseq
      %v3261 = vshrl.u32 %v3260, 7
      %v3262 = vsub.s32 %v2691, %v3261
      %v3263 = vrot.slane %v2491, %v3262
      %v3264 = vsel %vm2696, %v3263, %v3259
      %v3265 = vlaneseq
      %v3266 = vshrl.u32 %v3265, 7
      %v3267 = vsub.s32 %v2698, %v3266
      %v3268 = vrot.slane %v2493, %v3267
      %v3269 = vsel %vm2703, %v3268, %v3264
      %v3270 = vlaneseq
      %v3271 = vshrl.u32 %v3270, 7
      %v3272 = vsub.s32 %v2705, %v3271
      %v3273 = vrot.slane %v2495, %v3272
      %v3274 = vsel %vm2710, %v3273, %v3269
      %v3275 = vlaneseq
      %v3276 = vshrl.u32 %v3275, 7
      %v3277 = vsub.s32 %v2712, %v3276
      %v3278 = vrot.slane %v2497, %v3277
      %v3279 = vsel %vm2717, %v3278, %v3274
      %v3280 = vlaneseq
      %v3281 = vshrl.u32 %v3280, 7
      %v3282 = vsub.s32 %v2719, %v3281
      %v3283 = vrot.slane %v2499, %v3282
      %v3284 = vsel %vm2724, %v3283, %v3279
      %v3285 = vlaneseq
      %v3286 = vshrl.u32 %v3285, 7
      %v3287 = vsub.s32 %v2726, %v3286
      %v3288 = vrot.slane %v2501, %v3287
      %v3289 = vsel %vm2731, %v3288, %v3284
      %v3290 = vlaneseq
      %v3291 = vshrl.u32 %v3290, 7
      %v3292 = vsub.s32 %v2733, %v3291
      %v3293 = vrot.slane %v2503, %v3292
      %v3294 = vsel %vm2738, %v3293, %v3289
      %v3295 = vlaneseq
      %v3296 = vshrl.u32 %v3295, 7
      %v3297 = vsub.s32 %v2740, %v3296
      %v3298 = vrot.slane %v2505, %v3297
      %v3299 = vsel %vm2745, %v3298, %v3294
      %vm3300 = vcmask 1041409
      %v3301 = vsel %vm3300, %v2825, %v2746
      %vm3302 = vcmask 1042434
      %v3303 = vsel %vm3302, %v2904, %v3301
      %vm3304 = vcmask 1043459
      %v3305 = vsel %vm3304, %v2983, %v3303
      %vm3306 = vcmask 1044484
      %v3307 = vsel %vm3306, %v3062, %v3305
      %vm3308 = vcmask 1045509
      %v3309 = vsel %vm3308, %v3141, %v3307
      %vm3310 = vcmask 1046534
      %v3311 = vsel %vm3310, %v3220, %v3309
      %vm3312 = vcmask 1047559
      %v3313 = vsel %vm3312, %v3299, %v3311
      %v3315 = vsel %vm2507, %v3313, -1e+10
      %3316 = vmax.xlane.f32.xlu0 %v3315
      %v3317 = vpop.xlane.xlu0 %3316
      %v3318 = vsub.f32 %v3315, %v3317
      %v3319 = vmul.f32 %v3318, 1.442695
      %v3320 = vpow.pop %v3319
      %3321 = vadd.xlane.f32.xlu0 %v3320
      %v3322 = vpop.xlane.xlu0 %3321
      %v3323 = vrcp.pop %v3322
      %v3324 = vmul.f32 %v3320, %v3323
      %v3325 = vpack.c.bf16 %v3324, %v3324
      %v3328 = vunpack.c.l.s4 1966171168
      %v3329 = vunpack.c.0.s8 %v3328
      %v3330 = vlaneseq
      %v3331 = vshrl.u32 %v3330, 7
      %v3332 = vsub.s32 %v3329, %v3331
      %v3333 = vrot.slane %v3325, %v3332
      %v3334 = vcombine.high %v3333, %v3333
      %v3336 = vunpack.c.l.s4 1966171168
      %v3337 = vunpack.c.0.s8 %v3336
      %v3338 = vlaneseq
      %v3339 = vshrl.u32 %v3338, 7
      %v3340 = vsub.s32 %v3337, %v3339
      %v3341 = vrot.slane %v3333, %v3340
      %v3343 = vunpack.c.l.s4 1966171168
      %v3344 = vunpack.c.0.s8 %v3343
      %v3345 = vlaneseq
      %v3346 = vshrl.u32 %v3345, 7
      %v3347 = vsub.s32 %v3344, %v3346
      %v3348 = vrot.slane %v3334, %v3347
      %v3349 = vcombine.high %v3341, %v3341
      %v3350 = vcombine.high %v3348, %v3348
      %v3351 = vunpack.i.l.s16 %v3341
      %v3352 = vunpack.i.h.s16 %v3341
      %v3353 = vunpack.i.l.s16 %v3348
      %v3354 = vunpack.i.h.s16 %v3348
      %v3355 = vunpack.i.l.s16 %v3349
      %v3356 = vunpack.i.h.s16 %v3349
      %v3357 = vunpack.i.l.s16 %v3350
      %v3358 = vunpack.i.h.s16 %v3350
      %v3359 = vpack.i.b16 %v3351, %v3351
      %v3360 = vlaneseq
      %v3361 = vshrl.u32 %v3360, 7
      %v3362 = vsub.s32 0, %v3361
      %v3363 = vrot.slane %v3359, %v3362
      %3365 = vmatprep.subr.bf16.mxu0 0
      %3366 = vmatpush1.bf16.msra.mxu0 %v785
      %3367 = vmatprep.subr.bf16.mxu0 0
      %3368 = vmatpush1.bf16.msra.mxu0 %v786
      %3369 = vmatprep.subr.bf16.mxu0 0
      %3370 = vmatpush1.bf16.msra.mxu0 %v787
      %3371 = vmatprep.subr.bf16.mxu0 0
      %3372 = vmatpush1.bf16.msra.mxu0 %v788
      %3373 = vmatprep.subr.bf16.mxu0 0
      %3374 = vmatpush1.bf16.msra.mxu0 %v789
      %3375 = vmatprep.subr.bf16.mxu0 0
      %3376 = vmatpush1.bf16.msra.mxu0 %v790
      %3377 = vmatprep.subr.bf16.mxu0 0
      %3378 = vmatpush1.bf16.msra.mxu0 %v791
      %3379 = vmatprep.subr.bf16.mxu0 0
      %3380 = vmatpush1.bf16.msra.mxu0 %v792
      %3381 = vmatprep.subr.bf16.mxu0 0
      %3382 = vmatpush1.bf16.msra.mxu0 0
      %3383 = vmatprep.subr.bf16.mxu0 0
      %3384 = vmatpush1.bf16.msra.mxu0 0
      %3385 = vmatprep.subr.bf16.mxu0 0
      %3386 = vmatpush1.bf16.msra.mxu0 0
      %3387 = vmatprep.subr.bf16.mxu0 0
      %3388 = vmatpush1.bf16.msra.mxu0 0
      %3389 = vmatprep.subr.bf16.mxu0 0
      %3390 = vmatpush1.bf16.msra.mxu0 0
      %3391 = vmatprep.subr.bf16.mxu0 0
      %3392 = vmatpush1.bf16.msra.mxu0 0
      %3393 = vmatprep.subr.bf16.mxu0 0
      %3394 = vmatpush1.bf16.msra.mxu0 0
      %3395 = vmatprep.subr.bf16.mxu0 0
      %3396 = vmatpush1.bf16.msra.mxu0 0
      %3397 = vmatprep.mubr.bf16.mxu0 0
      %3398 = vmatmul.mubr.bf16.gmra.mrb[0].mxu0 %v3363
      %v3399 = vpop.f32.mrb[0].mxu0
      %v3400 = vadd.f32 0.0, %v3399
      %v3401 = vpop.f32.mrb[0].mxu0
      %v3402 = vpop.f32.mrb[0].mxu0
      %v3403 = vpop.f32.mrb[0].mxu0
      %3404 = vdwg.mxu0
      %v3405 = vpack.i.b16 %v3352, %v3352
      %v3406 = vlaneseq
      %v3407 = vshrl.u32 %v3406, 7
      %v3408 = vsub.s32 0, %v3407
      %v3409 = vrot.slane %v3405, %v3408
      %3411 = vmatprep.subr.bf16.mxu0 0
      %3412 = vmatpush1.bf16.msra.mxu0 %v793
      %3413 = vmatprep.subr.bf16.mxu0 0
      %3414 = vmatpush1.bf16.msra.mxu0 %v794
      %3415 = vmatprep.subr.bf16.mxu0 0
      %3416 = vmatpush1.bf16.msra.mxu0 %v795
      %3417 = vmatprep.subr.bf16.mxu0 0
      %3418 = vmatpush1.bf16.msra.mxu0 %v796
      %3419 = vmatprep.subr.bf16.mxu0 0
      %3420 = vmatpush1.bf16.msra.mxu0 %v797
      %3421 = vmatprep.subr.bf16.mxu0 0
      %3422 = vmatpush1.bf16.msra.mxu0 %v798
      %3423 = vmatprep.subr.bf16.mxu0 0
      %3424 = vmatpush1.bf16.msra.mxu0 %v799
      %3425 = vmatprep.subr.bf16.mxu0 0
      %3426 = vmatpush1.bf16.msra.mxu0 %v800
      %3427 = vmatprep.subr.bf16.mxu0 0
      %3428 = vmatpush1.bf16.msra.mxu0 0
      %3429 = vmatprep.subr.bf16.mxu0 0
      %3430 = vmatpush1.bf16.msra.mxu0 0
      %3431 = vmatprep.subr.bf16.mxu0 0
      %3432 = vmatpush1.bf16.msra.mxu0 0
      %3433 = vmatprep.subr.bf16.mxu0 0
      %3434 = vmatpush1.bf16.msra.mxu0 0
      %3435 = vmatprep.subr.bf16.mxu0 0
      %3436 = vmatpush1.bf16.msra.mxu0 0
      %3437 = vmatprep.subr.bf16.mxu0 0
      %3438 = vmatpush1.bf16.msra.mxu0 0
      %3439 = vmatprep.subr.bf16.mxu0 0
      %3440 = vmatpush1.bf16.msra.mxu0 0
      %3441 = vmatprep.subr.bf16.mxu0 0
      %3442 = vmatpush1.bf16.msra.mxu0 0
      %3443 = vmatprep.mubr.bf16.mxu0 0
      %3444 = vmatmul.mubr.bf16.gmra.mrb[0].mxu0 %v3409
      %v3445 = vpop.f32.mrb[0].mxu0
      %v3446 = vadd.f32 0.0, %v3445
      %v3447 = vpop.f32.mrb[0].mxu0
      %v3448 = vpop.f32.mrb[0].mxu0
      %v3449 = vpop.f32.mrb[0].mxu0
      %3450 = vdwg.mxu0
      %v3451 = vpack.i.b16 %v3353, %v3353
      %v3452 = vlaneseq
      %v3453 = vshrl.u32 %v3452, 7
      %v3454 = vsub.s32 0, %v3453
      %v3455 = vrot.slane %v3451, %v3454
      %3457 = vmatprep.subr.bf16.mxu0 0
      %3458 = vmatpush1.bf16.msra.mxu0 %v801
      %3459 = vmatprep.subr.bf16.mxu0 0
      %3460 = vmatpush1.bf16.msra.mxu0 %v802
      %3461 = vmatprep.subr.bf16.mxu0 0
      %3462 = vmatpush1.bf16.msra.mxu0 %v803
      %3463 = vmatprep.subr.bf16.mxu0 0
      %3464 = vmatpush1.bf16.msra.mxu0 %v804
      %3465 = vmatprep.subr.bf16.mxu0 0
      %3466 = vmatpush1.bf16.msra.mxu0 %v805
      %3467 = vmatprep.subr.bf16.mxu0 0
      %3468 = vmatpush1.bf16.msra.mxu0 %v806
      %3469 = vmatprep.subr.bf16.mxu0 0
      %3470 = vmatpush1.bf16.msra.mxu0 %v807
      %3471 = vmatprep.subr.bf16.mxu0 0
      %3472 = vmatpush1.bf16.msra.mxu0 %v808
      %3473 = vmatprep.subr.bf16.mxu0 0
      %3474 = vmatpush1.bf16.msra.mxu0 0
      %3475 = vmatprep.subr.bf16.mxu0 0
      %3476 = vmatpush1.bf16.msra.mxu0 0
      %3477 = vmatprep.subr.bf16.mxu0 0
      %3478 = vmatpush1.bf16.msra.mxu0 0
      %3479 = vmatprep.subr.bf16.mxu0 0
      %3480 = vmatpush1.bf16.msra.mxu0 0
      %3481 = vmatprep.subr.bf16.mxu0 0
      %3482 = vmatpush1.bf16.msra.mxu0 0
      %3483 = vmatprep.subr.bf16.mxu0 0
      %3484 = vmatpush1.bf16.msra.mxu0 0
      %3485 = vmatprep.subr.bf16.mxu0 0
      %3486 = vmatpush1.bf16.msra.mxu0 0
      %3487 = vmatprep.subr.bf16.mxu0 0
      %3488 = vmatpush1.bf16.msra.mxu0 0
      %3489 = vmatprep.mubr.bf16.mxu0 0
      %3490 = vmatmul.mubr.bf16.gmra.mrb[0].mxu0 %v3455
      %v3491 = vpop.f32.mrb[0].mxu0
      %v3492 = vadd.f32 0.0, %v3491
      %v3493 = vpop.f32.mrb[0].mxu0
      %v3494 = vpop.f32.mrb[0].mxu0
      %v3495 = vpop.f32.mrb[0].mxu0
      %3496 = vdwg.mxu0
      %v3497 = vpack.i.b16 %v3354, %v3354
      %v3498 = vlaneseq
      %v3499 = vshrl.u32 %v3498, 7
      %v3500 = vsub.s32 0, %v3499
      %v3501 = vrot.slane %v3497, %v3500
      %3503 = vmatprep.subr.bf16.mxu0 0
      %3504 = vmatpush1.bf16.msra.mxu0 %v809
      %3505 = vmatprep.subr.bf16.mxu0 0
      %3506 = vmatpush1.bf16.msra.mxu0 %v810
      %3507 = vmatprep.subr.bf16.mxu0 0
      %3508 = vmatpush1.bf16.msra.mxu0 %v811
      %3509 = vmatprep.subr.bf16.mxu0 0
      %3510 = vmatpush1.bf16.msra.mxu0 %v812
      %3511 = vmatprep.subr.bf16.mxu0 0
      %3512 = vmatpush1.bf16.msra.mxu0 %v813
      %3513 = vmatprep.subr.bf16.mxu0 0
      %3514 = vmatpush1.bf16.msra.mxu0 %v814
      %3515 = vmatprep.subr.bf16.mxu0 0
      %3516 = vmatpush1.bf16.msra.mxu0 %v815
      %3517 = vmatprep.subr.bf16.mxu0 0
      %3518 = vmatpush1.bf16.msra.mxu0 %v816
      %3519 = vmatprep.subr.bf16.mxu0 0
      %3520 = vmatpush1.bf16.msra.mxu0 0
      %3521 = vmatprep.subr.bf16.mxu0 0
      %3522 = vmatpush1.bf16.msra.mxu0 0
      %3523 = vmatprep.subr.bf16.mxu0 0
      %3524 = vmatpush1.bf16.msra.mxu0 0
      %3525 = vmatprep.subr.bf16.mxu0 0
      %3526 = vmatpush1.bf16.msra.mxu0 0
      %3527 = vmatprep.subr.bf16.mxu0 0
      %3528 = vmatpush1.bf16.msra.mxu0 0
      %3529 = vmatprep.subr.bf16.mxu0 0
      %3530 = vmatpush1.bf16.msra.mxu0 0
      %3531 = vmatprep.subr.bf16.mxu0 0
      %3532 = vmatpush1.bf16.msra.mxu0 0
      %3533 = vmatprep.subr.bf16.mxu0 0
      %3534 = vmatpush1.bf16.msra.mxu0 0
      %3535 = vmatprep.mubr.bf16.mxu0 0
      %3536 = vmatmul.mubr.bf16.gmra.mrb[0].mxu0 %v3501
      %v3537 = vpop.f32.mrb[0].mxu0
      %v3538 = vadd.f32 0.0, %v3537
      %v3539 = vpop.f32.mrb[0].mxu0
      %v3540 = vpop.f32.mrb[0].mxu0
      %v3541 = vpop.f32.mrb[0].mxu0
      %3542 = vdwg.mxu0
      %v3543 = vpack.i.b16 %v3355, %v3355
      %v3544 = vlaneseq
      %v3545 = vshrl.u32 %v3544, 7
      %v3546 = vsub.s32 0, %v3545
      %v3547 = vrot.slane %v3543, %v3546
      %3549 = vmatprep.subr.bf16.mxu0 0
      %3550 = vmatpush1.bf16.msra.mxu0 %v817
      %3551 = vmatprep.subr.bf16.mxu0 0
      %3552 = vmatpush1.bf16.msra.mxu0 %v818
      %3553 = vmatprep.subr.bf16.mxu0 0
      %3554 = vmatpush1.bf16.msra.mxu0 %v819
      %3555 = vmatprep.subr.bf16.mxu0 0
      %3556 = vmatpush1.bf16.msra.mxu0 %v820
      %3557 = vmatprep.subr.bf16.mxu0 0
      %3558 = vmatpush1.bf16.msra.mxu0 %v821
      %3559 = vmatprep.subr.bf16.mxu0 0
      %3560 = vmatpush1.bf16.msra.mxu0 %v822
      %3561 = vmatprep.subr.bf16.mxu0 0
      %3562 = vmatpush1.bf16.msra.mxu0 %v823
      %3563 = vmatprep.subr.bf16.mxu0 0
      %3564 = vmatpush1.bf16.msra.mxu0 %v824
      %3565 = vmatprep.subr.bf16.mxu0 0
      %3566 = vmatpush1.bf16.msra.mxu0 0
      %3567 = vmatprep.subr.bf16.mxu0 0
      %3568 = vmatpush1.bf16.msra.mxu0 0
      %3569 = vmatprep.subr.bf16.mxu0 0
      %3570 = vmatpush1.bf16.msra.mxu0 0
      %3571 = vmatprep.subr.bf16.mxu0 0
      %3572 = vmatpush1.bf16.msra.mxu0 0
      %3573 = vmatprep.subr.bf16.mxu0 0
      %3574 = vmatpush1.bf16.msra.mxu0 0
      %3575 = vmatprep.subr.bf16.mxu0 0
      %3576 = vmatpush1.bf16.msra.mxu0 0
      %3577 = vmatprep.subr.bf16.mxu0 0
      %3578 = vmatpush1.bf16.msra.mxu0 0
      %3579 = vmatprep.subr.bf16.mxu0 0
      %3580 = vmatpush1.bf16.msra.mxu0 0
      %3581 = vmatprep.mubr.bf16.mxu0 0
      %3582 = vmatmul.mubr.bf16.gmra.mrb[0].mxu0 %v3547
      %v3583 = vpop.f32.mrb[0].mxu0
      %v3584 = vadd.f32 0.0, %v3583
      %v3585 = vpop.f32.mrb[0].mxu0
      %v3586 = vpop.f32.mrb[0].mxu0
      %v3587 = vpop.f32.mrb[0].mxu0
      %3588 = vdwg.mxu0
      %v3589 = vpack.i.b16 %v3356, %v3356
      %v3590 = vlaneseq
      %v3591 = vshrl.u32 %v3590, 7
      %v3592 = vsub.s32 0, %v3591
      %v3593 = vrot.slane %v3589, %v3592
      %3595 = vmatprep.subr.bf16.mxu0 0
      %3596 = vmatpush1.bf16.msra.mxu0 %v825
      %3597 = vmatprep.subr.bf16.mxu0 0
      %3598 = vmatpush1.bf16.msra.mxu0 %v826
      %3599 = vmatprep.subr.bf16.mxu0 0
      %3600 = vmatpush1.bf16.msra.mxu0 %v827
      %3601 = vmatprep.subr.bf16.mxu0 0
      %3602 = vmatpush1.bf16.msra.mxu0 %v828
      %3603 = vmatprep.subr.bf16.mxu0 0
      %3604 = vmatpush1.bf16.msra.mxu0 %v829
      %3605 = vmatprep.subr.bf16.mxu0 0
      %3606 = vmatpush1.bf16.msra.mxu0 %v830
      %3607 = vmatprep.subr.bf16.mxu0 0
      %3608 = vmatpush1.bf16.msra.mxu0 %v831
      %3609 = vmatprep.subr.bf16.mxu0 0
      %3610 = vmatpush1.bf16.msra.mxu0 %v832
      %3611 = vmatprep.subr.bf16.mxu0 0
      %3612 = vmatpush1.bf16.msra.mxu0 0
      %3613 = vmatprep.subr.bf16.mxu0 0
      %3614 = vmatpush1.bf16.msra.mxu0 0
      %3615 = vmatprep.subr.bf16.mxu0 0
      %3616 = vmatpush1.bf16.msra.mxu0 0
      %3617 = vmatprep.subr.bf16.mxu0 0
      %3618 = vmatpush1.bf16.msra.mxu0 0
      %3619 = vmatprep.subr.bf16.mxu0 0
      %3620 = vmatpush1.bf16.msra.mxu0 0
      %3621 = vmatprep.subr.bf16.mxu0 0
      %3622 = vmatpush1.bf16.msra.mxu0 0
      %3623 = vmatprep.subr.bf16.mxu0 0
      %3624 = vmatpush1.bf16.msra.mxu0 0
      %3625 = vmatprep.subr.bf16.mxu0 0
      %3626 = vmatpush1.bf16.msra.mxu0 0
      %3627 = vmatprep.mubr.bf16.mxu0 0
      %3628 = vmatmul.mubr.bf16.gmra.mrb[0].mxu0 %v3593
      %v3629 = vpop.f32.mrb[0].mxu0
      %v3630 = vadd.f32 0.0, %v3629
      %v3631 = vpop.f32.mrb[0].mxu0
      %v3632 = vpop.f32.mrb[0].mxu0
      %v3633 = vpop.f32.mrb[0].mxu0
      %3634 = vdwg.mxu0
      %v3635 = vpack.i.b16 %v3357, %v3357
      %v3636 = vlaneseq
      %v3637 = vshrl.u32 %v3636, 7
      %v3638 = vsub.s32 0, %v3637
      %v3639 = vrot.slane %v3635, %v3638
      %3641 = vmatprep.subr.bf16.mxu0 0
      %3642 = vmatpush1.bf16.msra.mxu0 %v833
      %3643 = vmatprep.subr.bf16.mxu0 0
      %3644 = vmatpush1.bf16.msra.mxu0 %v834
      %3645 = vmatprep.subr.bf16.mxu0 0
      %3646 = vmatpush1.bf16.msra.mxu0 %v835
      %3647 = vmatprep.subr.bf16.mxu0 0
      %3648 = vmatpush1.bf16.msra.mxu0 %v836
      %3649 = vmatprep.subr.bf16.mxu0 0
      %3650 = vmatpush1.bf16.msra.mxu0 %v837
      %3651 = vmatprep.subr.bf16.mxu0 0
      %3652 = vmatpush1.bf16.msra.mxu0 %v838
      %3653 = vmatprep.subr.bf16.mxu0 0
      %3654 = vmatpush1.bf16.msra.mxu0 %v839
      %3655 = vmatprep.subr.bf16.mxu0 0
      %3656 = vmatpush1.bf16.msra.mxu0 %v840
      %3657 = vmatprep.subr.bf16.mxu0 0
      %3658 = vmatpush1.bf16.msra.mxu0 0
      %3659 = vmatprep.subr.bf16.mxu0 0
      %3660 = vmatpush1.bf16.msra.mxu0 0
      %3661 = vmatprep.subr.bf16.mxu0 0
      %3662 = vmatpush1.bf16.msra.mxu0 0
      %3663 = vmatprep.subr.bf16.mxu0 0
      %3664 = vmatpush1.bf16.msra.mxu0 0
      %3665 = vmatprep.subr.bf16.mxu0 0
      %3666 = vmatpush1.bf16.msra.mxu0 0
      %3667 = vmatprep.subr.bf16.mxu0 0
      %3668 = vmatpush1.bf16.msra.mxu0 0
      %3669 = vmatprep.subr.bf16.mxu0 0
      %3670 = vmatpush1.bf16.msra.mxu0 0
      %3671 = vmatprep.subr.bf16.mxu0 0
      %3672 = vmatpush1.bf16.msra.mxu0 0
      %3673 = vmatprep.mubr.bf16.mxu0 0
      %3674 = vmatmul.mubr.bf16.gmra.mrb[0].mxu0 %v3639
      %v3675 = vpop.f32.mrb[0].mxu0
      %v3676 = vadd.f32 0.0, %v3675
      %v3677 = vpop.f32.mrb[0].mxu0
      %v3678 = vpop.f32.mrb[0].mxu0
      %v3679 = vpop.f32.mrb[0].mxu0
      %3680 = vdwg.mxu0
      %v3681 = vpack.i.b16 %v3358, %v3358
      %v3682 = vlaneseq
      %v3683 = vshrl.u32 %v3682, 7
      %v3684 = vsub.s32 0, %v3683
      %v3685 = vrot.slane %v3681, %v3684
      %3687 = vmatprep.subr.bf16.mxu0 0
      %3688 = vmatpush1.bf16.msra.mxu0 %v841
      %3689 = vmatprep.subr.bf16.mxu0 0
      %3690 = vmatpush1.bf16.msra.mxu0 %v842
      %3691 = vmatprep.subr.bf16.mxu0 0
      %3692 = vmatpush1.bf16.msra.mxu0 %v843
      %3693 = vmatprep.subr.bf16.mxu0 0
      %3694 = vmatpush1.bf16.msra.mxu0 %v844
      %3695 = vmatprep.subr.bf16.mxu0 0
      %3696 = vmatpush1.bf16.msra.mxu0 %v845
      %3697 = vmatprep.subr.bf16.mxu0 0
      %3698 = vmatpush1.bf16.msra.mxu0 %v846
      %3699 = vmatprep.subr.bf16.mxu0 0
      %3700 = vmatpush1.bf16.msra.mxu0 %v847
      %3701 = vmatprep.subr.bf16.mxu0 0
      %3702 = vmatpush1.bf16.msra.mxu0 %v848
      %3703 = vmatprep.subr.bf16.mxu0 0
      %3704 = vmatpush1.bf16.msra.mxu0 0
      %3705 = vmatprep.subr.bf16.mxu0 0
      %3706 = vmatpush1.bf16.msra.mxu0 0
      %3707 = vmatprep.subr.bf16.mxu0 0
      %3708 = vmatpush1.bf16.msra.mxu0 0
      %3709 = vmatprep.subr.bf16.mxu0 0
      %3710 = vmatpush1.bf16.msra.mxu0 0
      %3711 = vmatprep.subr.bf16.mxu0 0
      %3712 = vmatpush1.bf16.msra.mxu0 0
      %3713 = vmatprep.subr.bf16.mxu0 0
      %3714 = vmatpush1.bf16.msra.mxu0 0
      %3715 = vmatprep.subr.bf16.mxu0 0
      %3716 = vmatpush1.bf16.msra.mxu0 0
      %3717 = vmatprep.subr.bf16.mxu0 0
      %3718 = vmatpush1.bf16.msra.mxu0 0
      %3719 = vmatprep.mubr.bf16.mxu0 0
      %3720 = vmatmul.mubr.bf16.gmra.mrb[0].mxu0 %v3685
      %v3721 = vpop.f32.mrb[0].mxu0
      %v3722 = vadd.f32 0.0, %v3721
      %v3723 = vpop.f32.mrb[0].mxu0
      %v3724 = vpop.f32.mrb[0].mxu0
      %v3725 = vpop.f32.mrb[0].mxu0
      %3726 = vdwg.mxu0
      %s3727 = smul.u32 1, 1
      %s3728 = sshll.u32 %s3727, 4
      %3729 = dma.done [#allocation4], %s3728
      %s3730 = sshll.u32 %s3727, 4
      %3731 = dma.done %s171, %s3730
      %s3732 = sshll.u32 %s3727, 4
      %3733 = dma.done %s187, %s3732
      %s3734 = sshll.u32 %s3727, 4
      %3735 = dma.done %s203, %s3734
      %s3736 = sshll.u32 %s3727, 4
      %3737 = dma.done %s219, %s3736
      %s3738 = sshll.u32 %s3727, 4
      %3739 = dma.done %s235, %s3738
      %s3740 = sshll.u32 %s3727, 4
      %3741 = dma.done %s251, %s3740
      %s3742 = sshll.u32 %s3727, 4
      %3743 = dma.done %s267, %s3742
      %v3744 = vld [vmem:[#allocation2] sm:$0xff]
      %v3745 = vpack.c.bf16 %v3744, %v3744
      %v3746 = vpack.c.bf16 %v3400, %v3400
      %v3747 = vpack.c.bf16 %v3446, %v3446
      %v3748 = vpack.c.bf16 %v3492, %v3492
      %v3749 = vpack.c.bf16 %v3538, %v3538
      %v3750 = vpack.c.bf16 %v3584, %v3584
      %v3751 = vpack.c.bf16 %v3630, %v3630
      %v3752 = vpack.c.bf16 %v3676, %v3676
      %v3753 = vpack.c.bf16 %v3722, %v3722
      %v3762 = vunpack.c.l.b16 %v3746
      %v3763 = vunpack.c.l.b16 %v3747
      %v3764 = vunpack.c.l.b16 %v3748
      %v3765 = vunpack.c.l.b16 %v3749
      %v3766 = vunpack.c.l.b16 %v3750
      %v3767 = vunpack.c.l.b16 %v3751
      %v3768 = vunpack.c.l.b16 %v3752
      %v3769 = vunpack.c.l.b16 %v3753
      %v3770 = vpack.c.b16 %v3762, %v3762
      %v3771 = vpack.c.b16 %v3763, %v3763
      %v3772 = vpack.c.b16 %v3764, %v3764
      %v3773 = vpack.c.b16 %v3765, %v3765
      %v3774 = vpack.c.b16 %v3766, %v3766
      %v3775 = vpack.c.b16 %v3767, %v3767
      %v3776 = vpack.c.b16 %v3768, %v3768
      %v3777 = vpack.c.b16 %v3769, %v3769
      %v3778 = vunpack.c.l.b16 %v3770
      %v3779 = vunpack.c.l.b16 %v3771
      %v3780 = vunpack.c.l.b16 %v3772
      %v3781 = vunpack.c.l.b16 %v3773
      %v3782 = vunpack.c.l.b16 %v3774
      %v3783 = vunpack.c.l.b16 %v3775
      %v3784 = vunpack.c.l.b16 %v3776
      %v3785 = vunpack.c.l.b16 %v3777
      %v3786 = vrot.slane %v3779, 7
      %v3787 = vsel %vm3300, %v3786, %v3778
      %v3788 = vrot.slane %v3780, 6
      %v3789 = vsel %vm3302, %v3788, %v3787
      %v3790 = vrot.slane %v3781, 5
      %v3791 = vsel %vm3304, %v3790, %v3789
      %v3792 = vrot.slane %v3782, 4
      %v3793 = vsel %vm3306, %v3792, %v3791
      %v3794 = vrot.slane %v3783, 3
      %v3795 = vsel %vm3308, %v3794, %v3793
      %v3796 = vrot.slane %v3784, 2
      %v3797 = vsel %vm3310, %v3796, %v3795
      %v3798 = vrot.slane %v3785, 1
      %v3799 = vsel %vm3312, %v3798, %v3797
      %v3800 = vpack.c.b16 %v3799, %v3799
      %3802 = vst [vmem:[#allocation3] sm:$0xf] %v3800
      %3803 = vst [vmem:[#allocation3 + $0x4] sm:$0xf] %v3745
      %v3804 = vld [vmem:[#allocation3] sm:$0xff]
      %v3805 = vld [vmem:[#allocation15] sm:$0xff]
      %v3806 = vld [vmem:[#allocation15 + $0x8] sm:$0xf]
      %v3807 = vld [vmem:[#allocation15 + $0xc] sm:$0xff]
      %v3808 = vld [vmem:[#allocation15 + $0x14] sm:$0xf]
      %v3809 = vld [vmem:[#allocation15 + $0x18] sm:$0xff]
      %v3810 = vld [vmem:[#allocation15 + $0x20] sm:$0xf]
      %v3811 = vld [vmem:[#allocation15 + $0x24] sm:$0xff]
      %v3812 = vld [vmem:[#allocation15 + $0x2c] sm:$0xf]
      %v3813 = vld [vmem:[#allocation15 + $0x30] sm:$0xff]
      %v3814 = vld [vmem:[#allocation15 + $0x38] sm:$0xf]
      %v3815 = vld [vmem:[#allocation15 + $0x3c] sm:$0xff]
      %v3816 = vld [vmem:[#allocation15 + $0x44] sm:$0xf]
      %v3817 = vld [vmem:[#allocation15 + $0x48] sm:$0xff]
      %v3818 = vld [vmem:[#allocation15 + $0x50] sm:$0xf]
      %v3819 = vld [vmem:[#allocation15 + $0x54] sm:$0xff]
      %v3820 = vld [vmem:[#allocation15 + $0x5c] sm:$0xf]
      %v3821 = vld [vmem:[#allocation15 + $0x60] sm:$0xff]
      %v3822 = vld [vmem:[#allocation15 + $0x68] sm:$0xf]
      %v3823 = vld [vmem:[#allocation15 + $0x6c] sm:$0xff]
      %v3824 = vld [vmem:[#allocation15 + $0x74] sm:$0xf]
      %v3825 = vld [vmem:[#allocation15 + $0x78] sm:$0xff]
      %v3826 = vld [vmem:[#allocation15 + $0x80] sm:$0xf]
      %v3827 = vld [vmem:[#allocation15 + $0x84] sm:$0xff]
      %v3828 = vld [vmem:[#allocation15 + $0x8c] sm:$0xf]
      %v3829 = vld [vmem:[#allocation15 + $0x90] sm:$0xff]
      %v3830 = vld [vmem:[#allocation15 + $0x98] sm:$0xf]
      %v3831 = vld [vmem:[#allocation15 + $0x9c] sm:$0xff]
      %v3832 = vld [vmem:[#allocation15 + $0xa4] sm:$0xf]
      %v3833 = vld [vmem:[#allocation15 + $0xa8] sm:$0xff]
      %v3834 = vld [vmem:[#allocation15 + $0xb0] sm:$0xf]
      %v3835 = vld [vmem:[#allocation15 + $0xb4] sm:$0xff]
      %v3836 = vld [vmem:[#allocation15 + $0xbc] sm:$0xf]
      %v3837 = vld [vmem:[#allocation15 + $0xc0] sm:$0xff]
      %v3838 = vld [vmem:[#allocation15 + $0xc8] sm:$0xf]
      %v3839 = vld [vmem:[#allocation15 + $0xcc] sm:$0xff]
      %v3840 = vld [vmem:[#allocation15 + $0xd4] sm:$0xf]
      %v3841 = vld [vmem:[#allocation15 + $0xd8] sm:$0xff]
      %v3842 = vld [vmem:[#allocation15 + $0xe0] sm:$0xf]
      %v3843 = vld [vmem:[#allocation15 + $0xe4] sm:$0xff]
      %v3844 = vld [vmem:[#allocation15 + $0xec] sm:$0xf]
      %v3845 = vld [vmem:[#allocation15 + $0xf0] sm:$0xff]
      %v3846 = vld [vmem:[#allocation15 + $0xf8] sm:$0xf]
      %v3847 = vld [vmem:[#allocation15 + $0xfc] sm:$0xff]
      %v3848 = vld [vmem:[#allocation15 + $0x104] sm:$0xf]
      %v3849 = vld [vmem:[#allocation15 + $0x108] sm:$0xff]
      %v3850 = vld [vmem:[#allocation15 + $0x110] sm:$0xf]
      %v3851 = vld [vmem:[#allocation15 + $0x114] sm:$0xff]
      %v3852 = vld [vmem:[#allocation15 + $0x11c] sm:$0xf]
      %v3853 = vld [vmem:[#allocation15 + $0x120] sm:$0xff]
      %v3854 = vld [vmem:[#allocation15 + $0x128] sm:$0xf]
      %v3855 = vld [vmem:[#allocation15 + $0x12c] sm:$0xff]
      %v3856 = vld [vmem:[#allocation15 + $0x134] sm:$0xf]
      %v3857 = vld [vmem:[#allocation15 + $0x138] sm:$0xff]
      %v3858 = vld [vmem:[#allocation15 + $0x140] sm:$0xf]
      %v3859 = vld [vmem:[#allocation15 + $0x144] sm:$0xff]
      %v3860 = vld [vmem:[#allocation15 + $0x14c] sm:$0xf]
      %v3861 = vld [vmem:[#allocation15 + $0x150] sm:$0xff]
      %v3862 = vld [vmem:[#allocation15 + $0x158] sm:$0xf]
      %v3863 = vld [vmem:[#allocation15 + $0x15c] sm:$0xff]
      %v3864 = vld [vmem:[#allocation15 + $0x164] sm:$0xf]
      %v3865 = vld [vmem:[#allocation15 + $0x168] sm:$0xff]
      %v3866 = vld [vmem:[#allocation15 + $0x170] sm:$0xf]
      %v3867 = vld [vmem:[#allocation15 + $0x174] sm:$0xff]
      %v3868 = vld [vmem:[#allocation15 + $0x17c] sm:$0xf]
      %v3869 = vld [vmem:[%s10] sm:$0x7]
      %v3871 = vlaneseq
      %v3872 = vshrl.u32 %v3871, 7
      %v3873 = vsub.s32 0, %v3872
      %v3874 = vrot.slane %v3869, %v3873
      %v3875 = vlaneseq
      %v3876 = vshrl.u32 %v3875, 7
      %v3877 = vsub.s32 1, %v3876
      %v3878 = vrot.slane %v3869, %v3877
      %v3879 = vlaneseq
      %v3880 = vshrl.u32 %v3879, 7
      %v3881 = vsub.s32 2, %v3880
      %v3882 = vrot.slane %v3869, %v3881
      %v3887 = vunpack.c.l.b16 %v3804
      %v3888 = vunpack.c.h.b16 %v3804
      %v3889 = vpack.c.b16 %v3887, %v3887
      %v3890 = vpack.c.b16 %v3888, %v3888
      %v3957 = vunpack.c.l.b16 %v3805
      %v3958 = vunpack.c.h.b16 %v3805
      %v3959 = vunpack.c.l.b16 %v3806
      %v3960 = vunpack.c.l.b16 %v3807
      %v3961 = vunpack.c.h.b16 %v3807
      %v3962 = vunpack.c.l.b16 %v3808
      %v3963 = vunpack.c.l.b16 %v3809
      %v3964 = vunpack.c.h.b16 %v3809
      %v3965 = vunpack.c.l.b16 %v3810
      %v3966 = vunpack.c.l.b16 %v3811
      %v3967 = vunpack.c.h.b16 %v3811
      %v3968 = vunpack.c.l.b16 %v3812
      %v3969 = vunpack.c.l.b16 %v3813
      %v3970 = vunpack.c.h.b16 %v3813
      %v3971 = vunpack.c.l.b16 %v3814
      %v3972 = vunpack.c.l.b16 %v3815
      %v3973 = vunpack.c.h.b16 %v3815
      %v3974 = vunpack.c.l.b16 %v3816
      %v3975 = vunpack.c.l.b16 %v3817
      %v3976 = vunpack.c.h.b16 %v3817
      %v3977 = vunpack.c.l.b16 %v3818
      %v3978 = vunpack.c.l.b16 %v3819
      %v3979 = vunpack.c.h.b16 %v3819
      %v3980 = vunpack.c.l.b16 %v3820
      %v3981 = vunpack.c.l.b16 %v3821
      %v3982 = vunpack.c.h.b16 %v3821
      %v3983 = vunpack.c.l.b16 %v3822
      %v3984 = vunpack.c.l.b16 %v3823
      %v3985 = vunpack.c.h.b16 %v3823
      %v3986 = vunpack.c.l.b16 %v3824
      %v3987 = vunpack.c.l.b16 %v3825
      %v3988 = vunpack.c.h.b16 %v3825
      %v3989 = vunpack.c.l.b16 %v3826
      %v3990 = vunpack.c.l.b16 %v3827
      %v3991 = vunpack.c.h.b16 %v3827
      %v3992 = vunpack.c.l.b16 %v3828
      %v3993 = vunpack.c.l.b16 %v3829
      %v3994 = vunpack.c.h.b16 %v3829
      %v3995 = vunpack.c.l.b16 %v3830
      %v3996 = vunpack.c.l.b16 %v3831
      %v3997 = vunpack.c.h.b16 %v3831
      %v3998 = vunpack.c.l.b16 %v3832
      %v3999 = vunpack.c.l.b16 %v3833
      %v4000 = vunpack.c.h.b16 %v3833
      %v4001 = vunpack.c.l.b16 %v3834
      %v4002 = vunpack.c.l.b16 %v3835
      %v4003 = vunpack.c.h.b16 %v3835
      %v4004 = vunpack.c.l.b16 %v3836
      %v4005 = vunpack.c.l.b16 %v3837
      %v4006 = vunpack.c.h.b16 %v3837
      %v4007 = vunpack.c.l.b16 %v3838
      %v4008 = vunpack.c.l.b16 %v3839
      %v4009 = vunpack.c.h.b16 %v3839
      %v4010 = vunpack.c.l.b16 %v3840
      %v4011 = vunpack.c.l.b16 %v3841
      %v4012 = vunpack.c.h.b16 %v3841
      %v4013 = vunpack.c.l.b16 %v3842
      %v4014 = vunpack.c.l.b16 %v3843
      %v4015 = vunpack.c.h.b16 %v3843
      %v4016 = vunpack.c.l.b16 %v3844
      %v4017 = vunpack.c.l.b16 %v3845
      %v4018 = vunpack.c.h.b16 %v3845
      %v4019 = vunpack.c.l.b16 %v3846
      %v4020 = vunpack.c.l.b16 %v3847
      %v4021 = vunpack.c.h.b16 %v3847
      %v4022 = vunpack.c.l.b16 %v3848
      %v4023 = vunpack.c.l.b16 %v3849
      %v4024 = vunpack.c.h.b16 %v3849
      %v4025 = vunpack.c.l.b16 %v3850
      %v4026 = vunpack.c.l.b16 %v3851
      %v4027 = vunpack.c.h.b16 %v3851
      %v4028 = vunpack.c.l.b16 %v3852
      %v4029 = vunpack.c.l.b16 %v3853
      %v4030 = vunpack.c.h.b16 %v3853
      %v4031 = vunpack.c.l.b16 %v3854
      %v4032 = vunpack.c.l.b16 %v3855
      %v4033 = vunpack.c.h.b16 %v3855
      %v4034 = vunpack.c.l.b16 %v3856
      %v4035 = vunpack.c.l.b16 %v3857
      %v4036 = vunpack.c.h.b16 %v3857
      %v4037 = vunpack.c.l.b16 %v3858
      %v4038 = vunpack.c.l.b16 %v3859
      %v4039 = vunpack.c.h.b16 %v3859
      %v4040 = vunpack.c.l.b16 %v3860
      %v4041 = vunpack.c.l.b16 %v3861
      %v4042 = vunpack.c.h.b16 %v3861
      %v4043 = vunpack.c.l.b16 %v3862
      %v4044 = vunpack.c.l.b16 %v3863
      %v4045 = vunpack.c.h.b16 %v3863
      %v4046 = vunpack.c.l.b16 %v3864
      %v4047 = vunpack.c.l.b16 %v3865
      %v4048 = vunpack.c.h.b16 %v3865
      %v4049 = vunpack.c.l.b16 %v3866
      %v4050 = vunpack.c.l.b16 %v3867
      %v4051 = vunpack.c.h.b16 %v3867
      %v4052 = vunpack.c.l.b16 %v3868
      %v4053 = vpack.c.b16 %v3960, %v3957
      %v4054 = vpack.c.b16 %v3961, %v3958
      %v4055 = vpack.c.b16 %v3962, %v3959
      %v4056 = vpack.c.b16 %v3966, %v3963
      %v4057 = vpack.c.b16 %v3967, %v3964
      %v4058 = vpack.c.b16 %v3968, %v3965
      %v4059 = vpack.c.b16 %v3972, %v3969
      %v4060 = vpack.c.b16 %v3973, %v3970
      %v4061 = vpack.c.b16 %v3974, %v3971
      %v4062 = vpack.c.b16 %v3978, %v3975
      %v4063 = vpack.c.b16 %v3979, %v3976
      %v4064 = vpack.c.b16 %v3980, %v3977
      %v4065 = vpack.c.b16 %v3984, %v3981
      %v4066 = vpack.c.b16 %v3985, %v3982
      %v4067 = vpack.c.b16 %v3986, %v3983
      %v4068 = vpack.c.b16 %v3990, %v3987
      %v4069 = vpack.c.b16 %v3991, %v3988
      %v4070 = vpack.c.b16 %v3992, %v3989
      %v4071 = vpack.c.b16 %v3996, %v3993
      %v4072 = vpack.c.b16 %v3997, %v3994
      %v4073 = vpack.c.b16 %v3998, %v3995
      %v4074 = vpack.c.b16 %v4002, %v3999
      %v4075 = vpack.c.b16 %v4003, %v4000
      %v4076 = vpack.c.b16 %v4004, %v4001
      %v4077 = vpack.c.b16 %v4008, %v4005
      %v4078 = vpack.c.b16 %v4009, %v4006
      %v4079 = vpack.c.b16 %v4010, %v4007
      %v4080 = vpack.c.b16 %v4014, %v4011
      %v4081 = vpack.c.b16 %v4015, %v4012
      %v4082 = vpack.c.b16 %v4016, %v4013
      %v4083 = vpack.c.b16 %v4020, %v4017
      %v4084 = vpack.c.b16 %v4021, %v4018
      %v4085 = vpack.c.b16 %v4022, %v4019
      %v4086 = vpack.c.b16 %v4026, %v4023
      %v4087 = vpack.c.b16 %v4027, %v4024
      %v4088 = vpack.c.b16 %v4028, %v4025
      %v4089 = vpack.c.b16 %v4032, %v4029
      %v4090 = vpack.c.b16 %v4033, %v4030
      %v4091 = vpack.c.b16 %v4034, %v4031
      %v4092 = vpack.c.b16 %v4038, %v4035
      %v4093 = vpack.c.b16 %v4039, %v4036
      %v4094 = vpack.c.b16 %v4040, %v4037
      %v4095 = vpack.c.b16 %v4044, %v4041
      %v4096 = vpack.c.b16 %v4045, %v4042
      %v4097 = vpack.c.b16 %v4046, %v4043
      %v4098 = vpack.c.b16 %v4050, %v4047
      %v4099 = vpack.c.b16 %v4051, %v4048
      %v4100 = vpack.c.b16 %v4052, %v4049
      %4149 = vmatprep.subr.bf16.mxu0 %v4054
      %4150 = vmatpush1.bf16.msra.mxu0 %v4053
      %4151 = vmatprep.subr.bf16.mxu0 %v4057
      %4152 = vmatpush1.bf16.msra.mxu0 %v4056
      %4153 = vmatprep.subr.bf16.mxu0 %v4060
      %4154 = vmatpush1.bf16.msra.mxu0 %v4059
      %4155 = vmatprep.subr.bf16.mxu0 %v4063
      %4156 = vmatpush1.bf16.msra.mxu0 %v4062
      %4157 = vmatprep.subr.bf16.mxu0 %v4066
      %4158 = vmatpush1.bf16.msra.mxu0 %v4065
      %4159 = vmatprep.subr.bf16.mxu0 %v4069
      %4160 = vmatpush1.bf16.msra.mxu0 %v4068
      %4161 = vmatprep.subr.bf16.mxu0 %v4072
      %4162 = vmatpush1.bf16.msra.mxu0 %v4071
      %4163 = vmatprep.subr.bf16.mxu0 %v4075
      %4164 = vmatpush1.bf16.msra.mxu0 %v4074
      %4165 = vmatprep.subr.bf16.mxu0 %v4078
      %4166 = vmatpush1.bf16.msra.mxu0 %v4077
      %4167 = vmatprep.subr.bf16.mxu0 %v4081
      %4168 = vmatpush1.bf16.msra.mxu0 %v4080
      %4169 = vmatprep.subr.bf16.mxu0 %v4084
      %4170 = vmatpush1.bf16.msra.mxu0 %v4083
      %4171 = vmatprep.subr.bf16.mxu0 %v4087
      %4172 = vmatpush1.bf16.msra.mxu0 %v4086
      %4173 = vmatprep.subr.bf16.mxu0 %v4090
      %4174 = vmatpush1.bf16.msra.mxu0 %v4089
      %4175 = vmatprep.subr.bf16.mxu0 %v4093
      %4176 = vmatpush1.bf16.msra.mxu0 %v4092
      %4177 = vmatprep.subr.bf16.mxu0 %v4096
      %4178 = vmatpush1.bf16.msra.mxu0 %v4095
      %4179 = vmatprep.subr.bf16.mxu0 %v4099
      %4180 = vmatpush1.bf16.msra.mxu0 %v4098
      %4181 = vmatprep.mubr.bf16.mxu0 %v3890
      %4182 = vmatmul.mubr.bf16.gmra.mrb[0].mxu0 %v3889
      %v4183 = vpop.f32.mrb[0].mxu0
      %v4184 = vadd.f32 %v3874, %v4183
      %v4185 = vpop.f32.mrb[0].mxu0
      %v4186 = vadd.f32 %v3878, %v4185
      %v4187 = vpop.f32.mrb[0].mxu0
      %v4188 = vpop.f32.mrb[0].mxu0
      %4189 = vdwg.mxu0
      %4190 = vmatprep.subr.bf16.mxu0 0
      %4191 = vmatpush1.bf16.msra.mxu0 %v4055
      %4192 = vmatprep.subr.bf16.mxu0 0
      %4193 = vmatpush1.bf16.msra.mxu0 %v4058
      %4194 = vmatprep.subr.bf16.mxu0 0
      %4195 = vmatpush1.bf16.msra.mxu0 %v4061
      %4196 = vmatprep.subr.bf16.mxu0 0
      %4197 = vmatpush1.bf16.msra.mxu0 %v4064
      %4198 = vmatprep.subr.bf16.mxu0 0
      %4199 = vmatpush1.bf16.msra.mxu0 %v4067
      %4200 = vmatprep.subr.bf16.mxu0 0
      %4201 = vmatpush1.bf16.msra.mxu0 %v4070
      %4202 = vmatprep.subr.bf16.mxu0 0
      %4203 = vmatpush1.bf16.msra.mxu0 %v4073
      %4204 = vmatprep.subr.bf16.mxu0 0
      %4205 = vmatpush1.bf16.msra.mxu0 %v4076
      %4206 = vmatprep.subr.bf16.mxu0 0
      %4207 = vmatpush1.bf16.msra.mxu0 %v4079
      %4208 = vmatprep.subr.bf16.mxu0 0
      %4209 = vmatpush1.bf16.msra.mxu0 %v4082
      %4210 = vmatprep.subr.bf16.mxu0 0
      %4211 = vmatpush1.bf16.msra.mxu0 %v4085
      %4212 = vmatprep.subr.bf16.mxu0 0
      %4213 = vmatpush1.bf16.msra.mxu0 %v4088
      %4214 = vmatprep.subr.bf16.mxu0 0
      %4215 = vmatpush1.bf16.msra.mxu0 %v4091
      %4216 = vmatprep.subr.bf16.mxu0 0
      %4217 = vmatpush1.bf16.msra.mxu0 %v4094
      %4218 = vmatprep.subr.bf16.mxu0 0
      %4219 = vmatpush1.bf16.msra.mxu0 %v4097
      %4220 = vmatprep.subr.bf16.mxu0 0
      %4221 = vmatpush1.bf16.msra.mxu0 %v4100
      %4222 = vmatprep.mubr.bf16.mxu0 %v3890
      %4223 = vmatmul.mubr.bf16.gmra.mrb[0].mxu0 %v3889
      %v4224 = vpop.f32.mrb[0].mxu0
      %v4225 = vadd.f32 %v3882, %v4224
      %v4226 = vpop.f32.mrb[0].mxu0
      %v4227 = vpop.f32.mrb[0].mxu0
      %v4228 = vpop.f32.mrb[0].mxu0
      %4229 = vdwg.mxu0
      %v4230 = vld [vmem:[#allocation16] sm:$0xff]
      %v4231 = vld [vmem:[#allocation16 + $0x8] sm:$0xf]
      %v4232 = vld [vmem:[#allocation16 + $0xc] sm:$0xff]
      %v4233 = vld [vmem:[#allocation16 + $0x14] sm:$0xf]
      %v4234 = vld [vmem:[#allocation16 + $0x18] sm:$0xff]
      %v4235 = vld [vmem:[#allocation16 + $0x20] sm:$0xf]
      %v4236 = vld [vmem:[#allocation16 + $0x24] sm:$0xff]
      %v4237 = vld [vmem:[#allocation16 + $0x2c] sm:$0xf]
      %v4238 = vld [vmem:[#allocation16 + $0x30] sm:$0xff]
      %v4239 = vld [vmem:[#allocation16 + $0x38] sm:$0xf]
      %v4240 = vld [vmem:[#allocation16 + $0x3c] sm:$0xff]
      %v4241 = vld [vmem:[#allocation16 + $0x44] sm:$0xf]
      %v4242 = vld [vmem:[#allocation16 + $0x48] sm:$0xff]
      %v4243 = vld [vmem:[#allocation16 + $0x50] sm:$0xf]
      %v4244 = vld [vmem:[#allocation16 + $0x54] sm:$0xff]
      %v4245 = vld [vmem:[#allocation16 + $0x5c] sm:$0xf]
      %v4246 = vld [vmem:[#allocation16 + $0x60] sm:$0xff]
      %v4247 = vld [vmem:[#allocation16 + $0x68] sm:$0xf]
      %v4248 = vld [vmem:[#allocation16 + $0x6c] sm:$0xff]
      %v4249 = vld [vmem:[#allocation16 + $0x74] sm:$0xf]
      %v4250 = vld [vmem:[#allocation16 + $0x78] sm:$0xff]
      %v4251 = vld [vmem:[#allocation16 + $0x80] sm:$0xf]
      %v4252 = vld [vmem:[#allocation16 + $0x84] sm:$0xff]
      %v4253 = vld [vmem:[#allocation16 + $0x8c] sm:$0xf]
      %v4254 = vld [vmem:[#allocation16 + $0x90] sm:$0xff]
      %v4255 = vld [vmem:[#allocation16 + $0x98] sm:$0xf]
      %v4256 = vld [vmem:[#allocation16 + $0x9c] sm:$0xff]
      %v4257 = vld [vmem:[#allocation16 + $0xa4] sm:$0xf]
      %v4258 = vld [vmem:[#allocation16 + $0xa8] sm:$0xff]
      %v4259 = vld [vmem:[#allocation16 + $0xb0] sm:$0xf]
      %v4260 = vld [vmem:[#allocation16 + $0xb4] sm:$0xff]
      %v4261 = vld [vmem:[#allocation16 + $0xbc] sm:$0xf]
      %v4262 = vld [vmem:[%s12] sm:$0x7]
      %v4264 = vlaneseq
      %v4265 = vshrl.u32 %v4264, 7
      %v4266 = vsub.s32 0, %v4265
      %v4267 = vrot.slane %v4262, %v4266
      %v4268 = vlaneseq
      %v4269 = vshrl.u32 %v4268, 7
      %v4270 = vsub.s32 1, %v4269
      %v4271 = vrot.slane %v4262, %v4270
      %v4272 = vlaneseq
      %v4273 = vshrl.u32 %v4272, 7
      %v4274 = vsub.s32 2, %v4273
      %v4275 = vrot.slane %v4262, %v4274
      %v4311 = vunpack.c.l.b16 %v4230
      %v4312 = vunpack.c.h.b16 %v4230
      %v4313 = vunpack.c.l.b16 %v4231
      %v4314 = vunpack.c.l.b16 %v4232
      %v4315 = vunpack.c.h.b16 %v4232
      %v4316 = vunpack.c.l.b16 %v4233
      %v4317 = vunpack.c.l.b16 %v4234
      %v4318 = vunpack.c.h.b16 %v4234
      %v4319 = vunpack.c.l.b16 %v4235
      %v4320 = vunpack.c.l.b16 %v4236
      %v4321 = vunpack.c.h.b16 %v4236
      %v4322 = vunpack.c.l.b16 %v4237
      %v4323 = vunpack.c.l.b16 %v4238
      %v4324 = vunpack.c.h.b16 %v4238
      %v4325 = vunpack.c.l.b16 %v4239
      %v4326 = vunpack.c.l.b16 %v4240
      %v4327 = vunpack.c.h.b16 %v4240
      %v4328 = vunpack.c.l.b16 %v4241
      %v4329 = vunpack.c.l.b16 %v4242
      %v4330 = vunpack.c.h.b16 %v4242
      %v4331 = vunpack.c.l.b16 %v4243
      %v4332 = vunpack.c.l.b16 %v4244
      %v4333 = vunpack.c.h.b16 %v4244
      %v4334 = vunpack.c.l.b16 %v4245
      %v4335 = vunpack.c.l.b16 %v4246
      %v4336 = vunpack.c.h.b16 %v4246
      %v4337 = vunpack.c.l.b16 %v4247
      %v4338 = vunpack.c.l.b16 %v4248
      %v4339 = vunpack.c.h.b16 %v4248
      %v4340 = vunpack.c.l.b16 %v4249
      %v4341 = vunpack.c.l.b16 %v4250
      %v4342 = vunpack.c.h.b16 %v4250
      %v4343 = vunpack.c.l.b16 %v4251
      %v4344 = vunpack.c.l.b16 %v4252
      %v4345 = vunpack.c.h.b16 %v4252
      %v4346 = vunpack.c.l.b16 %v4253
      %v4347 = vunpack.c.l.b16 %v4254
      %v4348 = vunpack.c.h.b16 %v4254
      %v4349 = vunpack.c.l.b16 %v4255
      %v4350 = vunpack.c.l.b16 %v4256
      %v4351 = vunpack.c.h.b16 %v4256
      %v4352 = vunpack.c.l.b16 %v4257
      %v4353 = vunpack.c.l.b16 %v4258
      %v4354 = vunpack.c.h.b16 %v4258
      %v4355 = vunpack.c.l.b16 %v4259
      %v4356 = vunpack.c.l.b16 %v4260
      %v4357 = vunpack.c.h.b16 %v4260
      %v4358 = vunpack.c.l.b16 %v4261
      %v4359 = vpack.c.b16 %v4314, %v4311
      %v4360 = vpack.c.b16 %v4315, %v4312
      %v4361 = vpack.c.b16 %v4316, %v4313
      %v4362 = vpack.c.b16 %v4320, %v4317
      %v4363 = vpack.c.b16 %v4321, %v4318
      %v4364 = vpack.c.b16 %v4322, %v4319
      %v4365 = vpack.c.b16 %v4326, %v4323
      %v4366 = vpack.c.b16 %v4327, %v4324
      %v4367 = vpack.c.b16 %v4328, %v4325
      %v4368 = vpack.c.b16 %v4332, %v4329
      %v4369 = vpack.c.b16 %v4333, %v4330
      %v4370 = vpack.c.b16 %v4334, %v4331
      %v4371 = vpack.c.b16 %v4338, %v4335
      %v4372 = vpack.c.b16 %v4339, %v4336
      %v4373 = vpack.c.b16 %v4340, %v4337
      %v4374 = vpack.c.b16 %v4344, %v4341
      %v4375 = vpack.c.b16 %v4345, %v4342
      %v4376 = vpack.c.b16 %v4346, %v4343
      %v4377 = vpack.c.b16 %v4350, %v4347
      %v4378 = vpack.c.b16 %v4351, %v4348
      %v4379 = vpack.c.b16 %v4352, %v4349
      %v4380 = vpack.c.b16 %v4356, %v4353
      %v4381 = vpack.c.b16 %v4357, %v4354
      %v4382 = vpack.c.b16 %v4358, %v4355
      %4407 = vmatprep.subr.bf16.mxu0 %v4360
      %4408 = vmatpush1.bf16.msra.mxu0 %v4359
      %4409 = vmatprep.subr.bf16.mxu0 %v4363
      %4410 = vmatpush1.bf16.msra.mxu0 %v4362
      %4411 = vmatprep.subr.bf16.mxu0 %v4366
      %4412 = vmatpush1.bf16.msra.mxu0 %v4365
      %4413 = vmatprep.subr.bf16.mxu0 %v4369
      %4414 = vmatpush1.bf16.msra.mxu0 %v4368
      %4415 = vmatprep.subr.bf16.mxu0 %v4372
      %4416 = vmatpush1.bf16.msra.mxu0 %v4371
      %4417 = vmatprep.subr.bf16.mxu0 %v4375
      %4418 = vmatpush1.bf16.msra.mxu0 %v4374
      %4419 = vmatprep.subr.bf16.mxu0 %v4378
      %4420 = vmatpush1.bf16.msra.mxu0 %v4377
      %4421 = vmatprep.subr.bf16.mxu0 %v4381
      %4422 = vmatpush1.bf16.msra.mxu0 %v4380
      %4423 = vmatprep.subr.bf16.mxu0 0
      %4424 = vmatpush1.bf16.msra.mxu0 0
      %4425 = vmatprep.subr.bf16.mxu0 0
      %4426 = vmatpush1.bf16.msra.mxu0 0
      %4427 = vmatprep.subr.bf16.mxu0 0
      %4428 = vmatpush1.bf16.msra.mxu0 0
      %4429 = vmatprep.subr.bf16.mxu0 0
      %4430 = vmatpush1.bf16.msra.mxu0 0
      %4431 = vmatprep.subr.bf16.mxu0 0
      %4432 = vmatpush1.bf16.msra.mxu0 0
      %4433 = vmatprep.subr.bf16.mxu0 0
      %4434 = vmatpush1.bf16.msra.mxu0 0
      %4435 = vmatprep.subr.bf16.mxu0 0
      %4436 = vmatpush1.bf16.msra.mxu0 0
      %4437 = vmatprep.subr.bf16.mxu0 0
      %4438 = vmatpush1.bf16.msra.mxu0 0
      %4439 = vmatprep.mubr.bf16.mxu0 0
      %4440 = vmatmul.mubr.bf16.gmra.mrb[0].mxu0 %v280
      %v4441 = vpop.f32.mrb[0].mxu0
      %v4442 = vadd.f32 %v4267, %v4441
      %v4443 = vpop.f32.mrb[0].mxu0
      %v4444 = vadd.f32 %v4271, %v4443
      %v4445 = vpop.f32.mrb[0].mxu0
      %v4446 = vpop.f32.mrb[0].mxu0
      %4447 = vdwg.mxu0
      %4448 = vmatprep.subr.bf16.mxu0 0
      %4449 = vmatpush1.bf16.msra.mxu0 %v4361
      %4450 = vmatprep.subr.bf16.mxu0 0
      %4451 = vmatpush1.bf16.msra.mxu0 %v4364
      %4452 = vmatprep.subr.bf16.mxu0 0
      %4453 = vmatpush1.bf16.msra.mxu0 %v4367
      %4454 = vmatprep.subr.bf16.mxu0 0
      %4455 = vmatpush1.bf16.msra.mxu0 %v4370
      %4456 = vmatprep.subr.bf16.mxu0 0
      %4457 = vmatpush1.bf16.msra.mxu0 %v4373
      %4458 = vmatprep.subr.bf16.mxu0 0
      %4459 = vmatpush1.bf16.msra.mxu0 %v4376
      %4460 = vmatprep.subr.bf16.mxu0 0
      %4461 = vmatpush1.bf16.msra.mxu0 %v4379
      %4462 = vmatprep.subr.bf16.mxu0 0
      %4463 = vmatpush1.bf16.msra.mxu0 %v4382
      %4464 = vmatprep.subr.bf16.mxu0 0
      %4465 = vmatpush1.bf16.msra.mxu0 0
      %4466 = vmatprep.subr.bf16.mxu0 0
      %4467 = vmatpush1.bf16.msra.mxu0 0
      %4468 = vmatprep.subr.bf16.mxu0 0
      %4469 = vmatpush1.bf16.msra.mxu0 0
      %4470 = vmatprep.subr.bf16.mxu0 0
      %4471 = vmatpush1.bf16.msra.mxu0 0
      %4472 = vmatprep.subr.bf16.mxu0 0
      %4473 = vmatpush1.bf16.msra.mxu0 0
      %4474 = vmatprep.subr.bf16.mxu0 0
      %4475 = vmatpush1.bf16.msra.mxu0 0
      %4476 = vmatprep.subr.bf16.mxu0 0
      %4477 = vmatpush1.bf16.msra.mxu0 0
      %4478 = vmatprep.subr.bf16.mxu0 0
      %4479 = vmatpush1.bf16.msra.mxu0 0
      %4480 = vmatprep.mubr.bf16.mxu0 0
      %4481 = vmatmul.mubr.bf16.gmra.mrb[0].mxu0 %v280
      %v4482 = vpop.f32.mrb[0].mxu0
      %v4483 = vadd.f32 %v4275, %v4482
      %v4484 = vpop.f32.mrb[0].mxu0
      %v4485 = vpop.f32.mrb[0].mxu0
      %v4486 = vpop.f32.mrb[0].mxu0
      %4487 = vdwg.mxu0
      %v4488 = vadd.f32 %v4184, %v4442
      %v4489 = vxor.u32 %v4488, 2147483648
      %v4490 = vmul.f32 %v4489, 1.442695
      %v4491 = vpow.pop %v4490
      %v4492 = vadd.f32 %v4491, 1.0
      %v4493 = vrcp.pop %v4492
      %v4494 = vmul.f32 1.0, %v4493
      %v4495 = vadd.f32 %v4186, %v4444
      %v4496 = vxor.u32 %v4495, 2147483648
      %v4497 = vmul.f32 %v4496, 1.442695
      %v4498 = vpow.pop %v4497
      %v4499 = vadd.f32 %v4498, 1.0
      %v4500 = vrcp.pop %v4499
      %v4501 = vmul.f32 1.0, %v4500
      %v4502 = vmul.f32 %v4494, %v4483
      %v4503 = vadd.f32 %v4225, %v4502
      %v4504 = vtanh.pop %v4503
      %v4505 = vsub.f32 1.0, %v4501
      %v4506 = vmul.f32 %v4505, %v4504
      %v4507 = vmul.f32 %v4501, %v279
      %v4508 = vadd.f32 %v4506, %v4507
      %v4509 = vpack.c.bf16 %v4508, %v4508
      %4510 = vst [vmem:[#allocation3 + $0x8] sm:$0xf] %v4509
      %4511 = vst [vmem:[#allocation20] sm:$0xff] %v4508
      %4512 = vst [vmem:[#allocation22] sm:$0xff] %v3324
    $region85: #{tpu_custom_call.1} parent=1 // pred_fallthru
      _
    %v4513 = vld [vmem:[#allocation3] sm:$0xff]
    %v4514 = vld [vmem:[#allocation3 + $0x8] sm:$0xf]
    %v4515 = vld [vmem:[#allocation18] sm:$0xff]
    %v4516 = vld [vmem:[#allocation18 + $0x8] sm:$0xff]
    %v4517 = vld [vmem:[#allocation18 + $0x10] sm:$0xff]
    %v4518 = vld [vmem:[#allocation18 + $0x18] sm:$0xff]
    %v4519 = vld [vmem:[#allocation18 + $0x20] sm:$0xff]
    %v4520 = vld [vmem:[#allocation18 + $0x28] sm:$0xff]
    %v4521 = vld [vmem:[#allocation18 + $0x30] sm:$0xff]
    %v4522 = vld [vmem:[#allocation18 + $0x38] sm:$0xff]
    %v4523 = vld [vmem:[#allocation18 + $0x40] sm:$0xff]
    %v4524 = vld [vmem:[#allocation18 + $0x48] sm:$0xff]
    %v4525 = vld [vmem:[#allocation18 + $0x50] sm:$0xff]
    %v4526 = vld [vmem:[#allocation18 + $0x58] sm:$0xff]
    %v4527 = vld [vmem:[#allocation18 + $0x60] sm:$0xff]
    %v4528 = vld [vmem:[#allocation18 + $0x68] sm:$0xff]
    %v4529 = vld [vmem:[#allocation18 + $0x70] sm:$0xff]
    %v4530 = vld [vmem:[#allocation18 + $0x78] sm:$0xff]
    %v4531 = vld [vmem:[#allocation18 + $0x80] sm:$0xff]
    %v4532 = vld [vmem:[#allocation18 + $0x88] sm:$0xff]
    %v4533 = vld [vmem:[#allocation18 + $0x90] sm:$0xff]
    %v4534 = vld [vmem:[#allocation18 + $0x98] sm:$0xff]
    %v4535 = vld [vmem:[#allocation18 + $0xa0] sm:$0xff]
    %v4536 = vld [vmem:[#allocation18 + $0xa8] sm:$0xff]
    %v4537 = vld [vmem:[#allocation18 + $0xb0] sm:$0xff]
    %v4538 = vld [vmem:[#allocation18 + $0xb8] sm:$0xff]
    %v4539 = vld [vmem:[#allocation18 + $0xc0] sm:$0xff]
    %v4540 = vld [vmem:[#allocation18 + $0xc8] sm:$0xff]
    %v4541 = vld [vmem:[#allocation18 + $0xd0] sm:$0xff]
    %v4542 = vld [vmem:[#allocation18 + $0xd8] sm:$0xff]
    %v4543 = vld [vmem:[#allocation18 + $0xe0] sm:$0xff]
    %v4544 = vld [vmem:[#allocation18 + $0xe8] sm:$0xff]
    %v4545 = vld [vmem:[#allocation18 + $0xf0] sm:$0xff]
    %v4546 = vld [vmem:[#allocation18 + $0xf8] sm:$0xff]
    %v4547 = vld [vmem:[#allocation18 + $0x100] sm:$0xff]
    %v4548 = vld [vmem:[#allocation18 + $0x108] sm:$0xff]
    %v4549 = vld [vmem:[#allocation18 + $0x110] sm:$0xff]
    %v4550 = vld [vmem:[#allocation18 + $0x118] sm:$0xff]
    %v4551 = vld [vmem:[#allocation18 + $0x120] sm:$0xff]
    %v4552 = vld [vmem:[#allocation18 + $0x128] sm:$0xff]
    %v4553 = vld [vmem:[#allocation18 + $0x130] sm:$0xff]
    %v4554 = vld [vmem:[#allocation18 + $0x138] sm:$0xff]
    %v4555 = vld [vmem:[#allocation18 + $0x140] sm:$0xff]
    %v4556 = vld [vmem:[#allocation18 + $0x148] sm:$0xff]
    %v4557 = vld [vmem:[#allocation18 + $0x150] sm:$0xff]
    %v4558 = vld [vmem:[#allocation18 + $0x158] sm:$0xff]
    %v4559 = vld [vmem:[#allocation18 + $0x160] sm:$0xff]
    %v4560 = vld [vmem:[#allocation18 + $0x168] sm:$0xff]
    %v4561 = vld [vmem:[#allocation18 + $0x170] sm:$0xff]
    %v4562 = vld [vmem:[#allocation18 + $0x178] sm:$0xff]
    %v4563 = vld [vmem:[%s14] sm:$0x3]
    %v4565 = vlaneseq
    %v4566 = vshrl.u32 %v4565, 7
    %v4567 = vsub.s32 0, %v4566
    %v4568 = vrot.slane %v4563, %v4567
    %v4569 = vlaneseq
    %v4570 = vshrl.u32 %v4569, 7
    %v4571 = vsub.s32 1, %v4570
    %v4572 = vrot.slane %v4563, %v4571
    %v4577 = vunpack.c.l.b16 %v4513
    %v4578 = vunpack.c.h.b16 %v4513
    %v4579 = vunpack.c.l.b16 %v4514
    %v4580 = vpack.c.b16 %v4577, %v4577
    %v4581 = vpack.c.b16 %v4578, %v4578
    %v4582 = vpack.c.b16 %v4579, %v4579
    %v4634 = vunpack.c.l.b16 %v4515
    %v4635 = vunpack.c.h.b16 %v4515
    %v4636 = vunpack.c.l.b16 %v4516
    %v4637 = vunpack.c.h.b16 %v4516
    %v4638 = vunpack.c.l.b16 %v4517
    %v4639 = vunpack.c.h.b16 %v4517
    %v4640 = vunpack.c.l.b16 %v4518
    %v4641 = vunpack.c.h.b16 %v4518
    %v4642 = vunpack.c.l.b16 %v4519
    %v4643 = vunpack.c.h.b16 %v4519
    %v4644 = vunpack.c.l.b16 %v4520
    %v4645 = vunpack.c.h.b16 %v4520
    %v4646 = vunpack.c.l.b16 %v4521
    %v4647 = vunpack.c.h.b16 %v4521
    %v4648 = vunpack.c.l.b16 %v4522
    %v4649 = vunpack.c.h.b16 %v4522
    %v4650 = vunpack.c.l.b16 %v4523
    %v4651 = vunpack.c.h.b16 %v4523
    %v4652 = vunpack.c.l.b16 %v4524
    %v4653 = vunpack.c.h.b16 %v4524
    %v4654 = vunpack.c.l.b16 %v4525
    %v4655 = vunpack.c.h.b16 %v4525
    %v4656 = vunpack.c.l.b16 %v4526
    %v4657 = vunpack.c.h.b16 %v4526
    %v4658 = vunpack.c.l.b16 %v4527
    %v4659 = vunpack.c.h.b16 %v4527
    %v4660 = vunpack.c.l.b16 %v4528
    %v4661 = vunpack.c.h.b16 %v4528
    %v4662 = vunpack.c.l.b16 %v4529
    %v4663 = vunpack.c.h.b16 %v4529
    %v4664 = vunpack.c.l.b16 %v4530
    %v4665 = vunpack.c.h.b16 %v4530
    %v4666 = vunpack.c.l.b16 %v4531
    %v4667 = vunpack.c.h.b16 %v4531
    %v4668 = vunpack.c.l.b16 %v4532
    %v4669 = vunpack.c.h.b16 %v4532
    %v4670 = vunpack.c.l.b16 %v4533
    %v4671 = vunpack.c.h.b16 %v4533
    %v4672 = vunpack.c.l.b16 %v4534
    %v4673 = vunpack.c.h.b16 %v4534
    %v4674 = vunpack.c.l.b16 %v4535
    %v4675 = vunpack.c.h.b16 %v4535
    %v4676 = vunpack.c.l.b16 %v4536
    %v4677 = vunpack.c.h.b16 %v4536
    %v4678 = vunpack.c.l.b16 %v4537
    %v4679 = vunpack.c.h.b16 %v4537
    %v4680 = vunpack.c.l.b16 %v4538
    %v4681 = vunpack.c.h.b16 %v4538
    %v4682 = vunpack.c.l.b16 %v4539
    %v4683 = vunpack.c.h.b16 %v4539
    %v4684 = vunpack.c.l.b16 %v4540
    %v4685 = vunpack.c.h.b16 %v4540
    %v4686 = vunpack.c.l.b16 %v4541
    %v4687 = vunpack.c.h.b16 %v4541
    %v4688 = vunpack.c.l.b16 %v4542
    %v4689 = vunpack.c.h.b16 %v4542
    %v4690 = vunpack.c.l.b16 %v4543
    %v4691 = vunpack.c.h.b16 %v4543
    %v4692 = vunpack.c.l.b16 %v4544
    %v4693 = vunpack.c.h.b16 %v4544
    %v4694 = vunpack.c.l.b16 %v4545
    %v4695 = vunpack.c.h.b16 %v4545
    %v4696 = vunpack.c.l.b16 %v4546
    %v4697 = vunpack.c.h.b16 %v4546
    %v4698 = vunpack.c.l.b16 %v4547
    %v4699 = vunpack.c.h.b16 %v4547
    %v4700 = vunpack.c.l.b16 %v4548
    %v4701 = vunpack.c.h.b16 %v4548
    %v4702 = vunpack.c.l.b16 %v4549
    %v4703 = vunpack.c.h.b16 %v4549
    %v4704 = vunpack.c.l.b16 %v4550
    %v4705 = vunpack.c.h.b16 %v4550
    %v4706 = vunpack.c.l.b16 %v4551
    %v4707 = vunpack.c.h.b16 %v4551
    %v4708 = vunpack.c.l.b16 %v4552
    %v4709 = vunpack.c.h.b16 %v4552
    %v4710 = vunpack.c.l.b16 %v4553
    %v4711 = vunpack.c.h.b16 %v4553
    %v4712 = vunpack.c.l.b16 %v4554
    %v4713 = vunpack.c.h.b16 %v4554
    %v4714 = vunpack.c.l.b16 %v4555
    %v4715 = vunpack.c.h.b16 %v4555
    %v4716 = vunpack.c.l.b16 %v4556
    %v4717 = vunpack.c.h.b16 %v4556
    %v4718 = vunpack.c.l.b16 %v4557
    %v4719 = vunpack.c.h.b16 %v4557
    %v4720 = vunpack.c.l.b16 %v4558
    %v4721 = vunpack.c.h.b16 %v4558
    %v4722 = vunpack.c.l.b16 %v4559
    %v4723 = vunpack.c.h.b16 %v4559
    %v4724 = vunpack.c.l.b16 %v4560
    %v4725 = vunpack.c.h.b16 %v4560
    %v4726 = vunpack.c.l.b16 %v4561
    %v4727 = vunpack.c.h.b16 %v4561
    %v4728 = vunpack.c.l.b16 %v4562
    %v4729 = vunpack.c.h.b16 %v4562
    %v4730 = vpack.c.b16 %v4636, %v4634
    %v4731 = vpack.c.b16 %v4637, %v4635
    %v4732 = vpack.c.b16 %v4640, %v4638
    %v4733 = vpack.c.b16 %v4641, %v4639
    %v4734 = vpack.c.b16 %v4644, %v4642
    %v4735 = vpack.c.b16 %v4645, %v4643
    %v4736 = vpack.c.b16 %v4648, %v4646
    %v4737 = vpack.c.b16 %v4649, %v4647
    %v4738 = vpack.c.b16 %v4652, %v4650
    %v4739 = vpack.c.b16 %v4653, %v4651
    %v4740 = vpack.c.b16 %v4656, %v4654
    %v4741 = vpack.c.b16 %v4657, %v4655
    %v4742 = vpack.c.b16 %v4660, %v4658
    %v4743 = vpack.c.b16 %v4661, %v4659
    %v4744 = vpack.c.b16 %v4664, %v4662
    %v4745 = vpack.c.b16 %v4665, %v4663
    %v4746 = vpack.c.b16 %v4668, %v4666
    %v4747 = vpack.c.b16 %v4669, %v4667
    %v4748 = vpack.c.b16 %v4672, %v4670
    %v4749 = vpack.c.b16 %v4673, %v4671
    %v4750 = vpack.c.b16 %v4676, %v4674
    %v4751 = vpack.c.b16 %v4677, %v4675
    %v4752 = vpack.c.b16 %v4680, %v4678
    %v4753 = vpack.c.b16 %v4681, %v4679
    %v4754 = vpack.c.b16 %v4684, %v4682
    %v4755 = vpack.c.b16 %v4685, %v4683
    %v4756 = vpack.c.b16 %v4688, %v4686
    %v4757 = vpack.c.b16 %v4689, %v4687
    %v4758 = vpack.c.b16 %v4692, %v4690
    %v4759 = vpack.c.b16 %v4693, %v4691
    %v4760 = vpack.c.b16 %v4696, %v4694
    %v4761 = vpack.c.b16 %v4697, %v4695
    %v4762 = vpack.c.b16 %v4700, %v4698
    %v4763 = vpack.c.b16 %v4701, %v4699
    %v4764 = vpack.c.b16 %v4704, %v4702
    %v4765 = vpack.c.b16 %v4705, %v4703
    %v4766 = vpack.c.b16 %v4708, %v4706
    %v4767 = vpack.c.b16 %v4709, %v4707
    %v4768 = vpack.c.b16 %v4712, %v4710
    %v4769 = vpack.c.b16 %v4713, %v4711
    %v4770 = vpack.c.b16 %v4716, %v4714
    %v4771 = vpack.c.b16 %v4717, %v4715
    %v4772 = vpack.c.b16 %v4720, %v4718
    %v4773 = vpack.c.b16 %v4721, %v4719
    %v4774 = vpack.c.b16 %v4724, %v4722
    %v4775 = vpack.c.b16 %v4725, %v4723
    %v4776 = vpack.c.b16 %v4728, %v4726
    %v4777 = vpack.c.b16 %v4729, %v4727
    %4826 = vmatprep.subr.bf16.mxu0 %v4731
    %4827 = vmatpush1.bf16.msra.mxu0 %v4730
    %4828 = vmatprep.subr.bf16.mxu0 %v4733
    %4829 = vmatpush1.bf16.msra.mxu0 %v4732
    %4830 = vmatprep.subr.bf16.mxu0 %v4735
    %4831 = vmatpush1.bf16.msra.mxu0 %v4734
    %4832 = vmatprep.subr.bf16.mxu0 %v4737
    %4833 = vmatpush1.bf16.msra.mxu0 %v4736
    %4834 = vmatprep.subr.bf16.mxu0 %v4739
    %4835 = vmatpush1.bf16.msra.mxu0 %v4738
    %4836 = vmatprep.subr.bf16.mxu0 %v4741
    %4837 = vmatpush1.bf16.msra.mxu0 %v4740
    %4838 = vmatprep.subr.bf16.mxu0 %v4743
    %4839 = vmatpush1.bf16.msra.mxu0 %v4742
    %4840 = vmatprep.subr.bf16.mxu0 %v4745
    %4841 = vmatpush1.bf16.msra.mxu0 %v4744
    %4842 = vmatprep.subr.bf16.mxu0 %v4747
    %4843 = vmatpush1.bf16.msra.mxu0 %v4746
    %4844 = vmatprep.subr.bf16.mxu0 %v4749
    %4845 = vmatpush1.bf16.msra.mxu0 %v4748
    %4846 = vmatprep.subr.bf16.mxu0 %v4751
    %4847 = vmatpush1.bf16.msra.mxu0 %v4750
    %4848 = vmatprep.subr.bf16.mxu0 %v4753
    %4849 = vmatpush1.bf16.msra.mxu0 %v4752
    %4850 = vmatprep.subr.bf16.mxu0 %v4755
    %4851 = vmatpush1.bf16.msra.mxu0 %v4754
    %4852 = vmatprep.subr.bf16.mxu0 %v4757
    %4853 = vmatpush1.bf16.msra.mxu0 %v4756
    %4854 = vmatprep.subr.bf16.mxu0 %v4759
    %4855 = vmatpush1.bf16.msra.mxu0 %v4758
    %4856 = vmatprep.subr.bf16.mxu0 %v4761
    %4857 = vmatpush1.bf16.msra.mxu0 %v4760
    %4858 = vmatprep.mubr.bf16.mxu0 %v4581
    %4859 = vmatmul.mubr.bf16.gmra.mrb[0].mxu0 %v4580
    %v4860 = vpop.f32.mrb[0].mxu0
    %v4861 = vadd.f32 %v4568, %v4860
    %v4862 = vpop.f32.mrb[0].mxu0
    %v4863 = vadd.f32 %v4572, %v4862
    %v4864 = vpop.f32.mrb[0].mxu0
    %v4865 = vpop.f32.mrb[0].mxu0
    %4866 = vdwg.mxu0
    %4867 = vmatprep.subr.bf16.mxu0 %v4763
    %4868 = vmatpush1.bf16.msra.mxu0 %v4762
    %4869 = vmatprep.subr.bf16.mxu0 %v4765
    %4870 = vmatpush1.bf16.msra.mxu0 %v4764
    %4871 = vmatprep.subr.bf16.mxu0 %v4767
    %4872 = vmatpush1.bf16.msra.mxu0 %v4766
    %4873 = vmatprep.subr.bf16.mxu0 %v4769
    %4874 = vmatpush1.bf16.msra.mxu0 %v4768
    %4875 = vmatprep.subr.bf16.mxu0 %v4771
    %4876 = vmatpush1.bf16.msra.mxu0 %v4770
    %4877 = vmatprep.subr.bf16.mxu0 %v4773
    %4878 = vmatpush1.bf16.msra.mxu0 %v4772
    %4879 = vmatprep.subr.bf16.mxu0 %v4775
    %4880 = vmatpush1.bf16.msra.mxu0 %v4774
    %4881 = vmatprep.subr.bf16.mxu0 %v4777
    %4882 = vmatpush1.bf16.msra.mxu0 %v4776
    %4883 = vmatprep.subr.bf16.mxu0 0
    %4884 = vmatpush1.bf16.msra.mxu0 0
    %4885 = vmatprep.subr.bf16.mxu0 0
    %4886 = vmatpush1.bf16.msra.mxu0 0
    %4887 = vmatprep.subr.bf16.mxu0 0
    %4888 = vmatpush1.bf16.msra.mxu0 0
    %4889 = vmatprep.subr.bf16.mxu0 0
    %4890 = vmatpush1.bf16.msra.mxu0 0
    %4891 = vmatprep.subr.bf16.mxu0 0
    %4892 = vmatpush1.bf16.msra.mxu0 0
    %4893 = vmatprep.subr.bf16.mxu0 0
    %4894 = vmatpush1.bf16.msra.mxu0 0
    %4895 = vmatprep.subr.bf16.mxu0 0
    %4896 = vmatpush1.bf16.msra.mxu0 0
    %4897 = vmatprep.subr.bf16.mxu0 0
    %4898 = vmatpush1.bf16.msra.mxu0 0
    %4899 = vmatprep.mubr.bf16.mxu0 0
    %4900 = vmatmul.mubr.bf16.gmra.mrb[0].mxu0 %v4582
    %v4901 = vpop.f32.mrb[0].mxu0
    %v4902 = vadd.f32 %v4861, %v4901
    %v4903 = vpop.f32.mrb[0].mxu0
    %v4904 = vadd.f32 %v4863, %v4903
    %v4905 = vpop.f32.mrb[0].mxu0
    %v4906 = vpop.f32.mrb[0].mxu0
    %4907 = vdwg.mxu0
    %4908 = vst [vmem:[#allocation19] sm:$0xff] %v4902
    %4909 = vst [vmem:[#allocation19 + $0x8] sm:$0xff] %v4904
    // Predicated region
    $region118: #{tpu_custom_call.1} parent=1 // pred_check
      _
    $region119: #{tpu_custom_call.1} parent=1 // pred_check_branch
      %4911 = sbr.rel (0) target = $region121
    $region120: #{tpu_custom_call.1} parent=1 // pred_region
      %s4913 = ssub.s32 256, 256
      %4914 = vsyncadd [#allocation9], %s4913
      %s4916 = sshll.u32 [#allocation19], 4
      %s4917 = int_to_ptr.vmem [resolvable:$true] %s4916
      %4919 = dma.vmem_to_hbm [thread:$0]  %s4917, 256, %s15, [#allocation9]
    $region121: #{tpu_custom_call.1} parent=1 // pred_fallthru
      _
    // Predicated region
    $region122: #{tpu_custom_call.1} parent=1 // pred_check
      _
    $region123: #{tpu_custom_call.1} parent=1 // pred_check_branch
      %4921 = sbr.rel (0) target = $region125
    $region124: #{tpu_custom_call.1} parent=1 // pred_region
      %s4923 = ssub.s32 128, 128
      %4924 = vsyncadd [#allocation21], %s4923
      %s4926 = sshll.u32 [#allocation20], 4
      %s4927 = int_to_ptr.vmem [resolvable:$true] %s4926
      %4929 = dma.vmem_to_hbm [thread:$0]  %s4927, 128, %s16, [#allocation21]
    $region125: #{tpu_custom_call.1} parent=1 // pred_fallthru
      _
    // Predicated region
    $region126: #{tpu_custom_call.1} parent=1 // pred_check
      _
    $region127: #{tpu_custom_call.1} parent=1 // pred_check_branch
      %4931 = sbr.rel (0) target = $region129
    $region128: #{tpu_custom_call.1} parent=1 // pred_region
      %s4933 = ssub.s32 128, 128
      %4934 = vsyncadd [#allocation21], %s4933
      %s4936 = sshll.u32 [#allocation22], 4
      %s4937 = int_to_ptr.vmem [resolvable:$true] %s4936
      %4939 = dma.vmem_to_hbm [thread:$0]  %s4937, 128, %s17, [#allocation21]
    $region129: #{tpu_custom_call.1} parent=1 // pred_fallthru
      _
    // Predicated region
    $region130: #{tpu_custom_call.1} parent=1 // pred_check
      _
    $region131: #{tpu_custom_call.1} parent=1 // pred_check_branch
      %4941 = sbr.rel (0) target = $region133
    $region132: #{tpu_custom_call.1} parent=1 // pred_region
      %4942 = dma.done [#allocation9], 256
    $region133: #{tpu_custom_call.1} parent=1 // pred_fallthru
      _
    // Predicated region
    $region134: #{tpu_custom_call.1} parent=1 // pred_check
      _
    $region135: #{tpu_custom_call.1} parent=1 // pred_check_branch
      %4944 = sbr.rel (0) target = $region137
    $region136: #{tpu_custom_call.1} parent=1 // pred_region
      %4945 = dma.done [#allocation21], 128
    $region137: #{tpu_custom_call.1} parent=1 // pred_fallthru
      _
    // Predicated region
    $region138: #{tpu_custom_call.1} parent=1 // pred_check
      _
    $region139: #{tpu_custom_call.1} parent=1 // pred_check_branch
      %4947 = sbr.rel (0) target = $region141
    $region140: #{tpu_custom_call.1} parent=1 // pred_region
      %4948 = dma.done [#allocation21], 128
    $region141: #{tpu_custom_call.1} parent=1 // pred_fallthru
      _
    %4949 = vsyncpa [#allocation8], 1
    %4950 = vsyncpa [#allocation11], 1
    %4951 = vsyncpa [#allocation14], 1
    %4952 = vsyncpa [#allocation17], 1
    %4953 = vsyncpa [#allocation9], 1
    %4954 = vsyncpa [#allocation21], 1
  %4955 = vsyncmov [#allocation4]
  %s4956 = vpop.sfrf %4955
  %p4957 = scmp.eq.s32.totalorder %s4956, 0
  %p4958 = pneg %p4957
  %4960 = shalt.err (%p4958)
  %s4961 = scalar_lea.sflag [#allocation4], 1
  %4962 = vsyncmov %s4961
  %s4963 = vpop.sfrf %4962
  %p4964 = scmp.eq.s32.totalorder %s4963, 0
  %p4965 = pneg %p4964
  %4967 = shalt.err (%p4965)
  %s4968 = scalar_lea.sflag [#allocation4], 2
  %4969 = vsyncmov %s4968
  %s4970 = vpop.sfrf %4969
  %p4971 = scmp.eq.s32.totalorder %s4970, 0
  %p4972 = pneg %p4971
  %4974 = shalt.err (%p4972)
  %s4975 = scalar_lea.sflag [#allocation4], 3
  %4976 = vsyncmov %s4975
  %s4977 = vpop.sfrf %4976
  %p4978 = scmp.eq.s32.totalorder %s4977, 0
  %p4979 = pneg %p4978
  %4981 = shalt.err (%p4979)
  %s4982 = scalar_lea.sflag [#allocation4], 4
  %4983 = vsyncmov %s4982
  %s4984 = vpop.sfrf %4983
  %p4985 = scmp.eq.s32.totalorder %s4984, 0
  %p4986 = pneg %p4985
  %4988 = shalt.err (%p4986)
  %s4989 = scalar_lea.sflag [#allocation4], 5
  %4990 = vsyncmov %s4989
  %s4991 = vpop.sfrf %4990
  %p4992 = scmp.eq.s32.totalorder %s4991, 0
  %p4993 = pneg %p4992
  %4995 = shalt.err (%p4993)
  %s4996 = scalar_lea.sflag [#allocation4], 6
  %4997 = vsyncmov %s4996
  %s4998 = vpop.sfrf %4997
  %p4999 = scmp.eq.s32.totalorder %s4998, 0
  %p5000 = pneg %p4999
  %5002 = shalt.err (%p5000)
  %s5003 = scalar_lea.sflag [#allocation4], 7
  %5004 = vsyncmov %s5003
  %s5005 = vpop.sfrf %5004
  %p5006 = scmp.eq.s32.totalorder %s5005, 0
  %p5007 = pneg %p5006
  %5009 = shalt.err (%p5007)

</llo_original>
